<compile_context>
chip_gen: v5e
topology: v5e:2x2
jax: 0.10.0
libtpu: 0.0.40
codegen_flags: <defaults>
</compile_context>

<pallas_src>
import functools

import jax
import jax.numpy as jnp
from jax import lax
from jax.experimental import pallas as pl
from jax.experimental.pallas import tpu as pltpu

_HP = lax.Precision.HIGHEST


def _attention_kernel(v_ref, k_ref, q_ref, wv_ref, wk_ref, wq_ref, wo_ref, o_ref, *,
                      heads):
    E = wq_ref.shape[0]
    D = E // heads
    scale = 1.0 / (float(E) ** 0.5)          # PyTorch: energy / embed_size ** (1/2)

    xv = v_ref[0]                             # (Lv, E)
    xk = k_ref[0]                             # (Lk, E)
    xq = q_ref[0]                             # (Lq, E)

    # Input projections: one full-width matmul each (contraction dim = E).
    v = jnp.dot(xv, wv_ref[...], preferred_element_type=jnp.float32, precision=_HP)
    k = jnp.dot(xk, wk_ref[...], preferred_element_type=jnp.float32, precision=_HP)
    q = jnp.dot(xq, wq_ref[...], preferred_element_type=jnp.float32, precision=_HP)
    q = q * scale                             # fold softmax scale into Q once

    Lq = xq.shape[0]
    out = jnp.zeros((Lq, E), jnp.float32)

    # Per-head scaled-dot-product attention; heads is small & static -> unrolled loop.
    for h in range(heads):
        sl = slice(h * D, (h + 1) * D)
        qh, kh, vh = q[:, sl], k[:, sl], v[:, sl]
        # energy = qh @ kh^T without materializing a transpose (contract the D axes).
        e = lax.dot_general(qh, kh, (((1,), (1,)), ((), ())),
                            preferred_element_type=jnp.float32, precision=_HP)
        m = jnp.max(e, axis=-1, keepdims=True)
        p = jnp.exp(e - m)
        s = jnp.sum(p, axis=-1, keepdims=True)
        a = p / s                                             # softmax over key axis
        ah_v = jnp.dot(a, vh, preferred_element_type=jnp.float32, precision=_HP)
        # Output projection accumulated head-by-head with sublane-aligned weight slices
        # (equivalent to concat(heads) @ Wo, but without a lane-axis concatenate).
        out = out + jnp.dot(ah_v, wo_ref[sl, :],
                            preferred_element_type=jnp.float32, precision=_HP)

    o_ref[0] = out.astype(o_ref.dtype)


def attention_pallas(values_in, keys_in, query_in, params, heads):
    """values_in/keys_in: (N, Lkv, E); query_in: (N, Lq, E).
    params holds torch-layout (out, in) weights for values/keys/queries/mh Linear."""
    N, Lv, E = values_in.shape
    Lk = keys_in.shape[1]
    Lq = query_in.shape[1]

    # torch Linear is x @ W^T; pre-transpose once at the boundary (glue only).
    wv = params['values_w'].T
    wk = params['keys_w'].T
    wq = params['queries_w'].T
    wo = params['mh_w'].T

    kernel = functools.partial(_attention_kernel, heads=heads)
    return pl.pallas_call(
        kernel,
        out_shape=jax.ShapeDtypeStruct((N, Lq, E), jnp.float32),
        grid=(N,),
        in_specs=[
            pl.BlockSpec((1, Lv, E), lambda n: (n, 0, 0)),   # values_in
            pl.BlockSpec((1, Lk, E), lambda n: (n, 0, 0)),   # keys_in
            pl.BlockSpec((1, Lq, E), lambda n: (n, 0, 0)),   # query_in
            pl.BlockSpec((E, E), lambda n: (0, 0)),          # Wv (in, out)
            pl.BlockSpec((E, E), lambda n: (0, 0)),          # Wk
            pl.BlockSpec((E, E), lambda n: (0, 0)),          # Wq
            pl.BlockSpec((E, E), lambda n: (0, 0)),          # Wo
        ],
        out_specs=pl.BlockSpec((1, Lq, E), lambda n: (n, 0, 0)),
        compiler_params=pltpu.CompilerParams(
            dimension_semantics=("parallel",)),              # 1 sample / TC on v7x
    )(values_in, keys_in, query_in, wv, wk, wq, wo)


# ---------------------------------------------------------------------------
# pure-JAX reference mirroring the PyTorch forward, for validation
# ---------------------------------------------------------------------------
def attention_ref(values_in, keys_in, query_in, params, heads):
    N, Lq, E = query_in.shape
    Lv = values_in.shape[1]
    Lk = keys_in.shape[1]
    D = E // heads
    v = jnp.dot(values_in, params['values_w'].T, precision=_HP)
    k = jnp.dot(keys_in, params['keys_w'].T, precision=_HP)
    q = jnp.dot(query_in, params['queries_w'].T, precision=_HP)
    v = v.reshape(N, Lv, heads, D)
    k = k.reshape(N, Lk, heads, D)
    q = q.reshape(N, Lq, heads, D)
    energy = jnp.einsum('nqhd,nkhd->nhqk', q, k, precision=_HP)
    attn = jax.nn.softmax(energy / (E ** 0.5), axis=3)
    out = jnp.einsum('nhql,nlhd->nqhd', attn, v, precision=_HP).reshape(N, Lq, E)
    return jnp.dot(out, params['mh_w'].T, precision=_HP)


if __name__ == "__main__":
    EMBED, HEADS = 32, 4
    N, L_KV, L_Q = 2, 16, 8

    key = jax.random.PRNGKey(0)
    ks = jax.random.split(key, 8)

    def nrm(k, shape, scale=0.1):
        return scale * jax.random.normal(k, shape, dtype=jnp.float32)

    params = {
        # torch nn.Linear weight layout: (out_features, in_features), bias=False
        'values_w': nrm(ks[0], (EMBED, EMBED)),
        'keys_w': nrm(ks[1], (EMBED, EMBED)),
        'queries_w': nrm(ks[2], (EMBED, EMBED)),
        'mh_w': nrm(ks[3], (EMBED, EMBED)),
    }

    values_in = nrm(ks[4], (N, L_KV, EMBED), scale=1.0)
    keys_in = nrm(ks[5], (N, L_KV, EMBED), scale=1.0)
    query_in = nrm(ks[6], (N, L_Q, EMBED), scale=1.0)

    out = attention_pallas(values_in, keys_in, query_in, params, HEADS)
    out = jax.block_until_ready(out)

    ref = attention_ref(values_in, keys_in, query_in, params, HEADS)
    assert out.shape == (N, L_Q, EMBED), out.shape
    err = float(jnp.max(jnp.abs(out - ref)))
    assert err < 1e-3, f"max abs err vs reference: {err}"

    print("KERNEL_OK")
</pallas_src>

<mosaic_0001>
module attributes {stable_mosaic.version = 11 : i64} {
  func.func @_attention_kernel(%arg0: i32, %arg1: memref<1x16x32xf32, #tpu.memory_space<vmem>>, %arg2: memref<1x16x32xf32, #tpu.memory_space<vmem>>, %arg3: memref<1x8x32xf32, #tpu.memory_space<vmem>>, %arg4: memref<32x32xf32, #tpu.memory_space<vmem>>, %arg5: memref<32x32xf32, #tpu.memory_space<vmem>>, %arg6: memref<32x32xf32, #tpu.memory_space<vmem>>, %arg7: memref<32x32xf32, #tpu.memory_space<vmem>>, %arg8: memref<1x8x32xf32, #tpu.memory_space<vmem>>) attributes {dimension_semantics = [#tpu.dimension_semantics<parallel>], iteration_bounds = array<i64: 2>, scalar_prefetch = 0 : i64, scratch_operands = 0 : i64, tpu.core_type = #tpu.core_type<tc>, window_params = [{transform_indices = @transform_0, window_bounds = array<i64: 1, 16, 32>}, {transform_indices = @transform_1, window_bounds = array<i64: 1, 16, 32>}, {transform_indices = @transform_2, window_bounds = array<i64: 1, 8, 32>}, {pipeline_mode = #tpu.pipeline_mode<synchronous>, transform_indices = @transform_3, window_bounds = array<i64: 32, 32>}, {pipeline_mode = #tpu.pipeline_mode<synchronous>, transform_indices = @transform_4, window_bounds = array<i64: 32, 32>}, {pipeline_mode = #tpu.pipeline_mode<synchronous>, transform_indices = @transform_5, window_bounds = array<i64: 32, 32>}, {pipeline_mode = #tpu.pipeline_mode<synchronous>, transform_indices = @transform_6, window_bounds = array<i64: 32, 32>}, {transform_indices = @transform_7, window_bounds = array<i64: 1, 8, 32>}]} {
    %c0 = arith.constant 0 : index
    %c0_0 = arith.constant 0 : index
    %c0_1 = arith.constant 0 : index
    %0 = vector.load %arg1[%c0, %c0_0, %c0_1] : memref<1x16x32xf32, #tpu.memory_space<vmem>>, vector<1x16x32xf32>
    %1 = vector.shape_cast %0 : vector<1x16x32xf32> to vector<16x32xf32>
    %c0_2 = arith.constant 0 : index
    %c0_3 = arith.constant 0 : index
    %c0_4 = arith.constant 0 : index
    %2 = vector.load %arg2[%c0_2, %c0_3, %c0_4] : memref<1x16x32xf32, #tpu.memory_space<vmem>>, vector<1x16x32xf32>
    %3 = vector.shape_cast %2 : vector<1x16x32xf32> to vector<16x32xf32>
    %c0_5 = arith.constant 0 : index
    %c0_6 = arith.constant 0 : index
    %c0_7 = arith.constant 0 : index
    %4 = vector.load %arg3[%c0_5, %c0_6, %c0_7] : memref<1x8x32xf32, #tpu.memory_space<vmem>>, vector<1x8x32xf32>
    %5 = vector.shape_cast %4 : vector<1x8x32xf32> to vector<8x32xf32>
    %c0_8 = arith.constant 0 : index
    %c0_9 = arith.constant 0 : index
    %6 = vector.load %arg4[%c0_8, %c0_9] : memref<32x32xf32, #tpu.memory_space<vmem>>, vector<32x32xf32>
    %cst = arith.constant dense<0.000000e+00> : vector<16x32xf32>
    %7 = tpu.matmul %1, %6, %cst {dimension_numbers = #tpu.dot_dimension_numbers<[1], [0], [0], [1], [0, 0, 1, 1], [], []>, precision = #tpu.contract_precision<fp32>} : vector<16x32xf32>, vector<32x32xf32>, vector<16x32xf32> -> vector<16x32xf32>
    %c0_10 = arith.constant 0 : index
    %c0_11 = arith.constant 0 : index
    %8 = vector.load %arg5[%c0_10, %c0_11] : memref<32x32xf32, #tpu.memory_space<vmem>>, vector<32x32xf32>
    %cst_12 = arith.constant dense<0.000000e+00> : vector<16x32xf32>
    %9 = tpu.matmul %3, %8, %cst_12 {dimension_numbers = #tpu.dot_dimension_numbers<[1], [0], [0], [1], [0, 0, 1, 1], [], []>, precision = #tpu.contract_precision<fp32>} : vector<16x32xf32>, vector<32x32xf32>, vector<16x32xf32> -> vector<16x32xf32>
    %c0_13 = arith.constant 0 : index
    %c0_14 = arith.constant 0 : index
    %10 = vector.load %arg6[%c0_13, %c0_14] : memref<32x32xf32, #tpu.memory_space<vmem>>, vector<32x32xf32>
    %cst_15 = arith.constant dense<0.000000e+00> : vector<8x32xf32>
    %11 = tpu.matmul %5, %10, %cst_15 {dimension_numbers = #tpu.dot_dimension_numbers<[1], [0], [0], [1], [0, 0, 1, 1], [], []>, precision = #tpu.contract_precision<fp32>} : vector<8x32xf32>, vector<32x32xf32>, vector<8x32xf32> -> vector<8x32xf32>
    %cst_16 = arith.constant 0.176776692 : f32
    %12 = vector.broadcast %cst_16 : f32 to vector<8x32xf32>
    %13 = arith.mulf %11, %12 : vector<8x32xf32>
    %cst_17 = arith.constant 0.000000e+00 : f32
    %14 = vector.broadcast %cst_17 : f32 to vector<8x32xf32>
    %15 = vector.extract_strided_slice %13 {offsets = [0, 0], sizes = [8, 8], strides = [1, 1]} : vector<8x32xf32> to vector<8x8xf32>
    %16 = vector.extract_strided_slice %9 {offsets = [0, 0], sizes = [16, 8], strides = [1, 1]} : vector<16x32xf32> to vector<16x8xf32>
    %17 = vector.extract_strided_slice %7 {offsets = [0, 0], sizes = [16, 8], strides = [1, 1]} : vector<16x32xf32> to vector<16x8xf32>
    %cst_18 = arith.constant dense<0.000000e+00> : vector<8x16xf32>
    %18 = tpu.matmul %15, %16, %cst_18 {dimension_numbers = #tpu.dot_dimension_numbers<[1], [1], [0], [0], [0, 0, 1, 0], [], []>, precision = #tpu.contract_precision<fp32>} : vector<8x8xf32>, vector<16x8xf32>, vector<8x16xf32> -> vector<8x16xf32>
    %cst_19 = arith.constant dense<0xFF800000> : vector<8xf32>
    %19 = vector.multi_reduction <maximumf>, %18, %cst_19 [1] : vector<8x16xf32> to vector<8xf32>
    %20 = vector.shape_cast %19 : vector<8xf32> to vector<8x1xf32>
    %21 = vector.broadcast %20 : vector<8x1xf32> to vector<8x16xf32>
    %22 = arith.subf %18, %21 : vector<8x16xf32>
    %23 = math.exp %22 : vector<8x16xf32>
    %cst_20 = arith.constant dense<0.000000e+00> : vector<8xf32>
    %24 = vector.multi_reduction <add>, %23, %cst_20 [1] : vector<8x16xf32> to vector<8xf32>
    %25 = vector.shape_cast %24 : vector<8xf32> to vector<8x1xf32>
    %26 = vector.broadcast %25 : vector<8x1xf32> to vector<8x16xf32>
    %27 = arith.divf %23, %26 : vector<8x16xf32>
    %cst_21 = arith.constant dense<0.000000e+00> : vector<8x8xf32>
    %28 = tpu.matmul %27, %17, %cst_21 {dimension_numbers = #tpu.dot_dimension_numbers<[1], [0], [0], [1], [0, 0, 1, 1], [], []>, precision = #tpu.contract_precision<fp32>} : vector<8x16xf32>, vector<16x8xf32>, vector<8x8xf32> -> vector<8x8xf32>
    %c0_22 = arith.constant 0 : index
    %c0_23 = arith.constant 0 : index
    %29 = vector.load %arg7[%c0_22, %c0_23] : memref<32x32xf32, #tpu.memory_space<vmem>>, vector<8x32xf32>
    %cst_24 = arith.constant dense<0.000000e+00> : vector<8x32xf32>
    %30 = tpu.matmul %28, %29, %cst_24 {dimension_numbers = #tpu.dot_dimension_numbers<[1], [0], [0], [1], [0, 0, 1, 1], [], []>, precision = #tpu.contract_precision<fp32>} : vector<8x8xf32>, vector<8x32xf32>, vector<8x32xf32> -> vector<8x32xf32>
    %31 = arith.addf %14, %30 : vector<8x32xf32>
    %32 = vector.extract_strided_slice %13 {offsets = [0, 8], sizes = [8, 8], strides = [1, 1]} : vector<8x32xf32> to vector<8x8xf32>
    %33 = vector.extract_strided_slice %9 {offsets = [0, 8], sizes = [16, 8], strides = [1, 1]} : vector<16x32xf32> to vector<16x8xf32>
    %34 = vector.extract_strided_slice %7 {offsets = [0, 8], sizes = [16, 8], strides = [1, 1]} : vector<16x32xf32> to vector<16x8xf32>
    %cst_25 = arith.constant dense<0.000000e+00> : vector<8x16xf32>
    %35 = tpu.matmul %32, %33, %cst_25 {dimension_numbers = #tpu.dot_dimension_numbers<[1], [1], [0], [0], [0, 0, 1, 0], [], []>, precision = #tpu.contract_precision<fp32>} : vector<8x8xf32>, vector<16x8xf32>, vector<8x16xf32> -> vector<8x16xf32>
    %cst_26 = arith.constant dense<0xFF800000> : vector<8xf32>
    %36 = vector.multi_reduction <maximumf>, %35, %cst_26 [1] : vector<8x16xf32> to vector<8xf32>
    %37 = vector.shape_cast %36 : vector<8xf32> to vector<8x1xf32>
    %38 = vector.broadcast %37 : vector<8x1xf32> to vector<8x16xf32>
    %39 = arith.subf %35, %38 : vector<8x16xf32>
    %40 = math.exp %39 : vector<8x16xf32>
    %cst_27 = arith.constant dense<0.000000e+00> : vector<8xf32>
    %41 = vector.multi_reduction <add>, %40, %cst_27 [1] : vector<8x16xf32> to vector<8xf32>
    %42 = vector.shape_cast %41 : vector<8xf32> to vector<8x1xf32>
    %43 = vector.broadcast %42 : vector<8x1xf32> to vector<8x16xf32>
    %44 = arith.divf %40, %43 : vector<8x16xf32>
    %cst_28 = arith.constant dense<0.000000e+00> : vector<8x8xf32>
    %45 = tpu.matmul %44, %34, %cst_28 {dimension_numbers = #tpu.dot_dimension_numbers<[1], [0], [0], [1], [0, 0, 1, 1], [], []>, precision = #tpu.contract_precision<fp32>} : vector<8x16xf32>, vector<16x8xf32>, vector<8x8xf32> -> vector<8x8xf32>
    %c8 = arith.constant 8 : index
    %c0_29 = arith.constant 0 : index
    %46 = vector.load %arg7[%c8, %c0_29] : memref<32x32xf32, #tpu.memory_space<vmem>>, vector<8x32xf32>
    %cst_30 = arith.constant dense<0.000000e+00> : vector<8x32xf32>
    %47 = tpu.matmul %45, %46, %cst_30 {dimension_numbers = #tpu.dot_dimension_numbers<[1], [0], [0], [1], [0, 0, 1, 1], [], []>, precision = #tpu.contract_precision<fp32>} : vector<8x8xf32>, vector<8x32xf32>, vector<8x32xf32> -> vector<8x32xf32>
    %48 = arith.addf %31, %47 : vector<8x32xf32>
    %49 = vector.extract_strided_slice %13 {offsets = [0, 16], sizes = [8, 8], strides = [1, 1]} : vector<8x32xf32> to vector<8x8xf32>
    %50 = vector.extract_strided_slice %9 {offsets = [0, 16], sizes = [16, 8], strides = [1, 1]} : vector<16x32xf32> to vector<16x8xf32>
    %51 = vector.extract_strided_slice %7 {offsets = [0, 16], sizes = [16, 8], strides = [1, 1]} : vector<16x32xf32> to vector<16x8xf32>
    %cst_31 = arith.constant dense<0.000000e+00> : vector<8x16xf32>
    %52 = tpu.matmul %49, %50, %cst_31 {dimension_numbers = #tpu.dot_dimension_numbers<[1], [1], [0], [0], [0, 0, 1, 0], [], []>, precision = #tpu.contract_precision<fp32>} : vector<8x8xf32>, vector<16x8xf32>, vector<8x16xf32> -> vector<8x16xf32>
    %cst_32 = arith.constant dense<0xFF800000> : vector<8xf32>
    %53 = vector.multi_reduction <maximumf>, %52, %cst_32 [1] : vector<8x16xf32> to vector<8xf32>
    %54 = vector.shape_cast %53 : vector<8xf32> to vector<8x1xf32>
    %55 = vector.broadcast %54 : vector<8x1xf32> to vector<8x16xf32>
    %56 = arith.subf %52, %55 : vector<8x16xf32>
    %57 = math.exp %56 : vector<8x16xf32>
    %cst_33 = arith.constant dense<0.000000e+00> : vector<8xf32>
    %58 = vector.multi_reduction <add>, %57, %cst_33 [1] : vector<8x16xf32> to vector<8xf32>
    %59 = vector.shape_cast %58 : vector<8xf32> to vector<8x1xf32>
    %60 = vector.broadcast %59 : vector<8x1xf32> to vector<8x16xf32>
    %61 = arith.divf %57, %60 : vector<8x16xf32>
    %cst_34 = arith.constant dense<0.000000e+00> : vector<8x8xf32>
    %62 = tpu.matmul %61, %51, %cst_34 {dimension_numbers = #tpu.dot_dimension_numbers<[1], [0], [0], [1], [0, 0, 1, 1], [], []>, precision = #tpu.contract_precision<fp32>} : vector<8x16xf32>, vector<16x8xf32>, vector<8x8xf32> -> vector<8x8xf32>
    %c16 = arith.constant 16 : index
    %c0_35 = arith.constant 0 : index
    %63 = vector.load %arg7[%c16, %c0_35] : memref<32x32xf32, #tpu.memory_space<vmem>>, vector<8x32xf32>
    %cst_36 = arith.constant dense<0.000000e+00> : vector<8x32xf32>
    %64 = tpu.matmul %62, %63, %cst_36 {dimension_numbers = #tpu.dot_dimension_numbers<[1], [0], [0], [1], [0, 0, 1, 1], [], []>, precision = #tpu.contract_precision<fp32>} : vector<8x8xf32>, vector<8x32xf32>, vector<8x32xf32> -> vector<8x32xf32>
    %65 = arith.addf %48, %64 : vector<8x32xf32>
    %66 = vector.extract_strided_slice %13 {offsets = [0, 24], sizes = [8, 8], strides = [1, 1]} : vector<8x32xf32> to vector<8x8xf32>
    %67 = vector.extract_strided_slice %9 {offsets = [0, 24], sizes = [16, 8], strides = [1, 1]} : vector<16x32xf32> to vector<16x8xf32>
    %68 = vector.extract_strided_slice %7 {offsets = [0, 24], sizes = [16, 8], strides = [1, 1]} : vector<16x32xf32> to vector<16x8xf32>
    %cst_37 = arith.constant dense<0.000000e+00> : vector<8x16xf32>
    %69 = tpu.matmul %66, %67, %cst_37 {dimension_numbers = #tpu.dot_dimension_numbers<[1], [1], [0], [0], [0, 0, 1, 0], [], []>, precision = #tpu.contract_precision<fp32>} : vector<8x8xf32>, vector<16x8xf32>, vector<8x16xf32> -> vector<8x16xf32>
    %cst_38 = arith.constant dense<0xFF800000> : vector<8xf32>
    %70 = vector.multi_reduction <maximumf>, %69, %cst_38 [1] : vector<8x16xf32> to vector<8xf32>
    %71 = vector.shape_cast %70 : vector<8xf32> to vector<8x1xf32>
    %72 = vector.broadcast %71 : vector<8x1xf32> to vector<8x16xf32>
    %73 = arith.subf %69, %72 : vector<8x16xf32>
    %74 = math.exp %73 : vector<8x16xf32>
    %cst_39 = arith.constant dense<0.000000e+00> : vector<8xf32>
    %75 = vector.multi_reduction <add>, %74, %cst_39 [1] : vector<8x16xf32> to vector<8xf32>
    %76 = vector.shape_cast %75 : vector<8xf32> to vector<8x1xf32>
    %77 = vector.broadcast %76 : vector<8x1xf32> to vector<8x16xf32>
    %78 = arith.divf %74, %77 : vector<8x16xf32>
    %cst_40 = arith.constant dense<0.000000e+00> : vector<8x8xf32>
    %79 = tpu.matmul %78, %68, %cst_40 {dimension_numbers = #tpu.dot_dimension_numbers<[1], [0], [0], [1], [0, 0, 1, 1], [], []>, precision = #tpu.contract_precision<fp32>} : vector<8x16xf32>, vector<16x8xf32>, vector<8x8xf32> -> vector<8x8xf32>
    %c24 = arith.constant 24 : index
    %c0_41 = arith.constant 0 : index
    %80 = vector.load %arg7[%c24, %c0_41] : memref<32x32xf32, #tpu.memory_space<vmem>>, vector<8x32xf32>
    %cst_42 = arith.constant dense<0.000000e+00> : vector<8x32xf32>
    %81 = tpu.matmul %79, %80, %cst_42 {dimension_numbers = #tpu.dot_dimension_numbers<[1], [0], [0], [1], [0, 0, 1, 1], [], []>, precision = #tpu.contract_precision<fp32>} : vector<8x8xf32>, vector<8x32xf32>, vector<8x32xf32> -> vector<8x32xf32>
    %82 = arith.addf %65, %81 : vector<8x32xf32>
    %c0_43 = arith.constant 0 : index
    %c0_44 = arith.constant 0 : index
    %c0_45 = arith.constant 0 : index
    %83 = vector.load %arg8[%c0_43, %c0_44, %c0_45] : memref<1x8x32xf32, #tpu.memory_space<vmem>>, vector<1x8x32xf32>
    %84 = vector.shape_cast %83 : vector<1x8x32xf32> to vector<8x32xf32>
    %85 = vector.shape_cast %82 : vector<8x32xf32> to vector<1x8x32xf32>
    tpu.vector_store %arg8[%c0_43, %c0_44, %c0_45], %85 {strides = array<i32>} : memref<1x8x32xf32, #tpu.memory_space<vmem>>, vector<1x8x32xf32>,
    return
  }
  func.func @transform_0(%arg0: i32) -> (i32, i32, i32) {
    %c0_i32 = arith.constant 0 : i32
    %c0_i32_0 = arith.constant 0 : i32
    %c0_i32_1 = arith.constant 0 : i32
    return %arg0, %c0_i32, %c0_i32_0 : i32, i32, i32
  }
  func.func @transform_1(%arg0: i32) -> (i32, i32, i32) {
    %c0_i32 = arith.constant 0 : i32
    %c0_i32_0 = arith.constant 0 : i32
    %c0_i32_1 = arith.constant 0 : i32
    return %arg0, %c0_i32, %c0_i32_0 : i32, i32, i32
  }
  func.func @transform_2(%arg0: i32) -> (i32, i32, i32) {
    %c0_i32 = arith.constant 0 : i32
    %c0_i32_0 = arith.constant 0 : i32
    %c0_i32_1 = arith.constant 0 : i32
    return %arg0, %c0_i32, %c0_i32_0 : i32, i32, i32
  }
  func.func @transform_3(%arg0: i32) -> (i32, i32) {
    %c0_i32 = arith.constant 0 : i32
    %c0_i32_0 = arith.constant 0 : i32
    %c0_i32_1 = arith.constant 0 : i32
    return %c0_i32, %c0_i32_0 : i32, i32
  }
  func.func @transform_4(%arg0: i32) -> (i32, i32) {
    %c0_i32 = arith.constant 0 : i32
    %c0_i32_0 = arith.constant 0 : i32
    %c0_i32_1 = arith.constant 0 : i32
    return %c0_i32, %c0_i32_0 : i32, i32
  }
  func.func @transform_5(%arg0: i32) -> (i32, i32) {
    %c0_i32 = arith.constant 0 : i32
    %c0_i32_0 = arith.constant 0 : i32
    %c0_i32_1 = arith.constant 0 : i32
    return %c0_i32, %c0_i32_0 : i32, i32
  }
  func.func @transform_6(%arg0: i32) -> (i32, i32) {
    %c0_i32 = arith.constant 0 : i32
    %c0_i32_0 = arith.constant 0 : i32
    %c0_i32_1 = arith.constant 0 : i32
    return %c0_i32, %c0_i32_0 : i32, i32
  }
  func.func @transform_7(%arg0: i32) -> (i32, i32, i32) {
    %c0_i32 = arith.constant 0 : i32
    %c0_i32_0 = arith.constant 0 : i32
    %c0_i32_1 = arith.constant 0 : i32
    return %arg0, %c0_i32, %c0_i32_0 : i32, i32, i32
  }
}

</mosaic_0001>

<llo_original>
// kernel: tpu_custom_call.1
$region0: #{tpu_custom_call.1}
  #allocation0 [shape = 'u32[]', space=smem, size = 0x4, offset = 0x4, fixed_abs, tag = 'smem constant byte address 0x4 - core index']
  #allocation1 [shape = 'u32[72,128]{1,0:T(1,128)}', space=vmem, size = 0x9000, scoped, tag = 'internal scratch']
  %s0 = inlined_call_operand.hbm [shape: f32[2,16,32], index: 0, kind: input, shape index: {}]
  %s1 = inlined_call_operand.hbm [shape: f32[2,16,32], index: 1, kind: input, shape index: {}]
  %s2 = inlined_call_operand.hbm [shape: f32[2,8,32], index: 2, kind: input, shape index: {}]
  %s3 = inlined_call_operand.hbm [shape: f32[32,32], index: 3, kind: input, shape index: {}]
  %s4 = inlined_call_operand.hbm [shape: f32[32,32], index: 4, kind: input, shape index: {}]
  %s5 = inlined_call_operand.hbm [shape: f32[32,32], index: 5, kind: input, shape index: {}]
  %s6 = inlined_call_operand.hbm [shape: f32[32,32], index: 6, kind: input, shape index: {}]
  %s7 = inlined_call_operand.hbm [shape: f32[2,8,32], index: 7, kind: output, shape index: {}]
  %s8 = sld [smem:[#allocation0]]
  $region89: #{tpu_custom_call.1} parent=0
    _
  %s10 = ssub.s32 1, %s8
  %s11 = scalar_select 0, %s10, %s8
  $region1: #{tpu_custom_call.1} parent=0
    #allocation2 [shape = 'u8[16384]{0}', space=vmem, size = 0x4000, scoped, tag = 'input window, operand 0']
    #allocation3 [shape = 's32[2]{0}', space=sflag, size = 0x8, scoped, tag = 'scoped memory for tpu_custom_call.1']
    #allocation4 [shape = 's32[2]{0}', space=sflag, size = 0x8, scoped, tag = 'scoped memory for tpu_custom_call.1']
    #allocation5 [shape = 'u8[16384]{0}', space=vmem, size = 0x4000, scoped, tag = 'input window, operand 1']
    #allocation6 [shape = 's32[2]{0}', space=sflag, size = 0x8, scoped, tag = 'scoped memory for tpu_custom_call.1']
    #allocation7 [shape = 'u8[8192]{0}', space=vmem, size = 0x2000, scoped, tag = 'input window, operand 2']
    #allocation8 [shape = 'u8[16384]{0}', space=vmem, size = 0x4000, scoped, tag = 'input window, operand 3, single buffered']
    #allocation9 [shape = 's32[1]{0}', space=sflag, size = 0x4, scoped, tag = 'scoped memory for tpu_custom_call.1']
    #allocation10 [shape = 'u8[16384]{0}', space=vmem, size = 0x4000, scoped, tag = 'input window, operand 4, single buffered']
    #allocation11 [shape = 'u8[16384]{0}', space=vmem, size = 0x4000, scoped, tag = 'input window, operand 5, single buffered']
    #allocation12 [shape = 's32[1]{0}', space=sflag, size = 0x4, scoped, tag = 'scoped memory for tpu_custom_call.1']
    #allocation13 [shape = 'u8[16384]{0}', space=vmem, size = 0x4000, scoped, tag = 'input window, operand 6, single buffered']
    #allocation14 [shape = 'u8[8192]{0}', space=vmem, size = 0x2000, scoped, tag = 'output window, operand 0']
    %12 = vsyncpa [#allocation3], 0
    %s13 = scalar_lea.sflag [#allocation3], 1
    %14 = vsyncpa %s13, 0
    %15 = vsyncpa [#allocation6], 0
    %s16 = scalar_lea.sflag [#allocation6], 1
    %17 = vsyncpa %s16, 0
    %18 = vsyncpa [#allocation9], 0
    %19 = vsyncpa [#allocation12], 0
    %20 = vsyncpa [#allocation4], 0
    %s21 = scalar_lea.sflag [#allocation4], 1
    %22 = vsyncpa %s21, 0
    loop: start=0, step=1, limit=4
    $region2: #{tpu_custom_call.1} parent=1 // loop_pre_header
      _
    $region3: #{tpu_custom_call.1} parent=1 // loop_header
      %s24 = sphi 0, %s28
      %p25 = scmp.ge.s32.totalorder %s24, 4
      %s34 = sphi 0, %s36
      %s37 = sphi 0, %s34
      %s38 = sphi 0, %s37
      %s54 = sphi 0, %s38
      %s60 = sphi 0, %s62
      %s63 = sphi 0, %s60
      %s64 = sphi 0, %s63
      %s80 = sphi 0, %s64
      %s86 = sphi 0, %s88
      %s89 = sphi 0, %s86
      %s90 = sphi 0, %s89
      %s106 = sphi 0, %s90
      %s110 = sphi 0, %s110
      %s112 = sphi 0, %s110
      %s113 = sphi 0, %s112
      %s127 = sphi 0, %s113
      %s131 = sphi 0, %s131
      %s133 = sphi 0, %s131
      %s134 = sphi 0, %s133
      %s148 = sphi 0, %s134
      %s152 = sphi 0, %s152
      %s154 = sphi 0, %s152
      %s155 = sphi 0, %s154
      %s169 = sphi 0, %s155
      %s173 = sphi 0, %s173
      %s175 = sphi 0, %s173
      %s176 = sphi 0, %s175
      %s190 = sphi 0, %s176
      %s196 = sphi 0, %s198
      %s199 = sphi 0, %s196
      %s200 = sphi 0, %s199
      %s216 = sphi 0, %s200
    $region4: #{tpu_custom_call.1} parent=1 // loop_header_branch
      %27 = sbr.rel (%p25) target = $region8
    $region5: #{tpu_custom_call.1} parent=1 // loop_body
      %s29 = ssub.s32 %s24, 1
      %s30 = ssub.s32 %s24, 2
      %s31 = sadd.s32 %s24, 1
      %s32 = ssub.s32 %s24, %s31
      %p33 = scmp.eq.s32.totalorder %s32, 0
      %s35 = sadd.s32 %s34, 1
      %s36 = scalar_select %p33, %s34, %s35
      %p39 = pneg %p33
      %p40 = scmp.eq.s32.totalorder %s24, 1
      %p41 = por %p39, %p40
      %p42 = scmp.ne.s32.totalorder %s34, %s37
      %p43 = scmp.eq.s32.totalorder %s24, 0
      %p44 = por %p42, %p43
      %p45 = scmp.ne.s32.totalorder %s34, %s37
      %p46 = scmp.eq.s32.totalorder %s29, 1
      %p47 = por %p45, %p46
      %p48 = scmp.ne.s32.totalorder %s37, %s38
      %p49 = scmp.eq.s32.totalorder %s29, 0
      %p50 = por %p48, %p49
      %p51 = scmp.ne.s32.totalorder %s37, %s38
      %p52 = scmp.eq.s32.totalorder %s30, 1
      %p53 = por %p51, %p52
      %p55 = scmp.ne.s32.totalorder %s38, %s54
      %p56 = scmp.eq.s32.totalorder %s30, 0
      %p57 = por %p55, %p56
      %s58 = ssub.s32 %s24, %s31
      %p59 = scmp.eq.s32.totalorder %s58, 0
      %s61 = sadd.s32 %s60, 1
      %s62 = scalar_select %p59, %s60, %s61
      %p65 = pneg %p59
      %p66 = scmp.eq.s32.totalorder %s24, 1
      %p67 = por %p65, %p66
      %p68 = scmp.ne.s32.totalorder %s60, %s63
      %p69 = scmp.eq.s32.totalorder %s24, 0
      %p70 = por %p68, %p69
      %p71 = scmp.ne.s32.totalorder %s60, %s63
      %p72 = scmp.eq.s32.totalorder %s29, 1
      %p73 = por %p71, %p72
      %p74 = scmp.ne.s32.totalorder %s63, %s64
      %p75 = scmp.eq.s32.totalorder %s29, 0
      %p76 = por %p74, %p75
      %p77 = scmp.ne.s32.totalorder %s63, %s64
      %p78 = scmp.eq.s32.totalorder %s30, 1
      %p79 = por %p77, %p78
      %p81 = scmp.ne.s32.totalorder %s64, %s80
      %p82 = scmp.eq.s32.totalorder %s30, 0
      %p83 = por %p81, %p82
      %s84 = ssub.s32 %s24, %s31
      %p85 = scmp.eq.s32.totalorder %s84, 0
      %s87 = sadd.s32 %s86, 1
      %s88 = scalar_select %p85, %s86, %s87
      %p91 = pneg %p85
      %p92 = scmp.eq.s32.totalorder %s24, 1
      %p93 = por %p91, %p92
      %p94 = scmp.ne.s32.totalorder %s86, %s89
      %p95 = scmp.eq.s32.totalorder %s24, 0
      %p96 = por %p94, %p95
      %p97 = scmp.ne.s32.totalorder %s86, %s89
      %p98 = scmp.eq.s32.totalorder %s29, 1
      %p99 = por %p97, %p98
      %p100 = scmp.ne.s32.totalorder %s89, %s90
      %p101 = scmp.eq.s32.totalorder %s29, 0
      %p102 = por %p100, %p101
      %p103 = scmp.ne.s32.totalorder %s89, %s90
      %p104 = scmp.eq.s32.totalorder %s30, 1
      %p105 = por %p103, %p104
      %p107 = scmp.ne.s32.totalorder %s90, %s106
      %p108 = scmp.eq.s32.totalorder %s30, 0
      %p109 = por %p107, %p108
      %s111 = sadd.s32 %s110, 1
      %p114 = scmp.eq.s32.totalorder %s24, 1
      %p115 = scmp.ne.s32.totalorder %s110, %s112
      %p116 = scmp.eq.s32.totalorder %s24, 0
      %p117 = por %p115, %p116
      %p118 = scmp.ne.s32.totalorder %s110, %s112
      %p119 = scmp.eq.s32.totalorder %s29, 1
      %p120 = por %p118, %p119
      %p121 = scmp.ne.s32.totalorder %s112, %s113
      %p122 = scmp.eq.s32.totalorder %s29, 0
      %p123 = por %p121, %p122
      %p124 = scmp.ne.s32.totalorder %s112, %s113
      %p125 = scmp.eq.s32.totalorder %s30, 1
      %p126 = por %p124, %p125
      %p128 = scmp.ne.s32.totalorder %s113, %s127
      %p129 = scmp.eq.s32.totalorder %s30, 0
      %p130 = por %p128, %p129
      %s132 = sadd.s32 %s131, 1
      %p135 = scmp.eq.s32.totalorder %s24, 1
      %p136 = scmp.ne.s32.totalorder %s131, %s133
      %p137 = scmp.eq.s32.totalorder %s24, 0
      %p138 = por %p136, %p137
      %p139 = scmp.ne.s32.totalorder %s131, %s133
      %p140 = scmp.eq.s32.totalorder %s29, 1
      %p141 = por %p139, %p140
      %p142 = scmp.ne.s32.totalorder %s133, %s134
      %p143 = scmp.eq.s32.totalorder %s29, 0
      %p144 = por %p142, %p143
      %p145 = scmp.ne.s32.totalorder %s133, %s134
      %p146 = scmp.eq.s32.totalorder %s30, 1
      %p147 = por %p145, %p146
      %p149 = scmp.ne.s32.totalorder %s134, %s148
      %p150 = scmp.eq.s32.totalorder %s30, 0
      %p151 = por %p149, %p150
      %s153 = sadd.s32 %s152, 1
      %p156 = scmp.eq.s32.totalorder %s24, 1
      %p157 = scmp.ne.s32.totalorder %s152, %s154
      %p158 = scmp.eq.s32.totalorder %s24, 0
      %p159 = por %p157, %p158
      %p160 = scmp.ne.s32.totalorder %s152, %s154
      %p161 = scmp.eq.s32.totalorder %s29, 1
      %p162 = por %p160, %p161
      %p163 = scmp.ne.s32.totalorder %s154, %s155
      %p164 = scmp.eq.s32.totalorder %s29, 0
      %p165 = por %p163, %p164
      %p166 = scmp.ne.s32.totalorder %s154, %s155
      %p167 = scmp.eq.s32.totalorder %s30, 1
      %p168 = por %p166, %p167
      %p170 = scmp.ne.s32.totalorder %s155, %s169
      %p171 = scmp.eq.s32.totalorder %s30, 0
      %p172 = por %p170, %p171
      %s174 = sadd.s32 %s173, 1
      %p177 = scmp.eq.s32.totalorder %s24, 1
      %p178 = scmp.ne.s32.totalorder %s173, %s175
      %p179 = scmp.eq.s32.totalorder %s24, 0
      %p180 = por %p178, %p179
      %p181 = scmp.ne.s32.totalorder %s173, %s175
      %p182 = scmp.eq.s32.totalorder %s29, 1
      %p183 = por %p181, %p182
      %p184 = scmp.ne.s32.totalorder %s175, %s176
      %p185 = scmp.eq.s32.totalorder %s29, 0
      %p186 = por %p184, %p185
      %p187 = scmp.ne.s32.totalorder %s175, %s176
      %p188 = scmp.eq.s32.totalorder %s30, 1
      %p189 = por %p187, %p188
      %p191 = scmp.ne.s32.totalorder %s176, %s190
      %p192 = scmp.eq.s32.totalorder %s30, 0
      %p193 = por %p191, %p192
      %s194 = ssub.s32 %s24, %s31
      %p195 = scmp.eq.s32.totalorder %s194, 0
      %s197 = sadd.s32 %s196, 1
      %s198 = scalar_select %p195, %s196, %s197
      %p201 = pneg %p195
      %p202 = scmp.eq.s32.totalorder %s24, 1
      %p203 = por %p201, %p202
      %p204 = scmp.ne.s32.totalorder %s196, %s199
      %p205 = scmp.eq.s32.totalorder %s24, 0
      %p206 = por %p204, %p205
      %p207 = scmp.ne.s32.totalorder %s196, %s199
      %p208 = scmp.eq.s32.totalorder %s29, 1
      %p209 = por %p207, %p208
      %p210 = scmp.ne.s32.totalorder %s199, %s200
      %p211 = scmp.eq.s32.totalorder %s29, 0
      %p212 = por %p210, %p211
      %p213 = scmp.ne.s32.totalorder %s199, %s200
      %p214 = scmp.eq.s32.totalorder %s30, 1
      %p215 = por %p213, %p214
      %p217 = scmp.ne.s32.totalorder %s200, %s216
      %p218 = scmp.eq.s32.totalorder %s30, 0
      %p219 = por %p217, %p218
      %p220 = scmp.le.s32.totalorder 1, %s24
      %p221 = scmp.lt.s32.totalorder %s24, 3
      %p222 = pnand %p220, %p221
      %p223 = pneg %p222
      // Predicated region
      $region9: #{tpu_custom_call.1} parent=5 // pred_check
        _
      $region10: #{tpu_custom_call.1} parent=5 // pred_check_branch
        %225 = sbr.rel (%p222) target = $region12
      $region11: #{tpu_custom_call.1} parent=5 // pred_region
        %s226 = ssub.s32 %s24, 1
        // Predicated region
        $region13: #{tpu_custom_call.1} parent=11 // pred_check
          %p227 = pneg %p123
        $region14: #{tpu_custom_call.1} parent=11 // pred_check_branch
          %229 = sbr.rel (%p227) target = $region16
        $region15: #{tpu_custom_call.1} parent=11 // pred_region
          %231 = vsyncadd [#allocation9], 0
          %s232 = sshll.u32 %s3, 4
          %s233 = int_to_ptr.hbm [resolvable:$true] %s232
          %s234 = sshll.u32 [#allocation8], 4
          %s235 = int_to_ptr.vmem [resolvable:$true] %s234
          %240 = dma.hbm_to_vmem [thread:$0]  %s233, 512, %s235, [#allocation9], 128, 128, 8
        $region16: #{tpu_custom_call.1} parent=11 // pred_fallthru
          _
        // Predicated region
        $region17: #{tpu_custom_call.1} parent=11 // pred_check
          %p241 = pneg %p144
        $region18: #{tpu_custom_call.1} parent=11 // pred_check_branch
          %243 = sbr.rel (%p241) target = $region20
        $region19: #{tpu_custom_call.1} parent=11 // pred_region
          %245 = vsyncadd [#allocation9], 0
          %s246 = sshll.u32 %s4, 4
          %s247 = int_to_ptr.hbm [resolvable:$true] %s246
          %s248 = sshll.u32 [#allocation10], 4
          %s249 = int_to_ptr.vmem [resolvable:$true] %s248
          %254 = dma.hbm_to_vmem [thread:$0]  %s247, 512, %s249, [#allocation9], 128, 128, 8
        $region20: #{tpu_custom_call.1} parent=11 // pred_fallthru
          _
        // Predicated region
        $region21: #{tpu_custom_call.1} parent=11 // pred_check
          %p255 = pneg %p165
        $region22: #{tpu_custom_call.1} parent=11 // pred_check_branch
          %257 = sbr.rel (%p255) target = $region24
        $region23: #{tpu_custom_call.1} parent=11 // pred_region
          %259 = vsyncadd [#allocation12], 0
          %s260 = sshll.u32 %s5, 4
          %s261 = int_to_ptr.hbm [resolvable:$true] %s260
          %s262 = sshll.u32 [#allocation11], 4
          %s263 = int_to_ptr.vmem [resolvable:$true] %s262
          %268 = dma.hbm_to_vmem [thread:$0]  %s261, 512, %s263, [#allocation12], 128, 128, 8
        $region24: #{tpu_custom_call.1} parent=11 // pred_fallthru
          _
        // Predicated region
        $region25: #{tpu_custom_call.1} parent=11 // pred_check
          %p269 = pneg %p186
        $region26: #{tpu_custom_call.1} parent=11 // pred_check_branch
          %271 = sbr.rel (%p269) target = $region28
        $region27: #{tpu_custom_call.1} parent=11 // pred_region
          %273 = vsyncadd [#allocation12], 0
          %s274 = sshll.u32 %s6, 4
          %s275 = int_to_ptr.hbm [resolvable:$true] %s274
          %s276 = sshll.u32 [#allocation13], 4
          %s277 = int_to_ptr.vmem [resolvable:$true] %s276
          %282 = dma.hbm_to_vmem [thread:$0]  %s275, 512, %s277, [#allocation12], 128, 128, 8
        $region28: #{tpu_custom_call.1} parent=11 // pred_fallthru
          _
      $region12: #{tpu_custom_call.1} parent=5 // pred_fallthru
        _
      %p283 = scmp.lt.s32.totalorder %s24, 2
      // Predicated region
      $region29: #{tpu_custom_call.1} parent=5 // pred_check
        %p284 = pneg %p283
      $region30: #{tpu_custom_call.1} parent=5 // pred_check_branch
        %286 = sbr.rel (%p284) target = $region32
      $region31: #{tpu_custom_call.1} parent=5 // pred_region
        // Predicated region
        $region33: #{tpu_custom_call.1} parent=31 // pred_check
          %p287 = pneg %p44
        $region34: #{tpu_custom_call.1} parent=31 // pred_check_branch
          %289 = sbr.rel (%p287) target = $region36
        $region35: #{tpu_custom_call.1} parent=31 // pred_region
          %s290 = sand.u32 %s34, 1
          %s291 = scalar_lea.sflag [#allocation3], %s290
          %s292 = sand.u32 %s34, 1
          %s293 = smul.addr %s292, 16
          %s294 = scalar_lea.vmem [#allocation2], %s293
          %296 = vsyncadd %s291, 0
          %s297 = smul.addr %s24, 2
          %s298 = smul.addr %s297, 8
          %s299 = scalar_lea.hbm %s0, %s298
          %s300 = sshll.u32 %s299, 4
          %s301 = int_to_ptr.hbm [resolvable:$true] %s300
          %s302 = sshll.u32 %s294, 4
          %s303 = int_to_ptr.vmem [resolvable:$true] %s302
          %308 = dma.hbm_to_vmem [thread:$0]  %s301, 256, %s303, %s291, 128, 128, 8
        $region36: #{tpu_custom_call.1} parent=31 // pred_fallthru
          _
        // Predicated region
        $region37: #{tpu_custom_call.1} parent=31 // pred_check
          %p309 = pneg %p70
        $region38: #{tpu_custom_call.1} parent=31 // pred_check_branch
          %311 = sbr.rel (%p309) target = $region40
        $region39: #{tpu_custom_call.1} parent=31 // pred_region
          %s312 = sand.u32 %s24, 1
          %s313 = scalar_lea.sflag [#allocation6], %s312
          %s314 = sand.u32 %s60, 1
          %s315 = smul.addr %s314, 16
          %s316 = scalar_lea.vmem [#allocation5], %s315
          %318 = vsyncadd %s313, 0
          %s319 = smul.addr %s24, 2
          %s320 = smul.addr %s319, 8
          %s321 = scalar_lea.hbm %s1, %s320
          %s322 = sshll.u32 %s321, 4
          %s323 = int_to_ptr.hbm [resolvable:$true] %s322
          %s324 = sshll.u32 %s316, 4
          %s325 = int_to_ptr.vmem [resolvable:$true] %s324
          %330 = dma.hbm_to_vmem [thread:$0]  %s323, 256, %s325, %s313, 128, 128, 8
        $region40: #{tpu_custom_call.1} parent=31 // pred_fallthru
          _
        // Predicated region
        $region41: #{tpu_custom_call.1} parent=31 // pred_check
          %p331 = pneg %p96
        $region42: #{tpu_custom_call.1} parent=31 // pred_check_branch
          %333 = sbr.rel (%p331) target = $region44
        $region43: #{tpu_custom_call.1} parent=31 // pred_region
          %s334 = sand.u32 %s24, 1
          %s335 = scalar_lea.sflag [#allocation6], %s334
          %s336 = sand.u32 %s86, 1
          %s337 = smul.addr %s336, 8
          %s338 = scalar_lea.vmem [#allocation7], %s337
          %340 = vsyncadd %s335, 0
          %s341 = smul.addr %s24, 8
          %s342 = scalar_lea.hbm %s2, %s341
          %s344 = sshll.u32 %s342, 4
          %s345 = int_to_ptr.hbm [resolvable:$true] %s344
          %s346 = sshll.u32 %s338, 4
          %s347 = int_to_ptr.vmem [resolvable:$true] %s346
          %349 = dma.hbm_to_vmem [thread:$0]  %s345, 128, %s347, %s335
        $region44: #{tpu_custom_call.1} parent=31 // pred_fallthru
          _
      $region32: #{tpu_custom_call.1} parent=5 // pred_fallthru
        _
      %p350 = scmp.le.s32.totalorder 1, %s24
      %p351 = scmp.lt.s32.totalorder %s24, 3
      %p352 = pnand %p350, %p351
      %p353 = pneg %p352
      // Predicated region
      $region45: #{tpu_custom_call.1} parent=5 // pred_check
        _
      $region46: #{tpu_custom_call.1} parent=5 // pred_check_branch
        %355 = sbr.rel (%p352) target = $region48
      $region47: #{tpu_custom_call.1} parent=5 // pred_region
        %s356 = ssub.s32 %s24, 1
        %s357 = sand.u32 %s37, 1
        %s358 = scalar_lea.sflag [#allocation3], %s357
        %s359 = sand.u32 %s37, 1
        %s360 = smul.addr %s359, 16
        %s361 = scalar_lea.vmem [#allocation2], %s360
        // Predicated region
        $region49: #{tpu_custom_call.1} parent=47 // pred_check
          %p362 = pneg %p50
        $region50: #{tpu_custom_call.1} parent=47 // pred_check_branch
          %364 = sbr.rel (%p362) target = $region52
        $region51: #{tpu_custom_call.1} parent=47 // pred_region
          %366 = dma.done %s358, 256
        $region52: #{tpu_custom_call.1} parent=47 // pred_fallthru
          _
        %s367 = sand.u32 %s29, 1
        %s368 = scalar_lea.sflag [#allocation6], %s367
        %s369 = sand.u32 %s63, 1
        %s370 = smul.addr %s369, 16
        %s371 = scalar_lea.vmem [#allocation5], %s370
        // Predicated region
        $region53: #{tpu_custom_call.1} parent=47 // pred_check
          %p372 = pneg %p76
        $region54: #{tpu_custom_call.1} parent=47 // pred_check_branch
          %374 = sbr.rel (%p372) target = $region56
        $region55: #{tpu_custom_call.1} parent=47 // pred_region
          %376 = dma.done %s368, 256
        $region56: #{tpu_custom_call.1} parent=47 // pred_fallthru
          _
        %s377 = sand.u32 %s29, 1
        %s378 = scalar_lea.sflag [#allocation6], %s377
        %s379 = sand.u32 %s89, 1
        %s380 = smul.addr %s379, 8
        %s381 = scalar_lea.vmem [#allocation7], %s380
        // Predicated region
        $region57: #{tpu_custom_call.1} parent=47 // pred_check
          %p382 = pneg %p102
        $region58: #{tpu_custom_call.1} parent=47 // pred_check_branch
          %384 = sbr.rel (%p382) target = $region60
        $region59: #{tpu_custom_call.1} parent=47 // pred_region
          %386 = dma.done %s378, 128
        $region60: #{tpu_custom_call.1} parent=47 // pred_fallthru
          _
        // Predicated region
        $region61: #{tpu_custom_call.1} parent=47 // pred_check
          %p387 = pneg %p123
        $region62: #{tpu_custom_call.1} parent=47 // pred_check_branch
          %389 = sbr.rel (%p387) target = $region64
        $region63: #{tpu_custom_call.1} parent=47 // pred_region
          %391 = dma.done [#allocation9], 512
        $region64: #{tpu_custom_call.1} parent=47 // pred_fallthru
          _
        // Predicated region
        $region65: #{tpu_custom_call.1} parent=47 // pred_check
          %p392 = pneg %p144
        $region66: #{tpu_custom_call.1} parent=47 // pred_check_branch
          %394 = sbr.rel (%p392) target = $region68
        $region67: #{tpu_custom_call.1} parent=47 // pred_region
          %396 = dma.done [#allocation9], 512
        $region68: #{tpu_custom_call.1} parent=47 // pred_fallthru
          _
        // Predicated region
        $region69: #{tpu_custom_call.1} parent=47 // pred_check
          %p397 = pneg %p165
        $region70: #{tpu_custom_call.1} parent=47 // pred_check_branch
          %399 = sbr.rel (%p397) target = $region72
        $region71: #{tpu_custom_call.1} parent=47 // pred_region
          %401 = dma.done [#allocation12], 512
        $region72: #{tpu_custom_call.1} parent=47 // pred_fallthru
          _
        // Predicated region
        $region73: #{tpu_custom_call.1} parent=47 // pred_check
          %p402 = pneg %p186
        $region74: #{tpu_custom_call.1} parent=47 // pred_check_branch
          %404 = sbr.rel (%p402) target = $region76
        $region75: #{tpu_custom_call.1} parent=47 // pred_region
          %406 = dma.done [#allocation12], 512
        $region76: #{tpu_custom_call.1} parent=47 // pred_fallthru
          _
        %s407 = sand.u32 %s37, 1
        %s408 = scalar_lea.sflag [#allocation3], %s407
        %s409 = sand.u32 %s37, 1
        %s410 = smul.addr %s409, 16
        %s411 = scalar_lea.vmem [#allocation2], %s410
        %p412 = pneg %p50
        %p413 = pneg %p47
        %s414 = sand.u32 %s29, 1
        %s415 = scalar_lea.sflag [#allocation6], %s414
        %s416 = sand.u32 %s63, 1
        %s417 = smul.addr %s416, 16
        %s418 = scalar_lea.vmem [#allocation5], %s417
        %p419 = pneg %p76
        %p420 = pneg %p73
        %s421 = sand.u32 %s29, 1
        %s422 = scalar_lea.sflag [#allocation6], %s421
        %s423 = sand.u32 %s89, 1
        %s424 = smul.addr %s423, 8
        %s425 = scalar_lea.vmem [#allocation7], %s424
        %p426 = pneg %p102
        %p427 = pneg %p99
        %p428 = pneg %p123
        %p429 = pneg %p120
        %p430 = pneg %p144
        %p431 = pneg %p141
        %p432 = pneg %p165
        %p433 = pneg %p162
        %p434 = pneg %p186
        %p435 = pneg %p183
        %p436 = pneg %p212
        %p437 = pneg %p209
        %s438 = sand.u32 %s199, 1
        %s439 = scalar_lea.sflag [#allocation4], %s438
        %s440 = sand.u32 %s199, 1
        %s441 = smul.addr %s440, 8
        %s442 = scalar_lea.vmem [#allocation14], %s441
        %v443 = vld [vmem:[%s361] sm:$0xff]
        %v444 = vld [vmem:[%s361 + $0x8] sm:$0xff]
        %v445 = vld [vmem:[%s371] sm:$0xff]
        %v446 = vld [vmem:[%s371 + $0x8] sm:$0xff]
        %v447 = vld [vmem:[%s381] sm:$0xff]
        %v448 = vld [vmem:[#allocation8] sm:$0xff]
        %v449 = vld [vmem:[#allocation8 + $0x8] sm:$0xff]
        %v450 = vld [vmem:[#allocation8 + $0x10] sm:$0xff]
        %v451 = vld [vmem:[#allocation8 + $0x18] sm:$0xff]
        %vm452 = vcmask 261120
        %v454 = vsel %vm452, %v443, 0
        %v457 = vsel %vm452, %v444, 0
        %459 = vmatpush.msra.mxu0 0.0
        %460 = vmatpush.msra.mxu0 0.0
        %461 = vmatpush.msra.mxu0 0.0
        %462 = vmatpush.msra.mxu0 0.0
        %463 = vmatpush.msra.mxu0 0.0
        %464 = vmatpush.msra.mxu0 0.0
        %465 = vmatpush.msra.mxu0 0.0
        %466 = vmatpush.msra.mxu0 0.0
        %467 = vmatpush.msra.mxu0 0.0
        %468 = vmatpush.msra.mxu0 0.0
        %469 = vmatpush.msra.mxu0 0.0
        %470 = vmatpush.msra.mxu0 0.0
        %v471 = vand.u32 %v451, 4294901760
        %472 = vmatpush.msra.mxu0 %v471
        %v473 = vand.u32 %v450, 4294901760
        %474 = vmatpush.msra.mxu0 %v473
        %v475 = vand.u32 %v449, 4294901760
        %476 = vmatpush.msra.mxu0 %v475
        %v477 = vand.u32 %v448, 4294901760
        %478 = vmatpush.msra.mxu0 %v477
        %v479 = vand.u32 %v454, 4294901760
        %v480 = vsub.f32 %v454, %v479
        %v481 = vand.u32 %v480, 4294901760
        %v482 = vsub.f32 %v480, %v481
        %v483 = vand.u32 %v482, 4294901760
        %484 = vmatmul.f32.gmra.mxu0 %v483
        %v485 = vpop.f32.mrf.mxu0
        %v486 = vadd.f32 0.0, %v485
        %v487 = vand.u32 %v457, 4294901760
        %v488 = vsub.f32 %v457, %v487
        %v489 = vand.u32 %v488, 4294901760
        %v490 = vsub.f32 %v488, %v489
        %v491 = vand.u32 %v490, 4294901760
        %492 = vmatmul.f32.gmra.mxu0 %v491
        %v493 = vpop.f32.mrf.mxu0
        %v494 = vadd.f32 0.0, %v493
        %495 = vdwg.mxu0
        %496 = vmatpush.msra.mxu0 0.0
        %497 = vmatpush.msra.mxu0 0.0
        %498 = vmatpush.msra.mxu0 0.0
        %499 = vmatpush.msra.mxu0 0.0
        %500 = vmatpush.msra.mxu0 0.0
        %501 = vmatpush.msra.mxu0 0.0
        %502 = vmatpush.msra.mxu0 0.0
        %503 = vmatpush.msra.mxu0 0.0
        %504 = vmatpush.msra.mxu0 0.0
        %505 = vmatpush.msra.mxu0 0.0
        %506 = vmatpush.msra.mxu0 0.0
        %507 = vmatpush.msra.mxu0 0.0
        %v508 = vand.u32 %v451, 4294901760
        %v509 = vsub.f32 %v451, %v508
        %v510 = vand.u32 %v509, 4294901760
        %v511 = vsub.f32 %v509, %v510
        %v512 = vand.u32 %v511, 4294901760
        %513 = vmatpush.msra.mxu0 %v512
        %v514 = vand.u32 %v450, 4294901760
        %v515 = vsub.f32 %v450, %v514
        %v516 = vand.u32 %v515, 4294901760
        %v517 = vsub.f32 %v515, %v516
        %v518 = vand.u32 %v517, 4294901760
        %519 = vmatpush.msra.mxu0 %v518
        %v520 = vand.u32 %v449, 4294901760
        %v521 = vsub.f32 %v449, %v520
        %v522 = vand.u32 %v521, 4294901760
        %v523 = vsub.f32 %v521, %v522
        %v524 = vand.u32 %v523, 4294901760
        %525 = vmatpush.msra.mxu0 %v524
        %v526 = vand.u32 %v448, 4294901760
        %v527 = vsub.f32 %v448, %v526
        %v528 = vand.u32 %v527, 4294901760
        %v529 = vsub.f32 %v527, %v528
        %v530 = vand.u32 %v529, 4294901760
        %531 = vmatpush.msra.mxu0 %v530
        %v532 = vand.u32 %v454, 4294901760
        %533 = vmatmul.f32.gmra.mxu0 %v532
        %v534 = vpop.f32.mrf.mxu0
        %v535 = vadd.f32 %v486, %v534
        %v536 = vand.u32 %v457, 4294901760
        %537 = vmatmul.f32.gmra.mxu0 %v536
        %v538 = vpop.f32.mrf.mxu0
        %v539 = vadd.f32 %v494, %v538
        %540 = vdwg.mxu0
        %541 = vmatpush.msra.mxu0 0.0
        %542 = vmatpush.msra.mxu0 0.0
        %543 = vmatpush.msra.mxu0 0.0
        %544 = vmatpush.msra.mxu0 0.0
        %545 = vmatpush.msra.mxu0 0.0
        %546 = vmatpush.msra.mxu0 0.0
        %547 = vmatpush.msra.mxu0 0.0
        %548 = vmatpush.msra.mxu0 0.0
        %549 = vmatpush.msra.mxu0 0.0
        %550 = vmatpush.msra.mxu0 0.0
        %551 = vmatpush.msra.mxu0 0.0
        %552 = vmatpush.msra.mxu0 0.0
        %v553 = vand.u32 %v451, 4294901760
        %v554 = vsub.f32 %v451, %v553
        %555 = vmatpush.msra.mxu0 %v554
        %v556 = vand.u32 %v450, 4294901760
        %v557 = vsub.f32 %v450, %v556
        %558 = vmatpush.msra.mxu0 %v557
        %v559 = vand.u32 %v449, 4294901760
        %v560 = vsub.f32 %v449, %v559
        %561 = vmatpush.msra.mxu0 %v560
        %v562 = vand.u32 %v448, 4294901760
        %v563 = vsub.f32 %v448, %v562
        %564 = vmatpush.msra.mxu0 %v563
        %v565 = vand.u32 %v454, 4294901760
        %v566 = vsub.f32 %v454, %v565
        %567 = vmatmul.f32.gmra.mxu0 %v566
        %v568 = vpop.f32.mrf.mxu0
        %v569 = vadd.f32 %v535, %v568
        %v570 = vand.u32 %v457, 4294901760
        %v571 = vsub.f32 %v457, %v570
        %572 = vmatmul.f32.gmra.mxu0 %v571
        %v573 = vpop.f32.mrf.mxu0
        %v574 = vadd.f32 %v539, %v573
        %575 = vdwg.mxu0
        %576 = vmatpush.msra.mxu0 0.0
        %577 = vmatpush.msra.mxu0 0.0
        %578 = vmatpush.msra.mxu0 0.0
        %579 = vmatpush.msra.mxu0 0.0
        %580 = vmatpush.msra.mxu0 0.0
        %581 = vmatpush.msra.mxu0 0.0
        %582 = vmatpush.msra.mxu0 0.0
        %583 = vmatpush.msra.mxu0 0.0
        %584 = vmatpush.msra.mxu0 0.0
        %585 = vmatpush.msra.mxu0 0.0
        %586 = vmatpush.msra.mxu0 0.0
        %587 = vmatpush.msra.mxu0 0.0
        %v588 = vand.u32 %v451, 4294901760
        %589 = vmatpush.msra.mxu0 %v588
        %v590 = vand.u32 %v450, 4294901760
        %591 = vmatpush.msra.mxu0 %v590
        %v592 = vand.u32 %v449, 4294901760
        %593 = vmatpush.msra.mxu0 %v592
        %v594 = vand.u32 %v448, 4294901760
        %595 = vmatpush.msra.mxu0 %v594
        %v596 = vand.u32 %v454, 4294901760
        %v597 = vsub.f32 %v454, %v596
        %v598 = vand.u32 %v597, 4294901760
        %599 = vmatmul.f32.gmra.mxu0 %v598
        %v600 = vpop.f32.mrf.mxu0
        %v601 = vadd.f32 %v569, %v600
        %v602 = vand.u32 %v457, 4294901760
        %v603 = vsub.f32 %v457, %v602
        %v604 = vand.u32 %v603, 4294901760
        %605 = vmatmul.f32.gmra.mxu0 %v604
        %v606 = vpop.f32.mrf.mxu0
        %v607 = vadd.f32 %v574, %v606
        %608 = vdwg.mxu0
        %609 = vmatpush.msra.mxu0 0.0
        %610 = vmatpush.msra.mxu0 0.0
        %611 = vmatpush.msra.mxu0 0.0
        %612 = vmatpush.msra.mxu0 0.0
        %613 = vmatpush.msra.mxu0 0.0
        %614 = vmatpush.msra.mxu0 0.0
        %615 = vmatpush.msra.mxu0 0.0
        %616 = vmatpush.msra.mxu0 0.0
        %617 = vmatpush.msra.mxu0 0.0
        %618 = vmatpush.msra.mxu0 0.0
        %619 = vmatpush.msra.mxu0 0.0
        %620 = vmatpush.msra.mxu0 0.0
        %v621 = vand.u32 %v451, 4294901760
        %v622 = vsub.f32 %v451, %v621
        %v623 = vand.u32 %v622, 4294901760
        %624 = vmatpush.msra.mxu0 %v623
        %v625 = vand.u32 %v450, 4294901760
        %v626 = vsub.f32 %v450, %v625
        %v627 = vand.u32 %v626, 4294901760
        %628 = vmatpush.msra.mxu0 %v627
        %v629 = vand.u32 %v449, 4294901760
        %v630 = vsub.f32 %v449, %v629
        %v631 = vand.u32 %v630, 4294901760
        %632 = vmatpush.msra.mxu0 %v631
        %v633 = vand.u32 %v448, 4294901760
        %v634 = vsub.f32 %v448, %v633
        %v635 = vand.u32 %v634, 4294901760
        %636 = vmatpush.msra.mxu0 %v635
        %v637 = vand.u32 %v454, 4294901760
        %638 = vmatmul.f32.gmra.mxu0 %v637
        %v639 = vpop.f32.mrf.mxu0
        %v640 = vadd.f32 %v601, %v639
        %v641 = vand.u32 %v457, 4294901760
        %642 = vmatmul.f32.gmra.mxu0 %v641
        %v643 = vpop.f32.mrf.mxu0
        %v644 = vadd.f32 %v607, %v643
        %645 = vdwg.mxu0
        %646 = vmatpush.msra.mxu0 0.0
        %647 = vmatpush.msra.mxu0 0.0
        %648 = vmatpush.msra.mxu0 0.0
        %649 = vmatpush.msra.mxu0 0.0
        %650 = vmatpush.msra.mxu0 0.0
        %651 = vmatpush.msra.mxu0 0.0
        %652 = vmatpush.msra.mxu0 0.0
        %653 = vmatpush.msra.mxu0 0.0
        %654 = vmatpush.msra.mxu0 0.0
        %655 = vmatpush.msra.mxu0 0.0
        %656 = vmatpush.msra.mxu0 0.0
        %657 = vmatpush.msra.mxu0 0.0
        %v658 = vand.u32 %v451, 4294901760
        %659 = vmatpush.msra.mxu0 %v658
        %v660 = vand.u32 %v450, 4294901760
        %661 = vmatpush.msra.mxu0 %v660
        %v662 = vand.u32 %v449, 4294901760
        %663 = vmatpush.msra.mxu0 %v662
        %v664 = vand.u32 %v448, 4294901760
        %665 = vmatpush.msra.mxu0 %v664
        %v666 = vand.u32 %v454, 4294901760
        %667 = vmatmul.f32.gmra.mxu0 %v666
        %v668 = vpop.f32.mrf.mxu0
        %v669 = vadd.f32 %v640, %v668
        %v670 = vand.u32 %v457, 4294901760
        %671 = vmatmul.f32.gmra.mxu0 %v670
        %v672 = vpop.f32.mrf.mxu0
        %v673 = vadd.f32 %v644, %v672
        %674 = vdwg.mxu0
        %v675 = vld [vmem:[#allocation10] sm:$0xff]
        %v676 = vld [vmem:[#allocation10 + $0x8] sm:$0xff]
        %v677 = vld [vmem:[#allocation10 + $0x10] sm:$0xff]
        %v678 = vld [vmem:[#allocation10 + $0x18] sm:$0xff]
        %v680 = vsel %vm452, %v445, 0
        %v683 = vsel %vm452, %v446, 0
        %685 = vmatpush.msra.mxu0 0.0
        %686 = vmatpush.msra.mxu0 0.0
        %687 = vmatpush.msra.mxu0 0.0
        %688 = vmatpush.msra.mxu0 0.0
        %689 = vmatpush.msra.mxu0 0.0
        %690 = vmatpush.msra.mxu0 0.0
        %691 = vmatpush.msra.mxu0 0.0
        %692 = vmatpush.msra.mxu0 0.0
        %693 = vmatpush.msra.mxu0 0.0
        %694 = vmatpush.msra.mxu0 0.0
        %695 = vmatpush.msra.mxu0 0.0
        %696 = vmatpush.msra.mxu0 0.0
        %v697 = vand.u32 %v678, 4294901760
        %698 = vmatpush.msra.mxu0 %v697
        %v699 = vand.u32 %v677, 4294901760
        %700 = vmatpush.msra.mxu0 %v699
        %v701 = vand.u32 %v676, 4294901760
        %702 = vmatpush.msra.mxu0 %v701
        %v703 = vand.u32 %v675, 4294901760
        %704 = vmatpush.msra.mxu0 %v703
        %v705 = vand.u32 %v680, 4294901760
        %v706 = vsub.f32 %v680, %v705
        %v707 = vand.u32 %v706, 4294901760
        %v708 = vsub.f32 %v706, %v707
        %v709 = vand.u32 %v708, 4294901760
        %710 = vmatmul.f32.gmra.mxu0 %v709
        %v711 = vpop.f32.mrf.mxu0
        %v712 = vadd.f32 0.0, %v711
        %v713 = vand.u32 %v683, 4294901760
        %v714 = vsub.f32 %v683, %v713
        %v715 = vand.u32 %v714, 4294901760
        %v716 = vsub.f32 %v714, %v715
        %v717 = vand.u32 %v716, 4294901760
        %718 = vmatmul.f32.gmra.mxu0 %v717
        %v719 = vpop.f32.mrf.mxu0
        %v720 = vadd.f32 0.0, %v719
        %721 = vdwg.mxu0
        %722 = vmatpush.msra.mxu0 0.0
        %723 = vmatpush.msra.mxu0 0.0
        %724 = vmatpush.msra.mxu0 0.0
        %725 = vmatpush.msra.mxu0 0.0
        %726 = vmatpush.msra.mxu0 0.0
        %727 = vmatpush.msra.mxu0 0.0
        %728 = vmatpush.msra.mxu0 0.0
        %729 = vmatpush.msra.mxu0 0.0
        %730 = vmatpush.msra.mxu0 0.0
        %731 = vmatpush.msra.mxu0 0.0
        %732 = vmatpush.msra.mxu0 0.0
        %733 = vmatpush.msra.mxu0 0.0
        %v734 = vand.u32 %v678, 4294901760
        %v735 = vsub.f32 %v678, %v734
        %v736 = vand.u32 %v735, 4294901760
        %v737 = vsub.f32 %v735, %v736
        %v738 = vand.u32 %v737, 4294901760
        %739 = vmatpush.msra.mxu0 %v738
        %v740 = vand.u32 %v677, 4294901760
        %v741 = vsub.f32 %v677, %v740
        %v742 = vand.u32 %v741, 4294901760
        %v743 = vsub.f32 %v741, %v742
        %v744 = vand.u32 %v743, 4294901760
        %745 = vmatpush.msra.mxu0 %v744
        %v746 = vand.u32 %v676, 4294901760
        %v747 = vsub.f32 %v676, %v746
        %v748 = vand.u32 %v747, 4294901760
        %v749 = vsub.f32 %v747, %v748
        %v750 = vand.u32 %v749, 4294901760
        %751 = vmatpush.msra.mxu0 %v750
        %v752 = vand.u32 %v675, 4294901760
        %v753 = vsub.f32 %v675, %v752
        %v754 = vand.u32 %v753, 4294901760
        %v755 = vsub.f32 %v753, %v754
        %v756 = vand.u32 %v755, 4294901760
        %757 = vmatpush.msra.mxu0 %v756
        %v758 = vand.u32 %v680, 4294901760
        %759 = vmatmul.f32.gmra.mxu0 %v758
        %v760 = vpop.f32.mrf.mxu0
        %v761 = vadd.f32 %v712, %v760
        %v762 = vand.u32 %v683, 4294901760
        %763 = vmatmul.f32.gmra.mxu0 %v762
        %v764 = vpop.f32.mrf.mxu0
        %v765 = vadd.f32 %v720, %v764
        %766 = vdwg.mxu0
        %767 = vmatpush.msra.mxu0 0.0
        %768 = vmatpush.msra.mxu0 0.0
        %769 = vmatpush.msra.mxu0 0.0
        %770 = vmatpush.msra.mxu0 0.0
        %771 = vmatpush.msra.mxu0 0.0
        %772 = vmatpush.msra.mxu0 0.0
        %773 = vmatpush.msra.mxu0 0.0
        %774 = vmatpush.msra.mxu0 0.0
        %775 = vmatpush.msra.mxu0 0.0
        %776 = vmatpush.msra.mxu0 0.0
        %777 = vmatpush.msra.mxu0 0.0
        %778 = vmatpush.msra.mxu0 0.0
        %v779 = vand.u32 %v678, 4294901760
        %v780 = vsub.f32 %v678, %v779
        %781 = vmatpush.msra.mxu0 %v780
        %v782 = vand.u32 %v677, 4294901760
        %v783 = vsub.f32 %v677, %v782
        %784 = vmatpush.msra.mxu0 %v783
        %v785 = vand.u32 %v676, 4294901760
        %v786 = vsub.f32 %v676, %v785
        %787 = vmatpush.msra.mxu0 %v786
        %v788 = vand.u32 %v675, 4294901760
        %v789 = vsub.f32 %v675, %v788
        %790 = vmatpush.msra.mxu0 %v789
        %v791 = vand.u32 %v680, 4294901760
        %v792 = vsub.f32 %v680, %v791
        %793 = vmatmul.f32.gmra.mxu0 %v792
        %v794 = vpop.f32.mrf.mxu0
        %v795 = vadd.f32 %v761, %v794
        %v796 = vand.u32 %v683, 4294901760
        %v797 = vsub.f32 %v683, %v796
        %798 = vmatmul.f32.gmra.mxu0 %v797
        %v799 = vpop.f32.mrf.mxu0
        %v800 = vadd.f32 %v765, %v799
        %801 = vdwg.mxu0
        %802 = vmatpush.msra.mxu0 0.0
        %803 = vmatpush.msra.mxu0 0.0
        %804 = vmatpush.msra.mxu0 0.0
        %805 = vmatpush.msra.mxu0 0.0
        %806 = vmatpush.msra.mxu0 0.0
        %807 = vmatpush.msra.mxu0 0.0
        %808 = vmatpush.msra.mxu0 0.0
        %809 = vmatpush.msra.mxu0 0.0
        %810 = vmatpush.msra.mxu0 0.0
        %811 = vmatpush.msra.mxu0 0.0
        %812 = vmatpush.msra.mxu0 0.0
        %813 = vmatpush.msra.mxu0 0.0
        %v814 = vand.u32 %v678, 4294901760
        %815 = vmatpush.msra.mxu0 %v814
        %v816 = vand.u32 %v677, 4294901760
        %817 = vmatpush.msra.mxu0 %v816
        %v818 = vand.u32 %v676, 4294901760
        %819 = vmatpush.msra.mxu0 %v818
        %v820 = vand.u32 %v675, 4294901760
        %821 = vmatpush.msra.mxu0 %v820
        %v822 = vand.u32 %v680, 4294901760
        %v823 = vsub.f32 %v680, %v822
        %v824 = vand.u32 %v823, 4294901760
        %825 = vmatmul.f32.gmra.mxu0 %v824
        %v826 = vpop.f32.mrf.mxu0
        %v827 = vadd.f32 %v795, %v826
        %v828 = vand.u32 %v683, 4294901760
        %v829 = vsub.f32 %v683, %v828
        %v830 = vand.u32 %v829, 4294901760
        %831 = vmatmul.f32.gmra.mxu0 %v830
        %v832 = vpop.f32.mrf.mxu0
        %v833 = vadd.f32 %v800, %v832
        %834 = vdwg.mxu0
        %835 = vmatpush.msra.mxu0 0.0
        %836 = vmatpush.msra.mxu0 0.0
        %837 = vmatpush.msra.mxu0 0.0
        %838 = vmatpush.msra.mxu0 0.0
        %839 = vmatpush.msra.mxu0 0.0
        %840 = vmatpush.msra.mxu0 0.0
        %841 = vmatpush.msra.mxu0 0.0
        %842 = vmatpush.msra.mxu0 0.0
        %843 = vmatpush.msra.mxu0 0.0
        %844 = vmatpush.msra.mxu0 0.0
        %845 = vmatpush.msra.mxu0 0.0
        %846 = vmatpush.msra.mxu0 0.0
        %v847 = vand.u32 %v678, 4294901760
        %v848 = vsub.f32 %v678, %v847
        %v849 = vand.u32 %v848, 4294901760
        %850 = vmatpush.msra.mxu0 %v849
        %v851 = vand.u32 %v677, 4294901760
        %v852 = vsub.f32 %v677, %v851
        %v853 = vand.u32 %v852, 4294901760
        %854 = vmatpush.msra.mxu0 %v853
        %v855 = vand.u32 %v676, 4294901760
        %v856 = vsub.f32 %v676, %v855
        %v857 = vand.u32 %v856, 4294901760
        %858 = vmatpush.msra.mxu0 %v857
        %v859 = vand.u32 %v675, 4294901760
        %v860 = vsub.f32 %v675, %v859
        %v861 = vand.u32 %v860, 4294901760
        %862 = vmatpush.msra.mxu0 %v861
        %v863 = vand.u32 %v680, 4294901760
        %864 = vmatmul.f32.gmra.mxu0 %v863
        %v865 = vpop.f32.mrf.mxu0
        %v866 = vadd.f32 %v827, %v865
        %v867 = vand.u32 %v683, 4294901760
        %868 = vmatmul.f32.gmra.mxu0 %v867
        %v869 = vpop.f32.mrf.mxu0
        %v870 = vadd.f32 %v833, %v869
        %871 = vdwg.mxu0
        %872 = vmatpush.msra.mxu0 0.0
        %873 = vmatpush.msra.mxu0 0.0
        %874 = vmatpush.msra.mxu0 0.0
        %875 = vmatpush.msra.mxu0 0.0
        %876 = vmatpush.msra.mxu0 0.0
        %877 = vmatpush.msra.mxu0 0.0
        %878 = vmatpush.msra.mxu0 0.0
        %879 = vmatpush.msra.mxu0 0.0
        %880 = vmatpush.msra.mxu0 0.0
        %881 = vmatpush.msra.mxu0 0.0
        %882 = vmatpush.msra.mxu0 0.0
        %883 = vmatpush.msra.mxu0 0.0
        %v884 = vand.u32 %v678, 4294901760
        %885 = vmatpush.msra.mxu0 %v884
        %v886 = vand.u32 %v677, 4294901760
        %887 = vmatpush.msra.mxu0 %v886
        %v888 = vand.u32 %v676, 4294901760
        %889 = vmatpush.msra.mxu0 %v888
        %v890 = vand.u32 %v675, 4294901760
        %891 = vmatpush.msra.mxu0 %v890
        %v892 = vand.u32 %v680, 4294901760
        %893 = vmatmul.f32.gmra.mxu0 %v892
        %v894 = vpop.f32.mrf.mxu0
        %v895 = vadd.f32 %v866, %v894
        %v896 = vand.u32 %v683, 4294901760
        %897 = vmatmul.f32.gmra.mxu0 %v896
        %v898 = vpop.f32.mrf.mxu0
        %v899 = vadd.f32 %v870, %v898
        %900 = vdwg.mxu0
        %v901 = vld [vmem:[#allocation11] sm:$0xff]
        %v902 = vld [vmem:[#allocation11 + $0x8] sm:$0xff]
        %v903 = vld [vmem:[#allocation11 + $0x10] sm:$0xff]
        %v904 = vld [vmem:[#allocation11 + $0x18] sm:$0xff]
        %v906 = vsel %vm452, %v447, 0
        %908 = vmatpush.msra.mxu0 0.0
        %909 = vmatpush.msra.mxu0 0.0
        %910 = vmatpush.msra.mxu0 0.0
        %911 = vmatpush.msra.mxu0 0.0
        %912 = vmatpush.msra.mxu0 0.0
        %913 = vmatpush.msra.mxu0 0.0
        %914 = vmatpush.msra.mxu0 0.0
        %915 = vmatpush.msra.mxu0 0.0
        %916 = vmatpush.msra.mxu0 0.0
        %917 = vmatpush.msra.mxu0 0.0
        %918 = vmatpush.msra.mxu0 0.0
        %919 = vmatpush.msra.mxu0 0.0
        %v920 = vand.u32 %v904, 4294901760
        %921 = vmatpush.msra.mxu0 %v920
        %v922 = vand.u32 %v903, 4294901760
        %923 = vmatpush.msra.mxu0 %v922
        %v924 = vand.u32 %v902, 4294901760
        %925 = vmatpush.msra.mxu0 %v924
        %v926 = vand.u32 %v901, 4294901760
        %927 = vmatpush.msra.mxu0 %v926
        %v928 = vand.u32 %v906, 4294901760
        %v929 = vsub.f32 %v906, %v928
        %v930 = vand.u32 %v929, 4294901760
        %v931 = vsub.f32 %v929, %v930
        %v932 = vand.u32 %v931, 4294901760
        %933 = vmatmul.f32.gmra.mxu0 %v932
        %v934 = vpop.f32.mrf.mxu0
        %v935 = vadd.f32 0.0, %v934
        %936 = vdwg.mxu0
        %937 = vmatpush.msra.mxu0 0.0
        %938 = vmatpush.msra.mxu0 0.0
        %939 = vmatpush.msra.mxu0 0.0
        %940 = vmatpush.msra.mxu0 0.0
        %941 = vmatpush.msra.mxu0 0.0
        %942 = vmatpush.msra.mxu0 0.0
        %943 = vmatpush.msra.mxu0 0.0
        %944 = vmatpush.msra.mxu0 0.0
        %945 = vmatpush.msra.mxu0 0.0
        %946 = vmatpush.msra.mxu0 0.0
        %947 = vmatpush.msra.mxu0 0.0
        %948 = vmatpush.msra.mxu0 0.0
        %v949 = vand.u32 %v904, 4294901760
        %v950 = vsub.f32 %v904, %v949
        %v951 = vand.u32 %v950, 4294901760
        %v952 = vsub.f32 %v950, %v951
        %v953 = vand.u32 %v952, 4294901760
        %954 = vmatpush.msra.mxu0 %v953
        %v955 = vand.u32 %v903, 4294901760
        %v956 = vsub.f32 %v903, %v955
        %v957 = vand.u32 %v956, 4294901760
        %v958 = vsub.f32 %v956, %v957
        %v959 = vand.u32 %v958, 4294901760
        %960 = vmatpush.msra.mxu0 %v959
        %v961 = vand.u32 %v902, 4294901760
        %v962 = vsub.f32 %v902, %v961
        %v963 = vand.u32 %v962, 4294901760
        %v964 = vsub.f32 %v962, %v963
        %v965 = vand.u32 %v964, 4294901760
        %966 = vmatpush.msra.mxu0 %v965
        %v967 = vand.u32 %v901, 4294901760
        %v968 = vsub.f32 %v901, %v967
        %v969 = vand.u32 %v968, 4294901760
        %v970 = vsub.f32 %v968, %v969
        %v971 = vand.u32 %v970, 4294901760
        %972 = vmatpush.msra.mxu0 %v971
        %v973 = vand.u32 %v906, 4294901760
        %974 = vmatmul.f32.gmra.mxu0 %v973
        %v975 = vpop.f32.mrf.mxu0
        %v976 = vadd.f32 %v935, %v975
        %977 = vdwg.mxu0
        %978 = vmatpush.msra.mxu0 0.0
        %979 = vmatpush.msra.mxu0 0.0
        %980 = vmatpush.msra.mxu0 0.0
        %981 = vmatpush.msra.mxu0 0.0
        %982 = vmatpush.msra.mxu0 0.0
        %983 = vmatpush.msra.mxu0 0.0
        %984 = vmatpush.msra.mxu0 0.0
        %985 = vmatpush.msra.mxu0 0.0
        %986 = vmatpush.msra.mxu0 0.0
        %987 = vmatpush.msra.mxu0 0.0
        %988 = vmatpush.msra.mxu0 0.0
        %989 = vmatpush.msra.mxu0 0.0
        %v990 = vand.u32 %v904, 4294901760
        %v991 = vsub.f32 %v904, %v990
        %992 = vmatpush.msra.mxu0 %v991
        %v993 = vand.u32 %v903, 4294901760
        %v994 = vsub.f32 %v903, %v993
        %995 = vmatpush.msra.mxu0 %v994
        %v996 = vand.u32 %v902, 4294901760
        %v997 = vsub.f32 %v902, %v996
        %998 = vmatpush.msra.mxu0 %v997
        %v999 = vand.u32 %v901, 4294901760
        %v1000 = vsub.f32 %v901, %v999
        %1001 = vmatpush.msra.mxu0 %v1000
        %v1002 = vand.u32 %v906, 4294901760
        %v1003 = vsub.f32 %v906, %v1002
        %1004 = vmatmul.f32.gmra.mxu0 %v1003
        %v1005 = vpop.f32.mrf.mxu0
        %v1006 = vadd.f32 %v976, %v1005
        %1007 = vdwg.mxu0
        %1008 = vmatpush.msra.mxu0 0.0
        %1009 = vmatpush.msra.mxu0 0.0
        %1010 = vmatpush.msra.mxu0 0.0
        %1011 = vmatpush.msra.mxu0 0.0
        %1012 = vmatpush.msra.mxu0 0.0
        %1013 = vmatpush.msra.mxu0 0.0
        %1014 = vmatpush.msra.mxu0 0.0
        %1015 = vmatpush.msra.mxu0 0.0
        %1016 = vmatpush.msra.mxu0 0.0
        %1017 = vmatpush.msra.mxu0 0.0
        %1018 = vmatpush.msra.mxu0 0.0
        %1019 = vmatpush.msra.mxu0 0.0
        %v1020 = vand.u32 %v904, 4294901760
        %1021 = vmatpush.msra.mxu0 %v1020
        %v1022 = vand.u32 %v903, 4294901760
        %1023 = vmatpush.msra.mxu0 %v1022
        %v1024 = vand.u32 %v902, 4294901760
        %1025 = vmatpush.msra.mxu0 %v1024
        %v1026 = vand.u32 %v901, 4294901760
        %1027 = vmatpush.msra.mxu0 %v1026
        %v1028 = vand.u32 %v906, 4294901760
        %v1029 = vsub.f32 %v906, %v1028
        %v1030 = vand.u32 %v1029, 4294901760
        %1031 = vmatmul.f32.gmra.mxu0 %v1030
        %v1032 = vpop.f32.mrf.mxu0
        %v1033 = vadd.f32 %v1006, %v1032
        %1034 = vdwg.mxu0
        %1035 = vmatpush.msra.mxu0 0.0
        %1036 = vmatpush.msra.mxu0 0.0
        %1037 = vmatpush.msra.mxu0 0.0
        %1038 = vmatpush.msra.mxu0 0.0
        %1039 = vmatpush.msra.mxu0 0.0
        %1040 = vmatpush.msra.mxu0 0.0
        %1041 = vmatpush.msra.mxu0 0.0
        %1042 = vmatpush.msra.mxu0 0.0
        %1043 = vmatpush.msra.mxu0 0.0
        %1044 = vmatpush.msra.mxu0 0.0
        %1045 = vmatpush.msra.mxu0 0.0
        %1046 = vmatpush.msra.mxu0 0.0
        %v1047 = vand.u32 %v904, 4294901760
        %v1048 = vsub.f32 %v904, %v1047
        %v1049 = vand.u32 %v1048, 4294901760
        %1050 = vmatpush.msra.mxu0 %v1049
        %v1051 = vand.u32 %v903, 4294901760
        %v1052 = vsub.f32 %v903, %v1051
        %v1053 = vand.u32 %v1052, 4294901760
        %1054 = vmatpush.msra.mxu0 %v1053
        %v1055 = vand.u32 %v902, 4294901760
        %v1056 = vsub.f32 %v902, %v1055
        %v1057 = vand.u32 %v1056, 4294901760
        %1058 = vmatpush.msra.mxu0 %v1057
        %v1059 = vand.u32 %v901, 4294901760
        %v1060 = vsub.f32 %v901, %v1059
        %v1061 = vand.u32 %v1060, 4294901760
        %1062 = vmatpush.msra.mxu0 %v1061
        %v1063 = vand.u32 %v906, 4294901760
        %1064 = vmatmul.f32.gmra.mxu0 %v1063
        %v1065 = vpop.f32.mrf.mxu0
        %v1066 = vadd.f32 %v1033, %v1065
        %1067 = vdwg.mxu0
        %1068 = vmatpush.msra.mxu0 0.0
        %1069 = vmatpush.msra.mxu0 0.0
        %1070 = vmatpush.msra.mxu0 0.0
        %1071 = vmatpush.msra.mxu0 0.0
        %1072 = vmatpush.msra.mxu0 0.0
        %1073 = vmatpush.msra.mxu0 0.0
        %1074 = vmatpush.msra.mxu0 0.0
        %1075 = vmatpush.msra.mxu0 0.0
        %1076 = vmatpush.msra.mxu0 0.0
        %1077 = vmatpush.msra.mxu0 0.0
        %1078 = vmatpush.msra.mxu0 0.0
        %1079 = vmatpush.msra.mxu0 0.0
        %v1080 = vand.u32 %v904, 4294901760
        %1081 = vmatpush.msra.mxu0 %v1080
        %v1082 = vand.u32 %v903, 4294901760
        %1083 = vmatpush.msra.mxu0 %v1082
        %v1084 = vand.u32 %v902, 4294901760
        %1085 = vmatpush.msra.mxu0 %v1084
        %v1086 = vand.u32 %v901, 4294901760
        %1087 = vmatpush.msra.mxu0 %v1086
        %v1088 = vand.u32 %v906, 4294901760
        %1089 = vmatmul.f32.gmra.mxu0 %v1088
        %v1090 = vpop.f32.mrf.mxu0
        %v1091 = vadd.f32 %v1066, %v1090
        %1092 = vdwg.mxu0
        %v1093 = vmul.f32 %v1091, 0.17677669
        %vm1094 = vcmask 64512
        %v1096 = vsel %vm1094, %v1093, 0
        %v1099 = vsel %vm1094, %v895, 0
        %v1102 = vsel %vm1094, %v899, 0
        %1104 = vmatpush.xpose.msra.mxu0 0.0
        %1105 = vmatpush.xpose.msra.mxu0 0.0
        %1106 = vmatpush.xpose.msra.mxu0 0.0
        %1107 = vmatpush.xpose.msra.mxu0 0.0
        %1108 = vmatpush.xpose.msra.mxu0 0.0
        %1109 = vmatpush.xpose.msra.mxu0 0.0
        %1110 = vmatpush.xpose.msra.mxu0 0.0
        %1111 = vmatpush.xpose.msra.mxu0 0.0
        %1112 = vmatpush.xpose.msra.mxu0 0.0
        %1113 = vmatpush.xpose.msra.mxu0 0.0
        %1114 = vmatpush.xpose.msra.mxu0 0.0
        %1115 = vmatpush.xpose.msra.mxu0 0.0
        %1116 = vmatpush.xpose.msra.mxu0 0.0
        %1117 = vmatpush.xpose.msra.mxu0 0.0
        %v1118 = vand.u32 %v1102, 4294901760
        %1119 = vmatpush.xpose.msra.mxu0 %v1118
        %v1120 = vand.u32 %v1099, 4294901760
        %1121 = vmatpush.xpose.msra.mxu0 %v1120
        %v1122 = vand.u32 %v1096, 4294901760
        %v1123 = vsub.f32 %v1096, %v1122
        %v1124 = vand.u32 %v1123, 4294901760
        %v1125 = vsub.f32 %v1123, %v1124
        %v1126 = vand.u32 %v1125, 4294901760
        %1127 = vmatmul.f32.gmra.mxu0 %v1126
        %v1128 = vpop.f32.mrf.mxu0
        %v1129 = vadd.f32 0.0, %v1128
        %1130 = vdwg.mxu0
        %1131 = vmatpush.xpose.msra.mxu0 0.0
        %1132 = vmatpush.xpose.msra.mxu0 0.0
        %1133 = vmatpush.xpose.msra.mxu0 0.0
        %1134 = vmatpush.xpose.msra.mxu0 0.0
        %1135 = vmatpush.xpose.msra.mxu0 0.0
        %1136 = vmatpush.xpose.msra.mxu0 0.0
        %1137 = vmatpush.xpose.msra.mxu0 0.0
        %1138 = vmatpush.xpose.msra.mxu0 0.0
        %1139 = vmatpush.xpose.msra.mxu0 0.0
        %1140 = vmatpush.xpose.msra.mxu0 0.0
        %1141 = vmatpush.xpose.msra.mxu0 0.0
        %1142 = vmatpush.xpose.msra.mxu0 0.0
        %1143 = vmatpush.xpose.msra.mxu0 0.0
        %1144 = vmatpush.xpose.msra.mxu0 0.0
        %v1145 = vand.u32 %v1102, 4294901760
        %v1146 = vsub.f32 %v1102, %v1145
        %v1147 = vand.u32 %v1146, 4294901760
        %v1148 = vsub.f32 %v1146, %v1147
        %v1149 = vand.u32 %v1148, 4294901760
        %1150 = vmatpush.xpose.msra.mxu0 %v1149
        %v1151 = vand.u32 %v1099, 4294901760
        %v1152 = vsub.f32 %v1099, %v1151
        %v1153 = vand.u32 %v1152, 4294901760
        %v1154 = vsub.f32 %v1152, %v1153
        %v1155 = vand.u32 %v1154, 4294901760
        %1156 = vmatpush.xpose.msra.mxu0 %v1155
        %v1157 = vand.u32 %v1096, 4294901760
        %1158 = vmatmul.f32.gmra.mxu0 %v1157
        %v1159 = vpop.f32.mrf.mxu0
        %v1160 = vadd.f32 %v1129, %v1159
        %1161 = vdwg.mxu0
        %1162 = vmatpush.xpose.msra.mxu0 0.0
        %1163 = vmatpush.xpose.msra.mxu0 0.0
        %1164 = vmatpush.xpose.msra.mxu0 0.0
        %1165 = vmatpush.xpose.msra.mxu0 0.0
        %1166 = vmatpush.xpose.msra.mxu0 0.0
        %1167 = vmatpush.xpose.msra.mxu0 0.0
        %1168 = vmatpush.xpose.msra.mxu0 0.0
        %1169 = vmatpush.xpose.msra.mxu0 0.0
        %1170 = vmatpush.xpose.msra.mxu0 0.0
        %1171 = vmatpush.xpose.msra.mxu0 0.0
        %1172 = vmatpush.xpose.msra.mxu0 0.0
        %1173 = vmatpush.xpose.msra.mxu0 0.0
        %1174 = vmatpush.xpose.msra.mxu0 0.0
        %1175 = vmatpush.xpose.msra.mxu0 0.0
        %v1176 = vand.u32 %v1102, 4294901760
        %v1177 = vsub.f32 %v1102, %v1176
        %1178 = vmatpush.xpose.msra.mxu0 %v1177
        %v1179 = vand.u32 %v1099, 4294901760
        %v1180 = vsub.f32 %v1099, %v1179
        %1181 = vmatpush.xpose.msra.mxu0 %v1180
        %v1182 = vand.u32 %v1096, 4294901760
        %v1183 = vsub.f32 %v1096, %v1182
        %1184 = vmatmul.f32.gmra.mxu0 %v1183
        %v1185 = vpop.f32.mrf.mxu0
        %v1186 = vadd.f32 %v1160, %v1185
        %1187 = vdwg.mxu0
        %1188 = vmatpush.xpose.msra.mxu0 0.0
        %1189 = vmatpush.xpose.msra.mxu0 0.0
        %1190 = vmatpush.xpose.msra.mxu0 0.0
        %1191 = vmatpush.xpose.msra.mxu0 0.0
        %1192 = vmatpush.xpose.msra.mxu0 0.0
        %1193 = vmatpush.xpose.msra.mxu0 0.0
        %1194 = vmatpush.xpose.msra.mxu0 0.0
        %1195 = vmatpush.xpose.msra.mxu0 0.0
        %1196 = vmatpush.xpose.msra.mxu0 0.0
        %1197 = vmatpush.xpose.msra.mxu0 0.0
        %1198 = vmatpush.xpose.msra.mxu0 0.0
        %1199 = vmatpush.xpose.msra.mxu0 0.0
        %1200 = vmatpush.xpose.msra.mxu0 0.0
        %1201 = vmatpush.xpose.msra.mxu0 0.0
        %v1202 = vand.u32 %v1102, 4294901760
        %1203 = vmatpush.xpose.msra.mxu0 %v1202
        %v1204 = vand.u32 %v1099, 4294901760
        %1205 = vmatpush.xpose.msra.mxu0 %v1204
        %v1206 = vand.u32 %v1096, 4294901760
        %v1207 = vsub.f32 %v1096, %v1206
        %v1208 = vand.u32 %v1207, 4294901760
        %1209 = vmatmul.f32.gmra.mxu0 %v1208
        %v1210 = vpop.f32.mrf.mxu0
        %v1211 = vadd.f32 %v1186, %v1210
        %1212 = vdwg.mxu0
        %1213 = vmatpush.xpose.msra.mxu0 0.0
        %1214 = vmatpush.xpose.msra.mxu0 0.0
        %1215 = vmatpush.xpose.msra.mxu0 0.0
        %1216 = vmatpush.xpose.msra.mxu0 0.0
        %1217 = vmatpush.xpose.msra.mxu0 0.0
        %1218 = vmatpush.xpose.msra.mxu0 0.0
        %1219 = vmatpush.xpose.msra.mxu0 0.0
        %1220 = vmatpush.xpose.msra.mxu0 0.0
        %1221 = vmatpush.xpose.msra.mxu0 0.0
        %1222 = vmatpush.xpose.msra.mxu0 0.0
        %1223 = vmatpush.xpose.msra.mxu0 0.0
        %1224 = vmatpush.xpose.msra.mxu0 0.0
        %1225 = vmatpush.xpose.msra.mxu0 0.0
        %1226 = vmatpush.xpose.msra.mxu0 0.0
        %v1227 = vand.u32 %v1102, 4294901760
        %v1228 = vsub.f32 %v1102, %v1227
        %v1229 = vand.u32 %v1228, 4294901760
        %1230 = vmatpush.xpose.msra.mxu0 %v1229
        %v1231 = vand.u32 %v1099, 4294901760
        %v1232 = vsub.f32 %v1099, %v1231
        %v1233 = vand.u32 %v1232, 4294901760
        %1234 = vmatpush.xpose.msra.mxu0 %v1233
        %v1235 = vand.u32 %v1096, 4294901760
        %1236 = vmatmul.f32.gmra.mxu0 %v1235
        %v1237 = vpop.f32.mrf.mxu0
        %v1238 = vadd.f32 %v1211, %v1237
        %1239 = vdwg.mxu0
        %1240 = vmatpush.xpose.msra.mxu0 0.0
        %1241 = vmatpush.xpose.msra.mxu0 0.0
        %1242 = vmatpush.xpose.msra.mxu0 0.0
        %1243 = vmatpush.xpose.msra.mxu0 0.0
        %1244 = vmatpush.xpose.msra.mxu0 0.0
        %1245 = vmatpush.xpose.msra.mxu0 0.0
        %1246 = vmatpush.xpose.msra.mxu0 0.0
        %1247 = vmatpush.xpose.msra.mxu0 0.0
        %1248 = vmatpush.xpose.msra.mxu0 0.0
        %1249 = vmatpush.xpose.msra.mxu0 0.0
        %1250 = vmatpush.xpose.msra.mxu0 0.0
        %1251 = vmatpush.xpose.msra.mxu0 0.0
        %1252 = vmatpush.xpose.msra.mxu0 0.0
        %1253 = vmatpush.xpose.msra.mxu0 0.0
        %v1254 = vand.u32 %v1102, 4294901760
        %1255 = vmatpush.xpose.msra.mxu0 %v1254
        %v1256 = vand.u32 %v1099, 4294901760
        %1257 = vmatpush.xpose.msra.mxu0 %v1256
        %v1258 = vand.u32 %v1096, 4294901760
        %1259 = vmatmul.f32.gmra.mxu0 %v1258
        %v1260 = vpop.f32.mrf.mxu0
        %v1261 = vadd.f32 %v1238, %v1260
        %1262 = vdwg.mxu0
        %vm1263 = vcmask 130048
        %v1264 = vsel %vm1263, %v1261, -inf
        %1265 = vmax.xlane.f32.xlu0 %v1264
        %v1266 = vpop.xlane.xlu0 %1265
        %v1267 = vsub.f32 %v1261, %v1266
        %v1268 = vmul.f32 %v1267, 1.442695
        %v1269 = vpow.pop %v1268
        %v1270 = vsel %vm1263, %v1269, 0.0
        %1271 = vadd.xlane.f32.xlu0 %v1270
        %v1272 = vpop.xlane.xlu0 %1271
        %v1273 = vrcp.pop %v1272
        %v1274 = vmul.f32 %v1272, %v1273
        %v1275 = vsub.f32 1.0, %v1274
        %v1276 = vmul.f32 %v1273, %v1275
        %v1277 = vadd.f32 %v1273, %v1276
        %vm1278 = vweird.f32 %v1272
        %vm1279 = vweird.f32 %v1273
        %vm1280 = vmor %vm1278, %vm1279
        %v1281 = vsel %vm1280, %v1273, %v1277
        %v1282 = vand.u32 2147483647, %v1272
        %vm1283 = vcmp.eq.f32.partialorder %v1282, 8.507059e+37
        %v1284 = vand.u32 %v1272, 2147483648
        %v1285 = vor.u32 1.1754944e-38, %v1284
        %v1286 = vsel %vm1283, %v1285, %v1281
        %v1287 = vmul.f32 %v1269, %v1286
        %v1289 = vsel %vm1263, %v1287, 0
        %1291 = vmatpush.msra.mxu0 0.0
        %1292 = vmatpush.msra.mxu0 0.0
        %1293 = vmatpush.msra.mxu0 0.0
        %1294 = vmatpush.msra.mxu0 0.0
        %1295 = vmatpush.msra.mxu0 0.0
        %1296 = vmatpush.msra.mxu0 0.0
        %1297 = vmatpush.msra.mxu0 0.0
        %1298 = vmatpush.msra.mxu0 0.0
        %1299 = vmatpush.msra.mxu0 0.0
        %1300 = vmatpush.msra.mxu0 0.0
        %1301 = vmatpush.msra.mxu0 0.0
        %1302 = vmatpush.msra.mxu0 0.0
        %1303 = vmatpush.msra.mxu0 0.0
        %1304 = vmatpush.msra.mxu0 0.0
        %v1305 = vand.u32 %v673, 4294901760
        %1306 = vmatpush.msra.mxu0 %v1305
        %v1307 = vand.u32 %v669, 4294901760
        %1308 = vmatpush.msra.mxu0 %v1307
        %v1309 = vand.u32 %v1289, 4294901760
        %v1310 = vsub.f32 %v1289, %v1309
        %v1311 = vand.u32 %v1310, 4294901760
        %v1312 = vsub.f32 %v1310, %v1311
        %v1313 = vand.u32 %v1312, 4294901760
        %1314 = vmatmul.f32.gmra.mxu0 %v1313
        %v1315 = vpop.f32.mrf.mxu0
        %v1316 = vadd.f32 0.0, %v1315
        %1317 = vdwg.mxu0
        %1318 = vmatpush.msra.mxu0 0.0
        %1319 = vmatpush.msra.mxu0 0.0
        %1320 = vmatpush.msra.mxu0 0.0
        %1321 = vmatpush.msra.mxu0 0.0
        %1322 = vmatpush.msra.mxu0 0.0
        %1323 = vmatpush.msra.mxu0 0.0
        %1324 = vmatpush.msra.mxu0 0.0
        %1325 = vmatpush.msra.mxu0 0.0
        %1326 = vmatpush.msra.mxu0 0.0
        %1327 = vmatpush.msra.mxu0 0.0
        %1328 = vmatpush.msra.mxu0 0.0
        %1329 = vmatpush.msra.mxu0 0.0
        %1330 = vmatpush.msra.mxu0 0.0
        %1331 = vmatpush.msra.mxu0 0.0
        %v1332 = vand.u32 %v673, 4294901760
        %v1333 = vsub.f32 %v673, %v1332
        %v1334 = vand.u32 %v1333, 4294901760
        %v1335 = vsub.f32 %v1333, %v1334
        %v1336 = vand.u32 %v1335, 4294901760
        %1337 = vmatpush.msra.mxu0 %v1336
        %v1338 = vand.u32 %v669, 4294901760
        %v1339 = vsub.f32 %v669, %v1338
        %v1340 = vand.u32 %v1339, 4294901760
        %v1341 = vsub.f32 %v1339, %v1340
        %v1342 = vand.u32 %v1341, 4294901760
        %1343 = vmatpush.msra.mxu0 %v1342
        %v1344 = vand.u32 %v1289, 4294901760
        %1345 = vmatmul.f32.gmra.mxu0 %v1344
        %v1346 = vpop.f32.mrf.mxu0
        %v1347 = vadd.f32 %v1316, %v1346
        %1348 = vdwg.mxu0
        %1349 = vmatpush.msra.mxu0 0.0
        %1350 = vmatpush.msra.mxu0 0.0
        %1351 = vmatpush.msra.mxu0 0.0
        %1352 = vmatpush.msra.mxu0 0.0
        %1353 = vmatpush.msra.mxu0 0.0
        %1354 = vmatpush.msra.mxu0 0.0
        %1355 = vmatpush.msra.mxu0 0.0
        %1356 = vmatpush.msra.mxu0 0.0
        %1357 = vmatpush.msra.mxu0 0.0
        %1358 = vmatpush.msra.mxu0 0.0
        %1359 = vmatpush.msra.mxu0 0.0
        %1360 = vmatpush.msra.mxu0 0.0
        %1361 = vmatpush.msra.mxu0 0.0
        %1362 = vmatpush.msra.mxu0 0.0
        %v1363 = vand.u32 %v673, 4294901760
        %v1364 = vsub.f32 %v673, %v1363
        %1365 = vmatpush.msra.mxu0 %v1364
        %v1366 = vand.u32 %v669, 4294901760
        %v1367 = vsub.f32 %v669, %v1366
        %1368 = vmatpush.msra.mxu0 %v1367
        %v1369 = vand.u32 %v1289, 4294901760
        %v1370 = vsub.f32 %v1289, %v1369
        %1371 = vmatmul.f32.gmra.mxu0 %v1370
        %v1372 = vpop.f32.mrf.mxu0
        %v1373 = vadd.f32 %v1347, %v1372
        %1374 = vdwg.mxu0
        %1375 = vmatpush.msra.mxu0 0.0
        %1376 = vmatpush.msra.mxu0 0.0
        %1377 = vmatpush.msra.mxu0 0.0
        %1378 = vmatpush.msra.mxu0 0.0
        %1379 = vmatpush.msra.mxu0 0.0
        %1380 = vmatpush.msra.mxu0 0.0
        %1381 = vmatpush.msra.mxu0 0.0
        %1382 = vmatpush.msra.mxu0 0.0
        %1383 = vmatpush.msra.mxu0 0.0
        %1384 = vmatpush.msra.mxu0 0.0
        %1385 = vmatpush.msra.mxu0 0.0
        %1386 = vmatpush.msra.mxu0 0.0
        %1387 = vmatpush.msra.mxu0 0.0
        %1388 = vmatpush.msra.mxu0 0.0
        %v1389 = vand.u32 %v673, 4294901760
        %1390 = vmatpush.msra.mxu0 %v1389
        %v1391 = vand.u32 %v669, 4294901760
        %1392 = vmatpush.msra.mxu0 %v1391
        %v1393 = vand.u32 %v1289, 4294901760
        %v1394 = vsub.f32 %v1289, %v1393
        %v1395 = vand.u32 %v1394, 4294901760
        %1396 = vmatmul.f32.gmra.mxu0 %v1395
        %v1397 = vpop.f32.mrf.mxu0
        %v1398 = vadd.f32 %v1373, %v1397
        %1399 = vdwg.mxu0
        %1400 = vmatpush.msra.mxu0 0.0
        %1401 = vmatpush.msra.mxu0 0.0
        %1402 = vmatpush.msra.mxu0 0.0
        %1403 = vmatpush.msra.mxu0 0.0
        %1404 = vmatpush.msra.mxu0 0.0
        %1405 = vmatpush.msra.mxu0 0.0
        %1406 = vmatpush.msra.mxu0 0.0
        %1407 = vmatpush.msra.mxu0 0.0
        %1408 = vmatpush.msra.mxu0 0.0
        %1409 = vmatpush.msra.mxu0 0.0
        %1410 = vmatpush.msra.mxu0 0.0
        %1411 = vmatpush.msra.mxu0 0.0
        %1412 = vmatpush.msra.mxu0 0.0
        %1413 = vmatpush.msra.mxu0 0.0
        %v1414 = vand.u32 %v673, 4294901760
        %v1415 = vsub.f32 %v673, %v1414
        %v1416 = vand.u32 %v1415, 4294901760
        %1417 = vmatpush.msra.mxu0 %v1416
        %v1418 = vand.u32 %v669, 4294901760
        %v1419 = vsub.f32 %v669, %v1418
        %v1420 = vand.u32 %v1419, 4294901760
        %1421 = vmatpush.msra.mxu0 %v1420
        %v1422 = vand.u32 %v1289, 4294901760
        %1423 = vmatmul.f32.gmra.mxu0 %v1422
        %v1424 = vpop.f32.mrf.mxu0
        %v1425 = vadd.f32 %v1398, %v1424
        %1426 = vdwg.mxu0
        %1427 = vmatpush.msra.mxu0 0.0
        %1428 = vmatpush.msra.mxu0 0.0
        %1429 = vmatpush.msra.mxu0 0.0
        %1430 = vmatpush.msra.mxu0 0.0
        %1431 = vmatpush.msra.mxu0 0.0
        %1432 = vmatpush.msra.mxu0 0.0
        %1433 = vmatpush.msra.mxu0 0.0
        %1434 = vmatpush.msra.mxu0 0.0
        %1435 = vmatpush.msra.mxu0 0.0
        %1436 = vmatpush.msra.mxu0 0.0
        %1437 = vmatpush.msra.mxu0 0.0
        %1438 = vmatpush.msra.mxu0 0.0
        %1439 = vmatpush.msra.mxu0 0.0
        %1440 = vmatpush.msra.mxu0 0.0
        %v1441 = vand.u32 %v673, 4294901760
        %1442 = vmatpush.msra.mxu0 %v1441
        %v1443 = vand.u32 %v669, 4294901760
        %1444 = vmatpush.msra.mxu0 %v1443
        %v1445 = vand.u32 %v1289, 4294901760
        %1446 = vmatmul.f32.gmra.mxu0 %v1445
        %v1447 = vpop.f32.mrf.mxu0
        %v1448 = vadd.f32 %v1425, %v1447
        %1449 = vdwg.mxu0
        %v1450 = vld [vmem:[#allocation13] sm:$0xff]
        %1451 = vrot.lane.b32.xlu0 %v1093, 120
        %v1452 = vpop.permute.xlu0 %1451
        %1453 = vrot.lane.b32.xlu0 %v895, 120
        %v1454 = vpop.permute.xlu0 %1453
        %1455 = vrot.lane.b32.xlu0 %v899, 120
        %v1456 = vpop.permute.xlu0 %1455
        %v1457 = vsel %vm1094, %v1452, 0
        %v1459 = vsel %vm1094, %v1454, 0
        %v1461 = vsel %vm1094, %v1456, 0
        %1463 = vmatpush.xpose.msra.mxu0 0.0
        %1464 = vmatpush.xpose.msra.mxu0 0.0
        %1465 = vmatpush.xpose.msra.mxu0 0.0
        %1466 = vmatpush.xpose.msra.mxu0 0.0
        %1467 = vmatpush.xpose.msra.mxu0 0.0
        %1468 = vmatpush.xpose.msra.mxu0 0.0
        %1469 = vmatpush.xpose.msra.mxu0 0.0
        %1470 = vmatpush.xpose.msra.mxu0 0.0
        %1471 = vmatpush.xpose.msra.mxu0 0.0
        %1472 = vmatpush.xpose.msra.mxu0 0.0
        %1473 = vmatpush.xpose.msra.mxu0 0.0
        %1474 = vmatpush.xpose.msra.mxu0 0.0
        %1475 = vmatpush.xpose.msra.mxu0 0.0
        %1476 = vmatpush.xpose.msra.mxu0 0.0
        %v1477 = vand.u32 %v1461, 4294901760
        %1478 = vmatpush.xpose.msra.mxu0 %v1477
        %v1479 = vand.u32 %v1459, 4294901760
        %1480 = vmatpush.xpose.msra.mxu0 %v1479
        %v1481 = vand.u32 %v1457, 4294901760
        %v1482 = vsub.f32 %v1457, %v1481
        %v1483 = vand.u32 %v1482, 4294901760
        %v1484 = vsub.f32 %v1482, %v1483
        %v1485 = vand.u32 %v1484, 4294901760
        %1486 = vmatmul.f32.gmra.mxu0 %v1485
        %v1487 = vpop.f32.mrf.mxu0
        %v1488 = vadd.f32 0.0, %v1487
        %1489 = vdwg.mxu0
        %1490 = vmatpush.xpose.msra.mxu0 0.0
        %1491 = vmatpush.xpose.msra.mxu0 0.0
        %1492 = vmatpush.xpose.msra.mxu0 0.0
        %1493 = vmatpush.xpose.msra.mxu0 0.0
        %1494 = vmatpush.xpose.msra.mxu0 0.0
        %1495 = vmatpush.xpose.msra.mxu0 0.0
        %1496 = vmatpush.xpose.msra.mxu0 0.0
        %1497 = vmatpush.xpose.msra.mxu0 0.0
        %1498 = vmatpush.xpose.msra.mxu0 0.0
        %1499 = vmatpush.xpose.msra.mxu0 0.0
        %1500 = vmatpush.xpose.msra.mxu0 0.0
        %1501 = vmatpush.xpose.msra.mxu0 0.0
        %1502 = vmatpush.xpose.msra.mxu0 0.0
        %1503 = vmatpush.xpose.msra.mxu0 0.0
        %v1504 = vand.u32 %v1461, 4294901760
        %v1505 = vsub.f32 %v1461, %v1504
        %v1506 = vand.u32 %v1505, 4294901760
        %v1507 = vsub.f32 %v1505, %v1506
        %v1508 = vand.u32 %v1507, 4294901760
        %1509 = vmatpush.xpose.msra.mxu0 %v1508
        %v1510 = vand.u32 %v1459, 4294901760
        %v1511 = vsub.f32 %v1459, %v1510
        %v1512 = vand.u32 %v1511, 4294901760
        %v1513 = vsub.f32 %v1511, %v1512
        %v1514 = vand.u32 %v1513, 4294901760
        %1515 = vmatpush.xpose.msra.mxu0 %v1514
        %v1516 = vand.u32 %v1457, 4294901760
        %1517 = vmatmul.f32.gmra.mxu0 %v1516
        %v1518 = vpop.f32.mrf.mxu0
        %v1519 = vadd.f32 %v1488, %v1518
        %1520 = vdwg.mxu0
        %1521 = vmatpush.xpose.msra.mxu0 0.0
        %1522 = vmatpush.xpose.msra.mxu0 0.0
        %1523 = vmatpush.xpose.msra.mxu0 0.0
        %1524 = vmatpush.xpose.msra.mxu0 0.0
        %1525 = vmatpush.xpose.msra.mxu0 0.0
        %1526 = vmatpush.xpose.msra.mxu0 0.0
        %1527 = vmatpush.xpose.msra.mxu0 0.0
        %1528 = vmatpush.xpose.msra.mxu0 0.0
        %1529 = vmatpush.xpose.msra.mxu0 0.0
        %1530 = vmatpush.xpose.msra.mxu0 0.0
        %1531 = vmatpush.xpose.msra.mxu0 0.0
        %1532 = vmatpush.xpose.msra.mxu0 0.0
        %1533 = vmatpush.xpose.msra.mxu0 0.0
        %1534 = vmatpush.xpose.msra.mxu0 0.0
        %v1535 = vand.u32 %v1461, 4294901760
        %v1536 = vsub.f32 %v1461, %v1535
        %1537 = vmatpush.xpose.msra.mxu0 %v1536
        %v1538 = vand.u32 %v1459, 4294901760
        %v1539 = vsub.f32 %v1459, %v1538
        %1540 = vmatpush.xpose.msra.mxu0 %v1539
        %v1541 = vand.u32 %v1457, 4294901760
        %v1542 = vsub.f32 %v1457, %v1541
        %1543 = vmatmul.f32.gmra.mxu0 %v1542
        %v1544 = vpop.f32.mrf.mxu0
        %v1545 = vadd.f32 %v1519, %v1544
        %1546 = vdwg.mxu0
        %1547 = vmatpush.xpose.msra.mxu0 0.0
        %1548 = vmatpush.xpose.msra.mxu0 0.0
        %1549 = vmatpush.xpose.msra.mxu0 0.0
        %1550 = vmatpush.xpose.msra.mxu0 0.0
        %1551 = vmatpush.xpose.msra.mxu0 0.0
        %1552 = vmatpush.xpose.msra.mxu0 0.0
        %1553 = vmatpush.xpose.msra.mxu0 0.0
        %1554 = vmatpush.xpose.msra.mxu0 0.0
        %1555 = vmatpush.xpose.msra.mxu0 0.0
        %1556 = vmatpush.xpose.msra.mxu0 0.0
        %1557 = vmatpush.xpose.msra.mxu0 0.0
        %1558 = vmatpush.xpose.msra.mxu0 0.0
        %1559 = vmatpush.xpose.msra.mxu0 0.0
        %1560 = vmatpush.xpose.msra.mxu0 0.0
        %v1561 = vand.u32 %v1461, 4294901760
        %1562 = vmatpush.xpose.msra.mxu0 %v1561
        %v1563 = vand.u32 %v1459, 4294901760
        %1564 = vmatpush.xpose.msra.mxu0 %v1563
        %v1565 = vand.u32 %v1457, 4294901760
        %v1566 = vsub.f32 %v1457, %v1565
        %v1567 = vand.u32 %v1566, 4294901760
        %1568 = vmatmul.f32.gmra.mxu0 %v1567
        %v1569 = vpop.f32.mrf.mxu0
        %v1570 = vadd.f32 %v1545, %v1569
        %1571 = vdwg.mxu0
        %1572 = vmatpush.xpose.msra.mxu0 0.0
        %1573 = vmatpush.xpose.msra.mxu0 0.0
        %1574 = vmatpush.xpose.msra.mxu0 0.0
        %1575 = vmatpush.xpose.msra.mxu0 0.0
        %1576 = vmatpush.xpose.msra.mxu0 0.0
        %1577 = vmatpush.xpose.msra.mxu0 0.0
        %1578 = vmatpush.xpose.msra.mxu0 0.0
        %1579 = vmatpush.xpose.msra.mxu0 0.0
        %1580 = vmatpush.xpose.msra.mxu0 0.0
        %1581 = vmatpush.xpose.msra.mxu0 0.0
        %1582 = vmatpush.xpose.msra.mxu0 0.0
        %1583 = vmatpush.xpose.msra.mxu0 0.0
        %1584 = vmatpush.xpose.msra.mxu0 0.0
        %1585 = vmatpush.xpose.msra.mxu0 0.0
        %v1586 = vand.u32 %v1461, 4294901760
        %v1587 = vsub.f32 %v1461, %v1586
        %v1588 = vand.u32 %v1587, 4294901760
        %1589 = vmatpush.xpose.msra.mxu0 %v1588
        %v1590 = vand.u32 %v1459, 4294901760
        %v1591 = vsub.f32 %v1459, %v1590
        %v1592 = vand.u32 %v1591, 4294901760
        %1593 = vmatpush.xpose.msra.mxu0 %v1592
        %v1594 = vand.u32 %v1457, 4294901760
        %1595 = vmatmul.f32.gmra.mxu0 %v1594
        %v1596 = vpop.f32.mrf.mxu0
        %v1597 = vadd.f32 %v1570, %v1596
        %1598 = vdwg.mxu0
        %1599 = vmatpush.xpose.msra.mxu0 0.0
        %1600 = vmatpush.xpose.msra.mxu0 0.0
        %1601 = vmatpush.xpose.msra.mxu0 0.0
        %1602 = vmatpush.xpose.msra.mxu0 0.0
        %1603 = vmatpush.xpose.msra.mxu0 0.0
        %1604 = vmatpush.xpose.msra.mxu0 0.0
        %1605 = vmatpush.xpose.msra.mxu0 0.0
        %1606 = vmatpush.xpose.msra.mxu0 0.0
        %1607 = vmatpush.xpose.msra.mxu0 0.0
        %1608 = vmatpush.xpose.msra.mxu0 0.0
        %1609 = vmatpush.xpose.msra.mxu0 0.0
        %1610 = vmatpush.xpose.msra.mxu0 0.0
        %1611 = vmatpush.xpose.msra.mxu0 0.0
        %1612 = vmatpush.xpose.msra.mxu0 0.0
        %v1613 = vand.u32 %v1461, 4294901760
        %1614 = vmatpush.xpose.msra.mxu0 %v1613
        %v1615 = vand.u32 %v1459, 4294901760
        %1616 = vmatpush.xpose.msra.mxu0 %v1615
        %v1617 = vand.u32 %v1457, 4294901760
        %1618 = vmatmul.f32.gmra.mxu0 %v1617
        %v1619 = vpop.f32.mrf.mxu0
        %v1620 = vadd.f32 %v1597, %v1619
        %1621 = vdwg.mxu0
        %v1622 = vsel %vm1263, %v1620, -inf
        %1623 = vmax.xlane.f32.xlu0 %v1622
        %v1624 = vpop.xlane.xlu0 %1623
        %v1625 = vsub.f32 %v1620, %v1624
        %v1626 = vmul.f32 %v1625, 1.442695
        %v1627 = vpow.pop %v1626
        %v1628 = vsel %vm1263, %v1627, 0.0
        %1629 = vadd.xlane.f32.xlu0 %v1628
        %v1630 = vpop.xlane.xlu0 %1629
        %v1631 = vrcp.pop %v1630
        %v1632 = vmul.f32 %v1630, %v1631
        %v1633 = vsub.f32 1.0, %v1632
        %v1634 = vmul.f32 %v1631, %v1633
        %v1635 = vadd.f32 %v1631, %v1634
        %vm1636 = vweird.f32 %v1630
        %vm1637 = vweird.f32 %v1631
        %vm1638 = vmor %vm1636, %vm1637
        %v1639 = vsel %vm1638, %v1631, %v1635
        %v1640 = vand.u32 2147483647, %v1630
        %vm1641 = vcmp.eq.f32.partialorder %v1640, 8.507059e+37
        %v1642 = vand.u32 %v1630, 2147483648
        %v1643 = vor.u32 1.1754944e-38, %v1642
        %v1644 = vsel %vm1641, %v1643, %v1639
        %v1645 = vmul.f32 %v1627, %v1644
        %1648 = vrot.lane.b32.xlu0 %v669, 120
        %v1649 = vpop.permute.xlu0 %1648
        %1650 = vrot.lane.b32.xlu0 %v673, 120
        %v1651 = vpop.permute.xlu0 %1650
        %v1655 = vsel %vm1263, %v1645, 0
        %1657 = vmatpush.msra.mxu0 0.0
        %1658 = vmatpush.msra.mxu0 0.0
        %1659 = vmatpush.msra.mxu0 0.0
        %1660 = vmatpush.msra.mxu0 0.0
        %1661 = vmatpush.msra.mxu0 0.0
        %1662 = vmatpush.msra.mxu0 0.0
        %1663 = vmatpush.msra.mxu0 0.0
        %1664 = vmatpush.msra.mxu0 0.0
        %1665 = vmatpush.msra.mxu0 0.0
        %1666 = vmatpush.msra.mxu0 0.0
        %1667 = vmatpush.msra.mxu0 0.0
        %1668 = vmatpush.msra.mxu0 0.0
        %1669 = vmatpush.msra.mxu0 0.0
        %1670 = vmatpush.msra.mxu0 0.0
        %v1671 = vand.u32 %v1651, 4294901760
        %1672 = vmatpush.msra.mxu0 %v1671
        %v1673 = vand.u32 %v1649, 4294901760
        %1674 = vmatpush.msra.mxu0 %v1673
        %v1675 = vand.u32 %v1655, 4294901760
        %v1676 = vsub.f32 %v1655, %v1675
        %v1677 = vand.u32 %v1676, 4294901760
        %v1678 = vsub.f32 %v1676, %v1677
        %v1679 = vand.u32 %v1678, 4294901760
        %1680 = vmatmul.f32.gmra.mxu0 %v1679
        %v1681 = vpop.f32.mrf.mxu0
        %v1682 = vadd.f32 0.0, %v1681
        %1683 = vdwg.mxu0
        %1684 = vmatpush.msra.mxu0 0.0
        %1685 = vmatpush.msra.mxu0 0.0
        %1686 = vmatpush.msra.mxu0 0.0
        %1687 = vmatpush.msra.mxu0 0.0
        %1688 = vmatpush.msra.mxu0 0.0
        %1689 = vmatpush.msra.mxu0 0.0
        %1690 = vmatpush.msra.mxu0 0.0
        %1691 = vmatpush.msra.mxu0 0.0
        %1692 = vmatpush.msra.mxu0 0.0
        %1693 = vmatpush.msra.mxu0 0.0
        %1694 = vmatpush.msra.mxu0 0.0
        %1695 = vmatpush.msra.mxu0 0.0
        %1696 = vmatpush.msra.mxu0 0.0
        %1697 = vmatpush.msra.mxu0 0.0
        %v1698 = vand.u32 %v1651, 4294901760
        %v1699 = vsub.f32 %v1651, %v1698
        %v1700 = vand.u32 %v1699, 4294901760
        %v1701 = vsub.f32 %v1699, %v1700
        %v1702 = vand.u32 %v1701, 4294901760
        %1703 = vmatpush.msra.mxu0 %v1702
        %v1704 = vand.u32 %v1649, 4294901760
        %v1705 = vsub.f32 %v1649, %v1704
        %v1706 = vand.u32 %v1705, 4294901760
        %v1707 = vsub.f32 %v1705, %v1706
        %v1708 = vand.u32 %v1707, 4294901760
        %1709 = vmatpush.msra.mxu0 %v1708
        %v1710 = vand.u32 %v1655, 4294901760
        %1711 = vmatmul.f32.gmra.mxu0 %v1710
        %v1712 = vpop.f32.mrf.mxu0
        %v1713 = vadd.f32 %v1682, %v1712
        %1714 = vdwg.mxu0
        %1715 = vmatpush.msra.mxu0 0.0
        %1716 = vmatpush.msra.mxu0 0.0
        %1717 = vmatpush.msra.mxu0 0.0
        %1718 = vmatpush.msra.mxu0 0.0
        %1719 = vmatpush.msra.mxu0 0.0
        %1720 = vmatpush.msra.mxu0 0.0
        %1721 = vmatpush.msra.mxu0 0.0
        %1722 = vmatpush.msra.mxu0 0.0
        %1723 = vmatpush.msra.mxu0 0.0
        %1724 = vmatpush.msra.mxu0 0.0
        %1725 = vmatpush.msra.mxu0 0.0
        %1726 = vmatpush.msra.mxu0 0.0
        %1727 = vmatpush.msra.mxu0 0.0
        %1728 = vmatpush.msra.mxu0 0.0
        %v1729 = vand.u32 %v1651, 4294901760
        %v1730 = vsub.f32 %v1651, %v1729
        %1731 = vmatpush.msra.mxu0 %v1730
        %v1732 = vand.u32 %v1649, 4294901760
        %v1733 = vsub.f32 %v1649, %v1732
        %1734 = vmatpush.msra.mxu0 %v1733
        %v1735 = vand.u32 %v1655, 4294901760
        %v1736 = vsub.f32 %v1655, %v1735
        %1737 = vmatmul.f32.gmra.mxu0 %v1736
        %v1738 = vpop.f32.mrf.mxu0
        %v1739 = vadd.f32 %v1713, %v1738
        %1740 = vdwg.mxu0
        %1741 = vmatpush.msra.mxu0 0.0
        %1742 = vmatpush.msra.mxu0 0.0
        %1743 = vmatpush.msra.mxu0 0.0
        %1744 = vmatpush.msra.mxu0 0.0
        %1745 = vmatpush.msra.mxu0 0.0
        %1746 = vmatpush.msra.mxu0 0.0
        %1747 = vmatpush.msra.mxu0 0.0
        %1748 = vmatpush.msra.mxu0 0.0
        %1749 = vmatpush.msra.mxu0 0.0
        %1750 = vmatpush.msra.mxu0 0.0
        %1751 = vmatpush.msra.mxu0 0.0
        %1752 = vmatpush.msra.mxu0 0.0
        %1753 = vmatpush.msra.mxu0 0.0
        %1754 = vmatpush.msra.mxu0 0.0
        %v1755 = vand.u32 %v1651, 4294901760
        %1756 = vmatpush.msra.mxu0 %v1755
        %v1757 = vand.u32 %v1649, 4294901760
        %1758 = vmatpush.msra.mxu0 %v1757
        %v1759 = vand.u32 %v1655, 4294901760
        %v1760 = vsub.f32 %v1655, %v1759
        %v1761 = vand.u32 %v1760, 4294901760
        %1762 = vmatmul.f32.gmra.mxu0 %v1761
        %v1763 = vpop.f32.mrf.mxu0
        %v1764 = vadd.f32 %v1739, %v1763
        %1765 = vdwg.mxu0
        %1766 = vmatpush.msra.mxu0 0.0
        %1767 = vmatpush.msra.mxu0 0.0
        %1768 = vmatpush.msra.mxu0 0.0
        %1769 = vmatpush.msra.mxu0 0.0
        %1770 = vmatpush.msra.mxu0 0.0
        %1771 = vmatpush.msra.mxu0 0.0
        %1772 = vmatpush.msra.mxu0 0.0
        %1773 = vmatpush.msra.mxu0 0.0
        %1774 = vmatpush.msra.mxu0 0.0
        %1775 = vmatpush.msra.mxu0 0.0
        %1776 = vmatpush.msra.mxu0 0.0
        %1777 = vmatpush.msra.mxu0 0.0
        %1778 = vmatpush.msra.mxu0 0.0
        %1779 = vmatpush.msra.mxu0 0.0
        %v1780 = vand.u32 %v1651, 4294901760
        %v1781 = vsub.f32 %v1651, %v1780
        %v1782 = vand.u32 %v1781, 4294901760
        %1783 = vmatpush.msra.mxu0 %v1782
        %v1784 = vand.u32 %v1649, 4294901760
        %v1785 = vsub.f32 %v1649, %v1784
        %v1786 = vand.u32 %v1785, 4294901760
        %1787 = vmatpush.msra.mxu0 %v1786
        %v1788 = vand.u32 %v1655, 4294901760
        %1789 = vmatmul.f32.gmra.mxu0 %v1788
        %v1790 = vpop.f32.mrf.mxu0
        %v1791 = vadd.f32 %v1764, %v1790
        %1792 = vdwg.mxu0
        %1793 = vmatpush.msra.mxu0 0.0
        %1794 = vmatpush.msra.mxu0 0.0
        %1795 = vmatpush.msra.mxu0 0.0
        %1796 = vmatpush.msra.mxu0 0.0
        %1797 = vmatpush.msra.mxu0 0.0
        %1798 = vmatpush.msra.mxu0 0.0
        %1799 = vmatpush.msra.mxu0 0.0
        %1800 = vmatpush.msra.mxu0 0.0
        %1801 = vmatpush.msra.mxu0 0.0
        %1802 = vmatpush.msra.mxu0 0.0
        %1803 = vmatpush.msra.mxu0 0.0
        %1804 = vmatpush.msra.mxu0 0.0
        %1805 = vmatpush.msra.mxu0 0.0
        %1806 = vmatpush.msra.mxu0 0.0
        %v1807 = vand.u32 %v1651, 4294901760
        %1808 = vmatpush.msra.mxu0 %v1807
        %v1809 = vand.u32 %v1649, 4294901760
        %1810 = vmatpush.msra.mxu0 %v1809
        %v1811 = vand.u32 %v1655, 4294901760
        %1812 = vmatmul.f32.gmra.mxu0 %v1811
        %v1813 = vpop.f32.mrf.mxu0
        %v1814 = vadd.f32 %v1791, %v1813
        %1815 = vdwg.mxu0
        %v1816 = vld [vmem:[#allocation13 + $0x8] sm:$0xff]
        %v1818 = vsel %vm1094, %v1814, 0
        %1820 = vmatpush.msra.mxu0 0.0
        %1821 = vmatpush.msra.mxu0 0.0
        %1822 = vmatpush.msra.mxu0 0.0
        %1823 = vmatpush.msra.mxu0 0.0
        %1824 = vmatpush.msra.mxu0 0.0
        %1825 = vmatpush.msra.mxu0 0.0
        %1826 = vmatpush.msra.mxu0 0.0
        %1827 = vmatpush.msra.mxu0 0.0
        %1828 = vmatpush.msra.mxu0 0.0
        %1829 = vmatpush.msra.mxu0 0.0
        %1830 = vmatpush.msra.mxu0 0.0
        %1831 = vmatpush.msra.mxu0 0.0
        %1832 = vmatpush.msra.mxu0 0.0
        %1833 = vmatpush.msra.mxu0 0.0
        %1834 = vmatpush.msra.mxu0 0.0
        %v1835 = vand.u32 %v1816, 4294901760
        %1836 = vmatpush.msra.mxu0 %v1835
        %v1837 = vand.u32 %v1818, 4294901760
        %v1838 = vsub.f32 %v1818, %v1837
        %v1839 = vand.u32 %v1838, 4294901760
        %v1840 = vsub.f32 %v1838, %v1839
        %v1841 = vand.u32 %v1840, 4294901760
        %1842 = vmatmul.f32.gmra.mxu0 %v1841
        %v1843 = vpop.f32.mrf.mxu0
        %v1844 = vadd.f32 0.0, %v1843
        %1845 = vdwg.mxu0
        %1846 = vmatpush.msra.mxu0 0.0
        %1847 = vmatpush.msra.mxu0 0.0
        %1848 = vmatpush.msra.mxu0 0.0
        %1849 = vmatpush.msra.mxu0 0.0
        %1850 = vmatpush.msra.mxu0 0.0
        %1851 = vmatpush.msra.mxu0 0.0
        %1852 = vmatpush.msra.mxu0 0.0
        %1853 = vmatpush.msra.mxu0 0.0
        %1854 = vmatpush.msra.mxu0 0.0
        %1855 = vmatpush.msra.mxu0 0.0
        %1856 = vmatpush.msra.mxu0 0.0
        %1857 = vmatpush.msra.mxu0 0.0
        %1858 = vmatpush.msra.mxu0 0.0
        %1859 = vmatpush.msra.mxu0 0.0
        %1860 = vmatpush.msra.mxu0 0.0
        %v1861 = vand.u32 %v1816, 4294901760
        %v1862 = vsub.f32 %v1816, %v1861
        %v1863 = vand.u32 %v1862, 4294901760
        %v1864 = vsub.f32 %v1862, %v1863
        %v1865 = vand.u32 %v1864, 4294901760
        %1866 = vmatpush.msra.mxu0 %v1865
        %v1867 = vand.u32 %v1818, 4294901760
        %1868 = vmatmul.f32.gmra.mxu0 %v1867
        %v1869 = vpop.f32.mrf.mxu0
        %v1870 = vadd.f32 %v1844, %v1869
        %1871 = vdwg.mxu0
        %1872 = vmatpush.msra.mxu0 0.0
        %1873 = vmatpush.msra.mxu0 0.0
        %1874 = vmatpush.msra.mxu0 0.0
        %1875 = vmatpush.msra.mxu0 0.0
        %1876 = vmatpush.msra.mxu0 0.0
        %1877 = vmatpush.msra.mxu0 0.0
        %1878 = vmatpush.msra.mxu0 0.0
        %1879 = vmatpush.msra.mxu0 0.0
        %1880 = vmatpush.msra.mxu0 0.0
        %1881 = vmatpush.msra.mxu0 0.0
        %1882 = vmatpush.msra.mxu0 0.0
        %1883 = vmatpush.msra.mxu0 0.0
        %1884 = vmatpush.msra.mxu0 0.0
        %1885 = vmatpush.msra.mxu0 0.0
        %1886 = vmatpush.msra.mxu0 0.0
        %v1887 = vand.u32 %v1816, 4294901760
        %v1888 = vsub.f32 %v1816, %v1887
        %1889 = vmatpush.msra.mxu0 %v1888
        %v1890 = vand.u32 %v1818, 4294901760
        %v1891 = vsub.f32 %v1818, %v1890
        %1892 = vmatmul.f32.gmra.mxu0 %v1891
        %v1893 = vpop.f32.mrf.mxu0
        %v1894 = vadd.f32 %v1870, %v1893
        %1895 = vdwg.mxu0
        %1896 = vmatpush.msra.mxu0 0.0
        %1897 = vmatpush.msra.mxu0 0.0
        %1898 = vmatpush.msra.mxu0 0.0
        %1899 = vmatpush.msra.mxu0 0.0
        %1900 = vmatpush.msra.mxu0 0.0
        %1901 = vmatpush.msra.mxu0 0.0
        %1902 = vmatpush.msra.mxu0 0.0
        %1903 = vmatpush.msra.mxu0 0.0
        %1904 = vmatpush.msra.mxu0 0.0
        %1905 = vmatpush.msra.mxu0 0.0
        %1906 = vmatpush.msra.mxu0 0.0
        %1907 = vmatpush.msra.mxu0 0.0
        %1908 = vmatpush.msra.mxu0 0.0
        %1909 = vmatpush.msra.mxu0 0.0
        %1910 = vmatpush.msra.mxu0 0.0
        %v1911 = vand.u32 %v1816, 4294901760
        %1912 = vmatpush.msra.mxu0 %v1911
        %v1913 = vand.u32 %v1818, 4294901760
        %v1914 = vsub.f32 %v1818, %v1913
        %v1915 = vand.u32 %v1914, 4294901760
        %1916 = vmatmul.f32.gmra.mxu0 %v1915
        %v1917 = vpop.f32.mrf.mxu0
        %v1918 = vadd.f32 %v1894, %v1917
        %1919 = vdwg.mxu0
        %1920 = vmatpush.msra.mxu0 0.0
        %1921 = vmatpush.msra.mxu0 0.0
        %1922 = vmatpush.msra.mxu0 0.0
        %1923 = vmatpush.msra.mxu0 0.0
        %1924 = vmatpush.msra.mxu0 0.0
        %1925 = vmatpush.msra.mxu0 0.0
        %1926 = vmatpush.msra.mxu0 0.0
        %1927 = vmatpush.msra.mxu0 0.0
        %1928 = vmatpush.msra.mxu0 0.0
        %1929 = vmatpush.msra.mxu0 0.0
        %1930 = vmatpush.msra.mxu0 0.0
        %1931 = vmatpush.msra.mxu0 0.0
        %1932 = vmatpush.msra.mxu0 0.0
        %1933 = vmatpush.msra.mxu0 0.0
        %1934 = vmatpush.msra.mxu0 0.0
        %v1935 = vand.u32 %v1816, 4294901760
        %v1936 = vsub.f32 %v1816, %v1935
        %v1937 = vand.u32 %v1936, 4294901760
        %1938 = vmatpush.msra.mxu0 %v1937
        %v1939 = vand.u32 %v1818, 4294901760
        %1940 = vmatmul.f32.gmra.mxu0 %v1939
        %v1941 = vpop.f32.mrf.mxu0
        %v1942 = vadd.f32 %v1918, %v1941
        %1943 = vdwg.mxu0
        %1944 = vmatpush.msra.mxu0 0.0
        %1945 = vmatpush.msra.mxu0 0.0
        %1946 = vmatpush.msra.mxu0 0.0
        %1947 = vmatpush.msra.mxu0 0.0
        %1948 = vmatpush.msra.mxu0 0.0
        %1949 = vmatpush.msra.mxu0 0.0
        %1950 = vmatpush.msra.mxu0 0.0
        %1951 = vmatpush.msra.mxu0 0.0
        %1952 = vmatpush.msra.mxu0 0.0
        %1953 = vmatpush.msra.mxu0 0.0
        %1954 = vmatpush.msra.mxu0 0.0
        %1955 = vmatpush.msra.mxu0 0.0
        %1956 = vmatpush.msra.mxu0 0.0
        %1957 = vmatpush.msra.mxu0 0.0
        %1958 = vmatpush.msra.mxu0 0.0
        %v1959 = vand.u32 %v1816, 4294901760
        %1960 = vmatpush.msra.mxu0 %v1959
        %v1961 = vand.u32 %v1818, 4294901760
        %1962 = vmatmul.f32.gmra.mxu0 %v1961
        %v1963 = vpop.f32.mrf.mxu0
        %v1964 = vadd.f32 %v1942, %v1963
        %1965 = vdwg.mxu0
        %v1967 = vsel %vm1094, %v1448, 0
        %1969 = vmatpush.msra.mxu0 0.0
        %1970 = vmatpush.msra.mxu0 0.0
        %1971 = vmatpush.msra.mxu0 0.0
        %1972 = vmatpush.msra.mxu0 0.0
        %1973 = vmatpush.msra.mxu0 0.0
        %1974 = vmatpush.msra.mxu0 0.0
        %1975 = vmatpush.msra.mxu0 0.0
        %1976 = vmatpush.msra.mxu0 0.0
        %1977 = vmatpush.msra.mxu0 0.0
        %1978 = vmatpush.msra.mxu0 0.0
        %1979 = vmatpush.msra.mxu0 0.0
        %1980 = vmatpush.msra.mxu0 0.0
        %1981 = vmatpush.msra.mxu0 0.0
        %1982 = vmatpush.msra.mxu0 0.0
        %1983 = vmatpush.msra.mxu0 0.0
        %v1984 = vand.u32 %v1450, 4294901760
        %1985 = vmatpush.msra.mxu0 %v1984
        %v1986 = vand.u32 %v1967, 4294901760
        %v1987 = vsub.f32 %v1967, %v1986
        %v1988 = vand.u32 %v1987, 4294901760
        %v1989 = vsub.f32 %v1987, %v1988
        %v1990 = vand.u32 %v1989, 4294901760
        %1991 = vmatmul.f32.gmra.mxu0 %v1990
        %v1992 = vpop.f32.mrf.mxu0
        %v1993 = vadd.f32 %v1964, %v1992
        %1994 = vdwg.mxu0
        %1995 = vmatpush.msra.mxu0 0.0
        %1996 = vmatpush.msra.mxu0 0.0
        %1997 = vmatpush.msra.mxu0 0.0
        %1998 = vmatpush.msra.mxu0 0.0
        %1999 = vmatpush.msra.mxu0 0.0
        %2000 = vmatpush.msra.mxu0 0.0
        %2001 = vmatpush.msra.mxu0 0.0
        %2002 = vmatpush.msra.mxu0 0.0
        %2003 = vmatpush.msra.mxu0 0.0
        %2004 = vmatpush.msra.mxu0 0.0
        %2005 = vmatpush.msra.mxu0 0.0
        %2006 = vmatpush.msra.mxu0 0.0
        %2007 = vmatpush.msra.mxu0 0.0
        %2008 = vmatpush.msra.mxu0 0.0
        %2009 = vmatpush.msra.mxu0 0.0
        %v2010 = vand.u32 %v1450, 4294901760
        %v2011 = vsub.f32 %v1450, %v2010
        %v2012 = vand.u32 %v2011, 4294901760
        %v2013 = vsub.f32 %v2011, %v2012
        %v2014 = vand.u32 %v2013, 4294901760
        %2015 = vmatpush.msra.mxu0 %v2014
        %v2016 = vand.u32 %v1967, 4294901760
        %2017 = vmatmul.f32.gmra.mxu0 %v2016
        %v2018 = vpop.f32.mrf.mxu0
        %v2019 = vadd.f32 %v1993, %v2018
        %2020 = vdwg.mxu0
        %2021 = vmatpush.msra.mxu0 0.0
        %2022 = vmatpush.msra.mxu0 0.0
        %2023 = vmatpush.msra.mxu0 0.0
        %2024 = vmatpush.msra.mxu0 0.0
        %2025 = vmatpush.msra.mxu0 0.0
        %2026 = vmatpush.msra.mxu0 0.0
        %2027 = vmatpush.msra.mxu0 0.0
        %2028 = vmatpush.msra.mxu0 0.0
        %2029 = vmatpush.msra.mxu0 0.0
        %2030 = vmatpush.msra.mxu0 0.0
        %2031 = vmatpush.msra.mxu0 0.0
        %2032 = vmatpush.msra.mxu0 0.0
        %2033 = vmatpush.msra.mxu0 0.0
        %2034 = vmatpush.msra.mxu0 0.0
        %2035 = vmatpush.msra.mxu0 0.0
        %v2036 = vand.u32 %v1450, 4294901760
        %v2037 = vsub.f32 %v1450, %v2036
        %2038 = vmatpush.msra.mxu0 %v2037
        %v2039 = vand.u32 %v1967, 4294901760
        %v2040 = vsub.f32 %v1967, %v2039
        %2041 = vmatmul.f32.gmra.mxu0 %v2040
        %v2042 = vpop.f32.mrf.mxu0
        %v2043 = vadd.f32 %v2019, %v2042
        %2044 = vdwg.mxu0
        %2045 = vmatpush.msra.mxu0 0.0
        %2046 = vmatpush.msra.mxu0 0.0
        %2047 = vmatpush.msra.mxu0 0.0
        %2048 = vmatpush.msra.mxu0 0.0
        %2049 = vmatpush.msra.mxu0 0.0
        %2050 = vmatpush.msra.mxu0 0.0
        %2051 = vmatpush.msra.mxu0 0.0
        %2052 = vmatpush.msra.mxu0 0.0
        %2053 = vmatpush.msra.mxu0 0.0
        %2054 = vmatpush.msra.mxu0 0.0
        %2055 = vmatpush.msra.mxu0 0.0
        %2056 = vmatpush.msra.mxu0 0.0
        %2057 = vmatpush.msra.mxu0 0.0
        %2058 = vmatpush.msra.mxu0 0.0
        %2059 = vmatpush.msra.mxu0 0.0
        %v2060 = vand.u32 %v1450, 4294901760
        %2061 = vmatpush.msra.mxu0 %v2060
        %v2062 = vand.u32 %v1967, 4294901760
        %v2063 = vsub.f32 %v1967, %v2062
        %v2064 = vand.u32 %v2063, 4294901760
        %2065 = vmatmul.f32.gmra.mxu0 %v2064
        %v2066 = vpop.f32.mrf.mxu0
        %v2067 = vadd.f32 %v2043, %v2066
        %2068 = vdwg.mxu0
        %2069 = vmatpush.msra.mxu0 0.0
        %2070 = vmatpush.msra.mxu0 0.0
        %2071 = vmatpush.msra.mxu0 0.0
        %2072 = vmatpush.msra.mxu0 0.0
        %2073 = vmatpush.msra.mxu0 0.0
        %2074 = vmatpush.msra.mxu0 0.0
        %2075 = vmatpush.msra.mxu0 0.0
        %2076 = vmatpush.msra.mxu0 0.0
        %2077 = vmatpush.msra.mxu0 0.0
        %2078 = vmatpush.msra.mxu0 0.0
        %2079 = vmatpush.msra.mxu0 0.0
        %2080 = vmatpush.msra.mxu0 0.0
        %2081 = vmatpush.msra.mxu0 0.0
        %2082 = vmatpush.msra.mxu0 0.0
        %2083 = vmatpush.msra.mxu0 0.0
        %v2084 = vand.u32 %v1450, 4294901760
        %v2085 = vsub.f32 %v1450, %v2084
        %v2086 = vand.u32 %v2085, 4294901760
        %2087 = vmatpush.msra.mxu0 %v2086
        %v2088 = vand.u32 %v1967, 4294901760
        %2089 = vmatmul.f32.gmra.mxu0 %v2088
        %v2090 = vpop.f32.mrf.mxu0
        %v2091 = vadd.f32 %v2067, %v2090
        %2092 = vdwg.mxu0
        %2093 = vmatpush.msra.mxu0 0.0
        %2094 = vmatpush.msra.mxu0 0.0
        %2095 = vmatpush.msra.mxu0 0.0
        %2096 = vmatpush.msra.mxu0 0.0
        %2097 = vmatpush.msra.mxu0 0.0
        %2098 = vmatpush.msra.mxu0 0.0
        %2099 = vmatpush.msra.mxu0 0.0
        %2100 = vmatpush.msra.mxu0 0.0
        %2101 = vmatpush.msra.mxu0 0.0
        %2102 = vmatpush.msra.mxu0 0.0
        %2103 = vmatpush.msra.mxu0 0.0
        %2104 = vmatpush.msra.mxu0 0.0
        %2105 = vmatpush.msra.mxu0 0.0
        %2106 = vmatpush.msra.mxu0 0.0
        %2107 = vmatpush.msra.mxu0 0.0
        %v2108 = vand.u32 %v1450, 4294901760
        %2109 = vmatpush.msra.mxu0 %v2108
        %v2110 = vand.u32 %v1967, 4294901760
        %2111 = vmatmul.f32.gmra.mxu0 %v2110
        %v2112 = vpop.f32.mrf.mxu0
        %v2113 = vadd.f32 %v2091, %v2112
        %2114 = vdwg.mxu0
        %2115 = vrot.lane.b32.xlu0 %v1093, 112
        %v2116 = vpop.permute.xlu0 %2115
        %2117 = vrot.lane.b32.xlu0 %v895, 112
        %v2118 = vpop.permute.xlu0 %2117
        %2119 = vrot.lane.b32.xlu0 %v899, 112
        %v2120 = vpop.permute.xlu0 %2119
        %v2121 = vsel %vm1094, %v2116, 0
        %v2123 = vsel %vm1094, %v2118, 0
        %v2125 = vsel %vm1094, %v2120, 0
        %2127 = vmatpush.xpose.msra.mxu0 0.0
        %2128 = vmatpush.xpose.msra.mxu0 0.0
        %2129 = vmatpush.xpose.msra.mxu0 0.0
        %2130 = vmatpush.xpose.msra.mxu0 0.0
        %2131 = vmatpush.xpose.msra.mxu0 0.0
        %2132 = vmatpush.xpose.msra.mxu0 0.0
        %2133 = vmatpush.xpose.msra.mxu0 0.0
        %2134 = vmatpush.xpose.msra.mxu0 0.0
        %2135 = vmatpush.xpose.msra.mxu0 0.0
        %2136 = vmatpush.xpose.msra.mxu0 0.0
        %2137 = vmatpush.xpose.msra.mxu0 0.0
        %2138 = vmatpush.xpose.msra.mxu0 0.0
        %2139 = vmatpush.xpose.msra.mxu0 0.0
        %2140 = vmatpush.xpose.msra.mxu0 0.0
        %v2141 = vand.u32 %v2125, 4294901760
        %2142 = vmatpush.xpose.msra.mxu0 %v2141
        %v2143 = vand.u32 %v2123, 4294901760
        %2144 = vmatpush.xpose.msra.mxu0 %v2143
        %v2145 = vand.u32 %v2121, 4294901760
        %v2146 = vsub.f32 %v2121, %v2145
        %v2147 = vand.u32 %v2146, 4294901760
        %v2148 = vsub.f32 %v2146, %v2147
        %v2149 = vand.u32 %v2148, 4294901760
        %2150 = vmatmul.f32.gmra.mxu0 %v2149
        %v2151 = vpop.f32.mrf.mxu0
        %v2152 = vadd.f32 0.0, %v2151
        %2153 = vdwg.mxu0
        %2154 = vmatpush.xpose.msra.mxu0 0.0
        %2155 = vmatpush.xpose.msra.mxu0 0.0
        %2156 = vmatpush.xpose.msra.mxu0 0.0
        %2157 = vmatpush.xpose.msra.mxu0 0.0
        %2158 = vmatpush.xpose.msra.mxu0 0.0
        %2159 = vmatpush.xpose.msra.mxu0 0.0
        %2160 = vmatpush.xpose.msra.mxu0 0.0
        %2161 = vmatpush.xpose.msra.mxu0 0.0
        %2162 = vmatpush.xpose.msra.mxu0 0.0
        %2163 = vmatpush.xpose.msra.mxu0 0.0
        %2164 = vmatpush.xpose.msra.mxu0 0.0
        %2165 = vmatpush.xpose.msra.mxu0 0.0
        %2166 = vmatpush.xpose.msra.mxu0 0.0
        %2167 = vmatpush.xpose.msra.mxu0 0.0
        %v2168 = vand.u32 %v2125, 4294901760
        %v2169 = vsub.f32 %v2125, %v2168
        %v2170 = vand.u32 %v2169, 4294901760
        %v2171 = vsub.f32 %v2169, %v2170
        %v2172 = vand.u32 %v2171, 4294901760
        %2173 = vmatpush.xpose.msra.mxu0 %v2172
        %v2174 = vand.u32 %v2123, 4294901760
        %v2175 = vsub.f32 %v2123, %v2174
        %v2176 = vand.u32 %v2175, 4294901760
        %v2177 = vsub.f32 %v2175, %v2176
        %v2178 = vand.u32 %v2177, 4294901760
        %2179 = vmatpush.xpose.msra.mxu0 %v2178
        %v2180 = vand.u32 %v2121, 4294901760
        %2181 = vmatmul.f32.gmra.mxu0 %v2180
        %v2182 = vpop.f32.mrf.mxu0
        %v2183 = vadd.f32 %v2152, %v2182
        %2184 = vdwg.mxu0
        %2185 = vmatpush.xpose.msra.mxu0 0.0
        %2186 = vmatpush.xpose.msra.mxu0 0.0
        %2187 = vmatpush.xpose.msra.mxu0 0.0
        %2188 = vmatpush.xpose.msra.mxu0 0.0
        %2189 = vmatpush.xpose.msra.mxu0 0.0
        %2190 = vmatpush.xpose.msra.mxu0 0.0
        %2191 = vmatpush.xpose.msra.mxu0 0.0
        %2192 = vmatpush.xpose.msra.mxu0 0.0
        %2193 = vmatpush.xpose.msra.mxu0 0.0
        %2194 = vmatpush.xpose.msra.mxu0 0.0
        %2195 = vmatpush.xpose.msra.mxu0 0.0
        %2196 = vmatpush.xpose.msra.mxu0 0.0
        %2197 = vmatpush.xpose.msra.mxu0 0.0
        %2198 = vmatpush.xpose.msra.mxu0 0.0
        %v2199 = vand.u32 %v2125, 4294901760
        %v2200 = vsub.f32 %v2125, %v2199
        %2201 = vmatpush.xpose.msra.mxu0 %v2200
        %v2202 = vand.u32 %v2123, 4294901760
        %v2203 = vsub.f32 %v2123, %v2202
        %2204 = vmatpush.xpose.msra.mxu0 %v2203
        %v2205 = vand.u32 %v2121, 4294901760
        %v2206 = vsub.f32 %v2121, %v2205
        %2207 = vmatmul.f32.gmra.mxu0 %v2206
        %v2208 = vpop.f32.mrf.mxu0
        %v2209 = vadd.f32 %v2183, %v2208
        %2210 = vdwg.mxu0
        %2211 = vmatpush.xpose.msra.mxu0 0.0
        %2212 = vmatpush.xpose.msra.mxu0 0.0
        %2213 = vmatpush.xpose.msra.mxu0 0.0
        %2214 = vmatpush.xpose.msra.mxu0 0.0
        %2215 = vmatpush.xpose.msra.mxu0 0.0
        %2216 = vmatpush.xpose.msra.mxu0 0.0
        %2217 = vmatpush.xpose.msra.mxu0 0.0
        %2218 = vmatpush.xpose.msra.mxu0 0.0
        %2219 = vmatpush.xpose.msra.mxu0 0.0
        %2220 = vmatpush.xpose.msra.mxu0 0.0
        %2221 = vmatpush.xpose.msra.mxu0 0.0
        %2222 = vmatpush.xpose.msra.mxu0 0.0
        %2223 = vmatpush.xpose.msra.mxu0 0.0
        %2224 = vmatpush.xpose.msra.mxu0 0.0
        %v2225 = vand.u32 %v2125, 4294901760
        %2226 = vmatpush.xpose.msra.mxu0 %v2225
        %v2227 = vand.u32 %v2123, 4294901760
        %2228 = vmatpush.xpose.msra.mxu0 %v2227
        %v2229 = vand.u32 %v2121, 4294901760
        %v2230 = vsub.f32 %v2121, %v2229
        %v2231 = vand.u32 %v2230, 4294901760
        %2232 = vmatmul.f32.gmra.mxu0 %v2231
        %v2233 = vpop.f32.mrf.mxu0
        %v2234 = vadd.f32 %v2209, %v2233
        %2235 = vdwg.mxu0
        %2236 = vmatpush.xpose.msra.mxu0 0.0
        %2237 = vmatpush.xpose.msra.mxu0 0.0
        %2238 = vmatpush.xpose.msra.mxu0 0.0
        %2239 = vmatpush.xpose.msra.mxu0 0.0
        %2240 = vmatpush.xpose.msra.mxu0 0.0
        %2241 = vmatpush.xpose.msra.mxu0 0.0
        %2242 = vmatpush.xpose.msra.mxu0 0.0
        %2243 = vmatpush.xpose.msra.mxu0 0.0
        %2244 = vmatpush.xpose.msra.mxu0 0.0
        %2245 = vmatpush.xpose.msra.mxu0 0.0
        %2246 = vmatpush.xpose.msra.mxu0 0.0
        %2247 = vmatpush.xpose.msra.mxu0 0.0
        %2248 = vmatpush.xpose.msra.mxu0 0.0
        %2249 = vmatpush.xpose.msra.mxu0 0.0
        %v2250 = vand.u32 %v2125, 4294901760
        %v2251 = vsub.f32 %v2125, %v2250
        %v2252 = vand.u32 %v2251, 4294901760
        %2253 = vmatpush.xpose.msra.mxu0 %v2252
        %v2254 = vand.u32 %v2123, 4294901760
        %v2255 = vsub.f32 %v2123, %v2254
        %v2256 = vand.u32 %v2255, 4294901760
        %2257 = vmatpush.xpose.msra.mxu0 %v2256
        %v2258 = vand.u32 %v2121, 4294901760
        %2259 = vmatmul.f32.gmra.mxu0 %v2258
        %v2260 = vpop.f32.mrf.mxu0
        %v2261 = vadd.f32 %v2234, %v2260
        %2262 = vdwg.mxu0
        %2263 = vmatpush.xpose.msra.mxu0 0.0
        %2264 = vmatpush.xpose.msra.mxu0 0.0
        %2265 = vmatpush.xpose.msra.mxu0 0.0
        %2266 = vmatpush.xpose.msra.mxu0 0.0
        %2267 = vmatpush.xpose.msra.mxu0 0.0
        %2268 = vmatpush.xpose.msra.mxu0 0.0
        %2269 = vmatpush.xpose.msra.mxu0 0.0
        %2270 = vmatpush.xpose.msra.mxu0 0.0
        %2271 = vmatpush.xpose.msra.mxu0 0.0
        %2272 = vmatpush.xpose.msra.mxu0 0.0
        %2273 = vmatpush.xpose.msra.mxu0 0.0
        %2274 = vmatpush.xpose.msra.mxu0 0.0
        %2275 = vmatpush.xpose.msra.mxu0 0.0
        %2276 = vmatpush.xpose.msra.mxu0 0.0
        %v2277 = vand.u32 %v2125, 4294901760
        %2278 = vmatpush.xpose.msra.mxu0 %v2277
        %v2279 = vand.u32 %v2123, 4294901760
        %2280 = vmatpush.xpose.msra.mxu0 %v2279
        %v2281 = vand.u32 %v2121, 4294901760
        %2282 = vmatmul.f32.gmra.mxu0 %v2281
        %v2283 = vpop.f32.mrf.mxu0
        %v2284 = vadd.f32 %v2261, %v2283
        %2285 = vdwg.mxu0
        %v2286 = vsel %vm1263, %v2284, -inf
        %2287 = vmax.xlane.f32.xlu0 %v2286
        %v2288 = vpop.xlane.xlu0 %2287
        %v2289 = vsub.f32 %v2284, %v2288
        %v2290 = vmul.f32 %v2289, 1.442695
        %v2291 = vpow.pop %v2290
        %v2292 = vsel %vm1263, %v2291, 0.0
        %2293 = vadd.xlane.f32.xlu0 %v2292
        %v2294 = vpop.xlane.xlu0 %2293
        %v2295 = vrcp.pop %v2294
        %v2296 = vmul.f32 %v2294, %v2295
        %v2297 = vsub.f32 1.0, %v2296
        %v2298 = vmul.f32 %v2295, %v2297
        %v2299 = vadd.f32 %v2295, %v2298
        %vm2300 = vweird.f32 %v2294
        %vm2301 = vweird.f32 %v2295
        %vm2302 = vmor %vm2300, %vm2301
        %v2303 = vsel %vm2302, %v2295, %v2299
        %v2304 = vand.u32 2147483647, %v2294
        %vm2305 = vcmp.eq.f32.partialorder %v2304, 8.507059e+37
        %v2306 = vand.u32 %v2294, 2147483648
        %v2307 = vor.u32 1.1754944e-38, %v2306
        %v2308 = vsel %vm2305, %v2307, %v2303
        %v2309 = vmul.f32 %v2291, %v2308
        %2310 = vrot.lane.b32.xlu0 %v669, 112
        %v2311 = vpop.permute.xlu0 %2310
        %2312 = vrot.lane.b32.xlu0 %v673, 112
        %v2313 = vpop.permute.xlu0 %2312
        %v2317 = vsel %vm1263, %v2309, 0
        %2319 = vmatpush.msra.mxu0 0.0
        %2320 = vmatpush.msra.mxu0 0.0
        %2321 = vmatpush.msra.mxu0 0.0
        %2322 = vmatpush.msra.mxu0 0.0
        %2323 = vmatpush.msra.mxu0 0.0
        %2324 = vmatpush.msra.mxu0 0.0
        %2325 = vmatpush.msra.mxu0 0.0
        %2326 = vmatpush.msra.mxu0 0.0
        %2327 = vmatpush.msra.mxu0 0.0
        %2328 = vmatpush.msra.mxu0 0.0
        %2329 = vmatpush.msra.mxu0 0.0
        %2330 = vmatpush.msra.mxu0 0.0
        %2331 = vmatpush.msra.mxu0 0.0
        %2332 = vmatpush.msra.mxu0 0.0
        %v2333 = vand.u32 %v2313, 4294901760
        %2334 = vmatpush.msra.mxu0 %v2333
        %v2335 = vand.u32 %v2311, 4294901760
        %2336 = vmatpush.msra.mxu0 %v2335
        %v2337 = vand.u32 %v2317, 4294901760
        %v2338 = vsub.f32 %v2317, %v2337
        %v2339 = vand.u32 %v2338, 4294901760
        %v2340 = vsub.f32 %v2338, %v2339
        %v2341 = vand.u32 %v2340, 4294901760
        %2342 = vmatmul.f32.gmra.mxu0 %v2341
        %v2343 = vpop.f32.mrf.mxu0
        %v2344 = vadd.f32 0.0, %v2343
        %2345 = vdwg.mxu0
        %2346 = vmatpush.msra.mxu0 0.0
        %2347 = vmatpush.msra.mxu0 0.0
        %2348 = vmatpush.msra.mxu0 0.0
        %2349 = vmatpush.msra.mxu0 0.0
        %2350 = vmatpush.msra.mxu0 0.0
        %2351 = vmatpush.msra.mxu0 0.0
        %2352 = vmatpush.msra.mxu0 0.0
        %2353 = vmatpush.msra.mxu0 0.0
        %2354 = vmatpush.msra.mxu0 0.0
        %2355 = vmatpush.msra.mxu0 0.0
        %2356 = vmatpush.msra.mxu0 0.0
        %2357 = vmatpush.msra.mxu0 0.0
        %2358 = vmatpush.msra.mxu0 0.0
        %2359 = vmatpush.msra.mxu0 0.0
        %v2360 = vand.u32 %v2313, 4294901760
        %v2361 = vsub.f32 %v2313, %v2360
        %v2362 = vand.u32 %v2361, 4294901760
        %v2363 = vsub.f32 %v2361, %v2362
        %v2364 = vand.u32 %v2363, 4294901760
        %2365 = vmatpush.msra.mxu0 %v2364
        %v2366 = vand.u32 %v2311, 4294901760
        %v2367 = vsub.f32 %v2311, %v2366
        %v2368 = vand.u32 %v2367, 4294901760
        %v2369 = vsub.f32 %v2367, %v2368
        %v2370 = vand.u32 %v2369, 4294901760
        %2371 = vmatpush.msra.mxu0 %v2370
        %v2372 = vand.u32 %v2317, 4294901760
        %2373 = vmatmul.f32.gmra.mxu0 %v2372
        %v2374 = vpop.f32.mrf.mxu0
        %v2375 = vadd.f32 %v2344, %v2374
        %2376 = vdwg.mxu0
        %2377 = vmatpush.msra.mxu0 0.0
        %2378 = vmatpush.msra.mxu0 0.0
        %2379 = vmatpush.msra.mxu0 0.0
        %2380 = vmatpush.msra.mxu0 0.0
        %2381 = vmatpush.msra.mxu0 0.0
        %2382 = vmatpush.msra.mxu0 0.0
        %2383 = vmatpush.msra.mxu0 0.0
        %2384 = vmatpush.msra.mxu0 0.0
        %2385 = vmatpush.msra.mxu0 0.0
        %2386 = vmatpush.msra.mxu0 0.0
        %2387 = vmatpush.msra.mxu0 0.0
        %2388 = vmatpush.msra.mxu0 0.0
        %2389 = vmatpush.msra.mxu0 0.0
        %2390 = vmatpush.msra.mxu0 0.0
        %v2391 = vand.u32 %v2313, 4294901760
        %v2392 = vsub.f32 %v2313, %v2391
        %2393 = vmatpush.msra.mxu0 %v2392
        %v2394 = vand.u32 %v2311, 4294901760
        %v2395 = vsub.f32 %v2311, %v2394
        %2396 = vmatpush.msra.mxu0 %v2395
        %v2397 = vand.u32 %v2317, 4294901760
        %v2398 = vsub.f32 %v2317, %v2397
        %2399 = vmatmul.f32.gmra.mxu0 %v2398
        %v2400 = vpop.f32.mrf.mxu0
        %v2401 = vadd.f32 %v2375, %v2400
        %2402 = vdwg.mxu0
        %2403 = vmatpush.msra.mxu0 0.0
        %2404 = vmatpush.msra.mxu0 0.0
        %2405 = vmatpush.msra.mxu0 0.0
        %2406 = vmatpush.msra.mxu0 0.0
        %2407 = vmatpush.msra.mxu0 0.0
        %2408 = vmatpush.msra.mxu0 0.0
        %2409 = vmatpush.msra.mxu0 0.0
        %2410 = vmatpush.msra.mxu0 0.0
        %2411 = vmatpush.msra.mxu0 0.0
        %2412 = vmatpush.msra.mxu0 0.0
        %2413 = vmatpush.msra.mxu0 0.0
        %2414 = vmatpush.msra.mxu0 0.0
        %2415 = vmatpush.msra.mxu0 0.0
        %2416 = vmatpush.msra.mxu0 0.0
        %v2417 = vand.u32 %v2313, 4294901760
        %2418 = vmatpush.msra.mxu0 %v2417
        %v2419 = vand.u32 %v2311, 4294901760
        %2420 = vmatpush.msra.mxu0 %v2419
        %v2421 = vand.u32 %v2317, 4294901760
        %v2422 = vsub.f32 %v2317, %v2421
        %v2423 = vand.u32 %v2422, 4294901760
        %2424 = vmatmul.f32.gmra.mxu0 %v2423
        %v2425 = vpop.f32.mrf.mxu0
        %v2426 = vadd.f32 %v2401, %v2425
        %2427 = vdwg.mxu0
        %2428 = vmatpush.msra.mxu0 0.0
        %2429 = vmatpush.msra.mxu0 0.0
        %2430 = vmatpush.msra.mxu0 0.0
        %2431 = vmatpush.msra.mxu0 0.0
        %2432 = vmatpush.msra.mxu0 0.0
        %2433 = vmatpush.msra.mxu0 0.0
        %2434 = vmatpush.msra.mxu0 0.0
        %2435 = vmatpush.msra.mxu0 0.0
        %2436 = vmatpush.msra.mxu0 0.0
        %2437 = vmatpush.msra.mxu0 0.0
        %2438 = vmatpush.msra.mxu0 0.0
        %2439 = vmatpush.msra.mxu0 0.0
        %2440 = vmatpush.msra.mxu0 0.0
        %2441 = vmatpush.msra.mxu0 0.0
        %v2442 = vand.u32 %v2313, 4294901760
        %v2443 = vsub.f32 %v2313, %v2442
        %v2444 = vand.u32 %v2443, 4294901760
        %2445 = vmatpush.msra.mxu0 %v2444
        %v2446 = vand.u32 %v2311, 4294901760
        %v2447 = vsub.f32 %v2311, %v2446
        %v2448 = vand.u32 %v2447, 4294901760
        %2449 = vmatpush.msra.mxu0 %v2448
        %v2450 = vand.u32 %v2317, 4294901760
        %2451 = vmatmul.f32.gmra.mxu0 %v2450
        %v2452 = vpop.f32.mrf.mxu0
        %v2453 = vadd.f32 %v2426, %v2452
        %2454 = vdwg.mxu0
        %2455 = vmatpush.msra.mxu0 0.0
        %2456 = vmatpush.msra.mxu0 0.0
        %2457 = vmatpush.msra.mxu0 0.0
        %2458 = vmatpush.msra.mxu0 0.0
        %2459 = vmatpush.msra.mxu0 0.0
        %2460 = vmatpush.msra.mxu0 0.0
        %2461 = vmatpush.msra.mxu0 0.0
        %2462 = vmatpush.msra.mxu0 0.0
        %2463 = vmatpush.msra.mxu0 0.0
        %2464 = vmatpush.msra.mxu0 0.0
        %2465 = vmatpush.msra.mxu0 0.0
        %2466 = vmatpush.msra.mxu0 0.0
        %2467 = vmatpush.msra.mxu0 0.0
        %2468 = vmatpush.msra.mxu0 0.0
        %v2469 = vand.u32 %v2313, 4294901760
        %2470 = vmatpush.msra.mxu0 %v2469
        %v2471 = vand.u32 %v2311, 4294901760
        %2472 = vmatpush.msra.mxu0 %v2471
        %v2473 = vand.u32 %v2317, 4294901760
        %2474 = vmatmul.f32.gmra.mxu0 %v2473
        %v2475 = vpop.f32.mrf.mxu0
        %v2476 = vadd.f32 %v2453, %v2475
        %2477 = vdwg.mxu0
        %v2478 = vld [vmem:[#allocation13 + $0x10] sm:$0xff]
        %v2480 = vsel %vm1094, %v2476, 0
        %2482 = vmatpush.msra.mxu0 0.0
        %2483 = vmatpush.msra.mxu0 0.0
        %2484 = vmatpush.msra.mxu0 0.0
        %2485 = vmatpush.msra.mxu0 0.0
        %2486 = vmatpush.msra.mxu0 0.0
        %2487 = vmatpush.msra.mxu0 0.0
        %2488 = vmatpush.msra.mxu0 0.0
        %2489 = vmatpush.msra.mxu0 0.0
        %2490 = vmatpush.msra.mxu0 0.0
        %2491 = vmatpush.msra.mxu0 0.0
        %2492 = vmatpush.msra.mxu0 0.0
        %2493 = vmatpush.msra.mxu0 0.0
        %2494 = vmatpush.msra.mxu0 0.0
        %2495 = vmatpush.msra.mxu0 0.0
        %2496 = vmatpush.msra.mxu0 0.0
        %v2497 = vand.u32 %v2478, 4294901760
        %2498 = vmatpush.msra.mxu0 %v2497
        %v2499 = vand.u32 %v2480, 4294901760
        %v2500 = vsub.f32 %v2480, %v2499
        %v2501 = vand.u32 %v2500, 4294901760
        %v2502 = vsub.f32 %v2500, %v2501
        %v2503 = vand.u32 %v2502, 4294901760
        %2504 = vmatmul.f32.gmra.mxu0 %v2503
        %v2505 = vpop.f32.mrf.mxu0
        %v2506 = vadd.f32 0.0, %v2505
        %2507 = vdwg.mxu0
        %2508 = vmatpush.msra.mxu0 0.0
        %2509 = vmatpush.msra.mxu0 0.0
        %2510 = vmatpush.msra.mxu0 0.0
        %2511 = vmatpush.msra.mxu0 0.0
        %2512 = vmatpush.msra.mxu0 0.0
        %2513 = vmatpush.msra.mxu0 0.0
        %2514 = vmatpush.msra.mxu0 0.0
        %2515 = vmatpush.msra.mxu0 0.0
        %2516 = vmatpush.msra.mxu0 0.0
        %2517 = vmatpush.msra.mxu0 0.0
        %2518 = vmatpush.msra.mxu0 0.0
        %2519 = vmatpush.msra.mxu0 0.0
        %2520 = vmatpush.msra.mxu0 0.0
        %2521 = vmatpush.msra.mxu0 0.0
        %2522 = vmatpush.msra.mxu0 0.0
        %v2523 = vand.u32 %v2478, 4294901760
        %v2524 = vsub.f32 %v2478, %v2523
        %v2525 = vand.u32 %v2524, 4294901760
        %v2526 = vsub.f32 %v2524, %v2525
        %v2527 = vand.u32 %v2526, 4294901760
        %2528 = vmatpush.msra.mxu0 %v2527
        %v2529 = vand.u32 %v2480, 4294901760
        %2530 = vmatmul.f32.gmra.mxu0 %v2529
        %v2531 = vpop.f32.mrf.mxu0
        %v2532 = vadd.f32 %v2506, %v2531
        %2533 = vdwg.mxu0
        %2534 = vmatpush.msra.mxu0 0.0
        %2535 = vmatpush.msra.mxu0 0.0
        %2536 = vmatpush.msra.mxu0 0.0
        %2537 = vmatpush.msra.mxu0 0.0
        %2538 = vmatpush.msra.mxu0 0.0
        %2539 = vmatpush.msra.mxu0 0.0
        %2540 = vmatpush.msra.mxu0 0.0
        %2541 = vmatpush.msra.mxu0 0.0
        %2542 = vmatpush.msra.mxu0 0.0
        %2543 = vmatpush.msra.mxu0 0.0
        %2544 = vmatpush.msra.mxu0 0.0
        %2545 = vmatpush.msra.mxu0 0.0
        %2546 = vmatpush.msra.mxu0 0.0
        %2547 = vmatpush.msra.mxu0 0.0
        %2548 = vmatpush.msra.mxu0 0.0
        %v2549 = vand.u32 %v2478, 4294901760
        %v2550 = vsub.f32 %v2478, %v2549
        %2551 = vmatpush.msra.mxu0 %v2550
        %v2552 = vand.u32 %v2480, 4294901760
        %v2553 = vsub.f32 %v2480, %v2552
        %2554 = vmatmul.f32.gmra.mxu0 %v2553
        %v2555 = vpop.f32.mrf.mxu0
        %v2556 = vadd.f32 %v2532, %v2555
        %2557 = vdwg.mxu0
        %2558 = vmatpush.msra.mxu0 0.0
        %2559 = vmatpush.msra.mxu0 0.0
        %2560 = vmatpush.msra.mxu0 0.0
        %2561 = vmatpush.msra.mxu0 0.0
        %2562 = vmatpush.msra.mxu0 0.0
        %2563 = vmatpush.msra.mxu0 0.0
        %2564 = vmatpush.msra.mxu0 0.0
        %2565 = vmatpush.msra.mxu0 0.0
        %2566 = vmatpush.msra.mxu0 0.0
        %2567 = vmatpush.msra.mxu0 0.0
        %2568 = vmatpush.msra.mxu0 0.0
        %2569 = vmatpush.msra.mxu0 0.0
        %2570 = vmatpush.msra.mxu0 0.0
        %2571 = vmatpush.msra.mxu0 0.0
        %2572 = vmatpush.msra.mxu0 0.0
        %v2573 = vand.u32 %v2478, 4294901760
        %2574 = vmatpush.msra.mxu0 %v2573
        %v2575 = vand.u32 %v2480, 4294901760
        %v2576 = vsub.f32 %v2480, %v2575
        %v2577 = vand.u32 %v2576, 4294901760
        %2578 = vmatmul.f32.gmra.mxu0 %v2577
        %v2579 = vpop.f32.mrf.mxu0
        %v2580 = vadd.f32 %v2556, %v2579
        %2581 = vdwg.mxu0
        %2582 = vmatpush.msra.mxu0 0.0
        %2583 = vmatpush.msra.mxu0 0.0
        %2584 = vmatpush.msra.mxu0 0.0
        %2585 = vmatpush.msra.mxu0 0.0
        %2586 = vmatpush.msra.mxu0 0.0
        %2587 = vmatpush.msra.mxu0 0.0
        %2588 = vmatpush.msra.mxu0 0.0
        %2589 = vmatpush.msra.mxu0 0.0
        %2590 = vmatpush.msra.mxu0 0.0
        %2591 = vmatpush.msra.mxu0 0.0
        %2592 = vmatpush.msra.mxu0 0.0
        %2593 = vmatpush.msra.mxu0 0.0
        %2594 = vmatpush.msra.mxu0 0.0
        %2595 = vmatpush.msra.mxu0 0.0
        %2596 = vmatpush.msra.mxu0 0.0
        %v2597 = vand.u32 %v2478, 4294901760
        %v2598 = vsub.f32 %v2478, %v2597
        %v2599 = vand.u32 %v2598, 4294901760
        %2600 = vmatpush.msra.mxu0 %v2599
        %v2601 = vand.u32 %v2480, 4294901760
        %2602 = vmatmul.f32.gmra.mxu0 %v2601
        %v2603 = vpop.f32.mrf.mxu0
        %v2604 = vadd.f32 %v2580, %v2603
        %2605 = vdwg.mxu0
        %2606 = vmatpush.msra.mxu0 0.0
        %2607 = vmatpush.msra.mxu0 0.0
        %2608 = vmatpush.msra.mxu0 0.0
        %2609 = vmatpush.msra.mxu0 0.0
        %2610 = vmatpush.msra.mxu0 0.0
        %2611 = vmatpush.msra.mxu0 0.0
        %2612 = vmatpush.msra.mxu0 0.0
        %2613 = vmatpush.msra.mxu0 0.0
        %2614 = vmatpush.msra.mxu0 0.0
        %2615 = vmatpush.msra.mxu0 0.0
        %2616 = vmatpush.msra.mxu0 0.0
        %2617 = vmatpush.msra.mxu0 0.0
        %2618 = vmatpush.msra.mxu0 0.0
        %2619 = vmatpush.msra.mxu0 0.0
        %2620 = vmatpush.msra.mxu0 0.0
        %v2621 = vand.u32 %v2478, 4294901760
        %2622 = vmatpush.msra.mxu0 %v2621
        %v2623 = vand.u32 %v2480, 4294901760
        %2624 = vmatmul.f32.gmra.mxu0 %v2623
        %v2625 = vpop.f32.mrf.mxu0
        %v2626 = vadd.f32 %v2604, %v2625
        %2627 = vdwg.mxu0
        %v2628 = vadd.f32 %v2113, %v2626
        %2629 = vrot.lane.b32.xlu0 %v1093, 104
        %v2630 = vpop.permute.xlu0 %2629
        %2631 = vrot.lane.b32.xlu0 %v895, 104
        %v2632 = vpop.permute.xlu0 %2631
        %2633 = vrot.lane.b32.xlu0 %v899, 104
        %v2634 = vpop.permute.xlu0 %2633
        %v2635 = vsel %vm1094, %v2630, 0
        %v2637 = vsel %vm1094, %v2632, 0
        %v2639 = vsel %vm1094, %v2634, 0
        %2641 = vmatpush.xpose.msra.mxu0 0.0
        %2642 = vmatpush.xpose.msra.mxu0 0.0
        %2643 = vmatpush.xpose.msra.mxu0 0.0
        %2644 = vmatpush.xpose.msra.mxu0 0.0
        %2645 = vmatpush.xpose.msra.mxu0 0.0
        %2646 = vmatpush.xpose.msra.mxu0 0.0
        %2647 = vmatpush.xpose.msra.mxu0 0.0
        %2648 = vmatpush.xpose.msra.mxu0 0.0
        %2649 = vmatpush.xpose.msra.mxu0 0.0
        %2650 = vmatpush.xpose.msra.mxu0 0.0
        %2651 = vmatpush.xpose.msra.mxu0 0.0
        %2652 = vmatpush.xpose.msra.mxu0 0.0
        %2653 = vmatpush.xpose.msra.mxu0 0.0
        %2654 = vmatpush.xpose.msra.mxu0 0.0
        %v2655 = vand.u32 %v2639, 4294901760
        %2656 = vmatpush.xpose.msra.mxu0 %v2655
        %v2657 = vand.u32 %v2637, 4294901760
        %2658 = vmatpush.xpose.msra.mxu0 %v2657
        %v2659 = vand.u32 %v2635, 4294901760
        %v2660 = vsub.f32 %v2635, %v2659
        %v2661 = vand.u32 %v2660, 4294901760
        %v2662 = vsub.f32 %v2660, %v2661
        %v2663 = vand.u32 %v2662, 4294901760
        %2664 = vmatmul.f32.gmra.mxu0 %v2663
        %v2665 = vpop.f32.mrf.mxu0
        %v2666 = vadd.f32 0.0, %v2665
        %2667 = vdwg.mxu0
        %2668 = vmatpush.xpose.msra.mxu0 0.0
        %2669 = vmatpush.xpose.msra.mxu0 0.0
        %2670 = vmatpush.xpose.msra.mxu0 0.0
        %2671 = vmatpush.xpose.msra.mxu0 0.0
        %2672 = vmatpush.xpose.msra.mxu0 0.0
        %2673 = vmatpush.xpose.msra.mxu0 0.0
        %2674 = vmatpush.xpose.msra.mxu0 0.0
        %2675 = vmatpush.xpose.msra.mxu0 0.0
        %2676 = vmatpush.xpose.msra.mxu0 0.0
        %2677 = vmatpush.xpose.msra.mxu0 0.0
        %2678 = vmatpush.xpose.msra.mxu0 0.0
        %2679 = vmatpush.xpose.msra.mxu0 0.0
        %2680 = vmatpush.xpose.msra.mxu0 0.0
        %2681 = vmatpush.xpose.msra.mxu0 0.0
        %v2682 = vand.u32 %v2639, 4294901760
        %v2683 = vsub.f32 %v2639, %v2682
        %v2684 = vand.u32 %v2683, 4294901760
        %v2685 = vsub.f32 %v2683, %v2684
        %v2686 = vand.u32 %v2685, 4294901760
        %2687 = vmatpush.xpose.msra.mxu0 %v2686
        %v2688 = vand.u32 %v2637, 4294901760
        %v2689 = vsub.f32 %v2637, %v2688
        %v2690 = vand.u32 %v2689, 4294901760
        %v2691 = vsub.f32 %v2689, %v2690
        %v2692 = vand.u32 %v2691, 4294901760
        %2693 = vmatpush.xpose.msra.mxu0 %v2692
        %v2694 = vand.u32 %v2635, 4294901760
        %2695 = vmatmul.f32.gmra.mxu0 %v2694
        %v2696 = vpop.f32.mrf.mxu0
        %v2697 = vadd.f32 %v2666, %v2696
        %2698 = vdwg.mxu0
        %2699 = vmatpush.xpose.msra.mxu0 0.0
        %2700 = vmatpush.xpose.msra.mxu0 0.0
        %2701 = vmatpush.xpose.msra.mxu0 0.0
        %2702 = vmatpush.xpose.msra.mxu0 0.0
        %2703 = vmatpush.xpose.msra.mxu0 0.0
        %2704 = vmatpush.xpose.msra.mxu0 0.0
        %2705 = vmatpush.xpose.msra.mxu0 0.0
        %2706 = vmatpush.xpose.msra.mxu0 0.0
        %2707 = vmatpush.xpose.msra.mxu0 0.0
        %2708 = vmatpush.xpose.msra.mxu0 0.0
        %2709 = vmatpush.xpose.msra.mxu0 0.0
        %2710 = vmatpush.xpose.msra.mxu0 0.0
        %2711 = vmatpush.xpose.msra.mxu0 0.0
        %2712 = vmatpush.xpose.msra.mxu0 0.0
        %v2713 = vand.u32 %v2639, 4294901760
        %v2714 = vsub.f32 %v2639, %v2713
        %2715 = vmatpush.xpose.msra.mxu0 %v2714
        %v2716 = vand.u32 %v2637, 4294901760
        %v2717 = vsub.f32 %v2637, %v2716
        %2718 = vmatpush.xpose.msra.mxu0 %v2717
        %v2719 = vand.u32 %v2635, 4294901760
        %v2720 = vsub.f32 %v2635, %v2719
        %2721 = vmatmul.f32.gmra.mxu0 %v2720
        %v2722 = vpop.f32.mrf.mxu0
        %v2723 = vadd.f32 %v2697, %v2722
        %2724 = vdwg.mxu0
        %2725 = vmatpush.xpose.msra.mxu0 0.0
        %2726 = vmatpush.xpose.msra.mxu0 0.0
        %2727 = vmatpush.xpose.msra.mxu0 0.0
        %2728 = vmatpush.xpose.msra.mxu0 0.0
        %2729 = vmatpush.xpose.msra.mxu0 0.0
        %2730 = vmatpush.xpose.msra.mxu0 0.0
        %2731 = vmatpush.xpose.msra.mxu0 0.0
        %2732 = vmatpush.xpose.msra.mxu0 0.0
        %2733 = vmatpush.xpose.msra.mxu0 0.0
        %2734 = vmatpush.xpose.msra.mxu0 0.0
        %2735 = vmatpush.xpose.msra.mxu0 0.0
        %2736 = vmatpush.xpose.msra.mxu0 0.0
        %2737 = vmatpush.xpose.msra.mxu0 0.0
        %2738 = vmatpush.xpose.msra.mxu0 0.0
        %v2739 = vand.u32 %v2639, 4294901760
        %2740 = vmatpush.xpose.msra.mxu0 %v2739
        %v2741 = vand.u32 %v2637, 4294901760
        %2742 = vmatpush.xpose.msra.mxu0 %v2741
        %v2743 = vand.u32 %v2635, 4294901760
        %v2744 = vsub.f32 %v2635, %v2743
        %v2745 = vand.u32 %v2744, 4294901760
        %2746 = vmatmul.f32.gmra.mxu0 %v2745
        %v2747 = vpop.f32.mrf.mxu0
        %v2748 = vadd.f32 %v2723, %v2747
        %2749 = vdwg.mxu0
        %2750 = vmatpush.xpose.msra.mxu0 0.0
        %2751 = vmatpush.xpose.msra.mxu0 0.0
        %2752 = vmatpush.xpose.msra.mxu0 0.0
        %2753 = vmatpush.xpose.msra.mxu0 0.0
        %2754 = vmatpush.xpose.msra.mxu0 0.0
        %2755 = vmatpush.xpose.msra.mxu0 0.0
        %2756 = vmatpush.xpose.msra.mxu0 0.0
        %2757 = vmatpush.xpose.msra.mxu0 0.0
        %2758 = vmatpush.xpose.msra.mxu0 0.0
        %2759 = vmatpush.xpose.msra.mxu0 0.0
        %2760 = vmatpush.xpose.msra.mxu0 0.0
        %2761 = vmatpush.xpose.msra.mxu0 0.0
        %2762 = vmatpush.xpose.msra.mxu0 0.0
        %2763 = vmatpush.xpose.msra.mxu0 0.0
        %v2764 = vand.u32 %v2639, 4294901760
        %v2765 = vsub.f32 %v2639, %v2764
        %v2766 = vand.u32 %v2765, 4294901760
        %2767 = vmatpush.xpose.msra.mxu0 %v2766
        %v2768 = vand.u32 %v2637, 4294901760
        %v2769 = vsub.f32 %v2637, %v2768
        %v2770 = vand.u32 %v2769, 4294901760
        %2771 = vmatpush.xpose.msra.mxu0 %v2770
        %v2772 = vand.u32 %v2635, 4294901760
        %2773 = vmatmul.f32.gmra.mxu0 %v2772
        %v2774 = vpop.f32.mrf.mxu0
        %v2775 = vadd.f32 %v2748, %v2774
        %2776 = vdwg.mxu0
        %2777 = vmatpush.xpose.msra.mxu0 0.0
        %2778 = vmatpush.xpose.msra.mxu0 0.0
        %2779 = vmatpush.xpose.msra.mxu0 0.0
        %2780 = vmatpush.xpose.msra.mxu0 0.0
        %2781 = vmatpush.xpose.msra.mxu0 0.0
        %2782 = vmatpush.xpose.msra.mxu0 0.0
        %2783 = vmatpush.xpose.msra.mxu0 0.0
        %2784 = vmatpush.xpose.msra.mxu0 0.0
        %2785 = vmatpush.xpose.msra.mxu0 0.0
        %2786 = vmatpush.xpose.msra.mxu0 0.0
        %2787 = vmatpush.xpose.msra.mxu0 0.0
        %2788 = vmatpush.xpose.msra.mxu0 0.0
        %2789 = vmatpush.xpose.msra.mxu0 0.0
        %2790 = vmatpush.xpose.msra.mxu0 0.0
        %v2791 = vand.u32 %v2639, 4294901760
        %2792 = vmatpush.xpose.msra.mxu0 %v2791
        %v2793 = vand.u32 %v2637, 4294901760
        %2794 = vmatpush.xpose.msra.mxu0 %v2793
        %v2795 = vand.u32 %v2635, 4294901760
        %2796 = vmatmul.f32.gmra.mxu0 %v2795
        %v2797 = vpop.f32.mrf.mxu0
        %v2798 = vadd.f32 %v2775, %v2797
        %2799 = vdwg.mxu0
        %v2800 = vsel %vm1263, %v2798, -inf
        %2801 = vmax.xlane.f32.xlu0 %v2800
        %v2802 = vpop.xlane.xlu0 %2801
        %v2803 = vsub.f32 %v2798, %v2802
        %v2804 = vmul.f32 %v2803, 1.442695
        %v2805 = vpow.pop %v2804
        %v2806 = vsel %vm1263, %v2805, 0.0
        %2807 = vadd.xlane.f32.xlu0 %v2806
        %v2808 = vpop.xlane.xlu0 %2807
        %v2809 = vrcp.pop %v2808
        %v2810 = vmul.f32 %v2808, %v2809
        %v2811 = vsub.f32 1.0, %v2810
        %v2812 = vmul.f32 %v2809, %v2811
        %v2813 = vadd.f32 %v2809, %v2812
        %vm2814 = vweird.f32 %v2808
        %vm2815 = vweird.f32 %v2809
        %vm2816 = vmor %vm2814, %vm2815
        %v2817 = vsel %vm2816, %v2809, %v2813
        %v2818 = vand.u32 2147483647, %v2808
        %vm2819 = vcmp.eq.f32.partialorder %v2818, 8.507059e+37
        %v2820 = vand.u32 %v2808, 2147483648
        %v2821 = vor.u32 1.1754944e-38, %v2820
        %v2822 = vsel %vm2819, %v2821, %v2817
        %v2823 = vmul.f32 %v2805, %v2822
        %2824 = vrot.lane.b32.xlu0 %v669, 104
        %v2825 = vpop.permute.xlu0 %2824
        %2826 = vrot.lane.b32.xlu0 %v673, 104
        %v2827 = vpop.permute.xlu0 %2826
        %v2831 = vsel %vm1263, %v2823, 0
        %2833 = vmatpush.msra.mxu0 0.0
        %2834 = vmatpush.msra.mxu0 0.0
        %2835 = vmatpush.msra.mxu0 0.0
        %2836 = vmatpush.msra.mxu0 0.0
        %2837 = vmatpush.msra.mxu0 0.0
        %2838 = vmatpush.msra.mxu0 0.0
        %2839 = vmatpush.msra.mxu0 0.0
        %2840 = vmatpush.msra.mxu0 0.0
        %2841 = vmatpush.msra.mxu0 0.0
        %2842 = vmatpush.msra.mxu0 0.0
        %2843 = vmatpush.msra.mxu0 0.0
        %2844 = vmatpush.msra.mxu0 0.0
        %2845 = vmatpush.msra.mxu0 0.0
        %2846 = vmatpush.msra.mxu0 0.0
        %v2847 = vand.u32 %v2827, 4294901760
        %2848 = vmatpush.msra.mxu0 %v2847
        %v2849 = vand.u32 %v2825, 4294901760
        %2850 = vmatpush.msra.mxu0 %v2849
        %v2851 = vand.u32 %v2831, 4294901760
        %v2852 = vsub.f32 %v2831, %v2851
        %v2853 = vand.u32 %v2852, 4294901760
        %v2854 = vsub.f32 %v2852, %v2853
        %v2855 = vand.u32 %v2854, 4294901760
        %2856 = vmatmul.f32.gmra.mxu0 %v2855
        %v2857 = vpop.f32.mrf.mxu0
        %v2858 = vadd.f32 0.0, %v2857
        %2859 = vdwg.mxu0
        %2860 = vmatpush.msra.mxu0 0.0
        %2861 = vmatpush.msra.mxu0 0.0
        %2862 = vmatpush.msra.mxu0 0.0
        %2863 = vmatpush.msra.mxu0 0.0
        %2864 = vmatpush.msra.mxu0 0.0
        %2865 = vmatpush.msra.mxu0 0.0
        %2866 = vmatpush.msra.mxu0 0.0
        %2867 = vmatpush.msra.mxu0 0.0
        %2868 = vmatpush.msra.mxu0 0.0
        %2869 = vmatpush.msra.mxu0 0.0
        %2870 = vmatpush.msra.mxu0 0.0
        %2871 = vmatpush.msra.mxu0 0.0
        %2872 = vmatpush.msra.mxu0 0.0
        %2873 = vmatpush.msra.mxu0 0.0
        %v2874 = vand.u32 %v2827, 4294901760
        %v2875 = vsub.f32 %v2827, %v2874
        %v2876 = vand.u32 %v2875, 4294901760
        %v2877 = vsub.f32 %v2875, %v2876
        %v2878 = vand.u32 %v2877, 4294901760
        %2879 = vmatpush.msra.mxu0 %v2878
        %v2880 = vand.u32 %v2825, 4294901760
        %v2881 = vsub.f32 %v2825, %v2880
        %v2882 = vand.u32 %v2881, 4294901760
        %v2883 = vsub.f32 %v2881, %v2882
        %v2884 = vand.u32 %v2883, 4294901760
        %2885 = vmatpush.msra.mxu0 %v2884
        %v2886 = vand.u32 %v2831, 4294901760
        %2887 = vmatmul.f32.gmra.mxu0 %v2886
        %v2888 = vpop.f32.mrf.mxu0
        %v2889 = vadd.f32 %v2858, %v2888
        %2890 = vdwg.mxu0
        %2891 = vmatpush.msra.mxu0 0.0
        %2892 = vmatpush.msra.mxu0 0.0
        %2893 = vmatpush.msra.mxu0 0.0
        %2894 = vmatpush.msra.mxu0 0.0
        %2895 = vmatpush.msra.mxu0 0.0
        %2896 = vmatpush.msra.mxu0 0.0
        %2897 = vmatpush.msra.mxu0 0.0
        %2898 = vmatpush.msra.mxu0 0.0
        %2899 = vmatpush.msra.mxu0 0.0
        %2900 = vmatpush.msra.mxu0 0.0
        %2901 = vmatpush.msra.mxu0 0.0
        %2902 = vmatpush.msra.mxu0 0.0
        %2903 = vmatpush.msra.mxu0 0.0
        %2904 = vmatpush.msra.mxu0 0.0
        %v2905 = vand.u32 %v2827, 4294901760
        %v2906 = vsub.f32 %v2827, %v2905
        %2907 = vmatpush.msra.mxu0 %v2906
        %v2908 = vand.u32 %v2825, 4294901760
        %v2909 = vsub.f32 %v2825, %v2908
        %2910 = vmatpush.msra.mxu0 %v2909
        %v2911 = vand.u32 %v2831, 4294901760
        %v2912 = vsub.f32 %v2831, %v2911
        %2913 = vmatmul.f32.gmra.mxu0 %v2912
        %v2914 = vpop.f32.mrf.mxu0
        %v2915 = vadd.f32 %v2889, %v2914
        %2916 = vdwg.mxu0
        %2917 = vmatpush.msra.mxu0 0.0
        %2918 = vmatpush.msra.mxu0 0.0
        %2919 = vmatpush.msra.mxu0 0.0
        %2920 = vmatpush.msra.mxu0 0.0
        %2921 = vmatpush.msra.mxu0 0.0
        %2922 = vmatpush.msra.mxu0 0.0
        %2923 = vmatpush.msra.mxu0 0.0
        %2924 = vmatpush.msra.mxu0 0.0
        %2925 = vmatpush.msra.mxu0 0.0
        %2926 = vmatpush.msra.mxu0 0.0
        %2927 = vmatpush.msra.mxu0 0.0
        %2928 = vmatpush.msra.mxu0 0.0
        %2929 = vmatpush.msra.mxu0 0.0
        %2930 = vmatpush.msra.mxu0 0.0
        %v2931 = vand.u32 %v2827, 4294901760
        %2932 = vmatpush.msra.mxu0 %v2931
        %v2933 = vand.u32 %v2825, 4294901760
        %2934 = vmatpush.msra.mxu0 %v2933
        %v2935 = vand.u32 %v2831, 4294901760
        %v2936 = vsub.f32 %v2831, %v2935
        %v2937 = vand.u32 %v2936, 4294901760
        %2938 = vmatmul.f32.gmra.mxu0 %v2937
        %v2939 = vpop.f32.mrf.mxu0
        %v2940 = vadd.f32 %v2915, %v2939
        %2941 = vdwg.mxu0
        %2942 = vmatpush.msra.mxu0 0.0
        %2943 = vmatpush.msra.mxu0 0.0
        %2944 = vmatpush.msra.mxu0 0.0
        %2945 = vmatpush.msra.mxu0 0.0
        %2946 = vmatpush.msra.mxu0 0.0
        %2947 = vmatpush.msra.mxu0 0.0
        %2948 = vmatpush.msra.mxu0 0.0
        %2949 = vmatpush.msra.mxu0 0.0
        %2950 = vmatpush.msra.mxu0 0.0
        %2951 = vmatpush.msra.mxu0 0.0
        %2952 = vmatpush.msra.mxu0 0.0
        %2953 = vmatpush.msra.mxu0 0.0
        %2954 = vmatpush.msra.mxu0 0.0
        %2955 = vmatpush.msra.mxu0 0.0
        %v2956 = vand.u32 %v2827, 4294901760
        %v2957 = vsub.f32 %v2827, %v2956
        %v2958 = vand.u32 %v2957, 4294901760
        %2959 = vmatpush.msra.mxu0 %v2958
        %v2960 = vand.u32 %v2825, 4294901760
        %v2961 = vsub.f32 %v2825, %v2960
        %v2962 = vand.u32 %v2961, 4294901760
        %2963 = vmatpush.msra.mxu0 %v2962
        %v2964 = vand.u32 %v2831, 4294901760
        %2965 = vmatmul.f32.gmra.mxu0 %v2964
        %v2966 = vpop.f32.mrf.mxu0
        %v2967 = vadd.f32 %v2940, %v2966
        %2968 = vdwg.mxu0
        %2969 = vmatpush.msra.mxu0 0.0
        %2970 = vmatpush.msra.mxu0 0.0
        %2971 = vmatpush.msra.mxu0 0.0
        %2972 = vmatpush.msra.mxu0 0.0
        %2973 = vmatpush.msra.mxu0 0.0
        %2974 = vmatpush.msra.mxu0 0.0
        %2975 = vmatpush.msra.mxu0 0.0
        %2976 = vmatpush.msra.mxu0 0.0
        %2977 = vmatpush.msra.mxu0 0.0
        %2978 = vmatpush.msra.mxu0 0.0
        %2979 = vmatpush.msra.mxu0 0.0
        %2980 = vmatpush.msra.mxu0 0.0
        %2981 = vmatpush.msra.mxu0 0.0
        %2982 = vmatpush.msra.mxu0 0.0
        %v2983 = vand.u32 %v2827, 4294901760
        %2984 = vmatpush.msra.mxu0 %v2983
        %v2985 = vand.u32 %v2825, 4294901760
        %2986 = vmatpush.msra.mxu0 %v2985
        %v2987 = vand.u32 %v2831, 4294901760
        %2988 = vmatmul.f32.gmra.mxu0 %v2987
        %v2989 = vpop.f32.mrf.mxu0
        %v2990 = vadd.f32 %v2967, %v2989
        %2991 = vdwg.mxu0
        %v2992 = vld [vmem:[#allocation13 + $0x18] sm:$0xff]
        %v2994 = vsel %vm1094, %v2990, 0
        %2996 = vmatpush.msra.mxu0 0.0
        %2997 = vmatpush.msra.mxu0 0.0
        %2998 = vmatpush.msra.mxu0 0.0
        %2999 = vmatpush.msra.mxu0 0.0
        %3000 = vmatpush.msra.mxu0 0.0
        %3001 = vmatpush.msra.mxu0 0.0
        %3002 = vmatpush.msra.mxu0 0.0
        %3003 = vmatpush.msra.mxu0 0.0
        %3004 = vmatpush.msra.mxu0 0.0
        %3005 = vmatpush.msra.mxu0 0.0
        %3006 = vmatpush.msra.mxu0 0.0
        %3007 = vmatpush.msra.mxu0 0.0
        %3008 = vmatpush.msra.mxu0 0.0
        %3009 = vmatpush.msra.mxu0 0.0
        %3010 = vmatpush.msra.mxu0 0.0
        %v3011 = vand.u32 %v2992, 4294901760
        %3012 = vmatpush.msra.mxu0 %v3011
        %v3013 = vand.u32 %v2994, 4294901760
        %v3014 = vsub.f32 %v2994, %v3013
        %v3015 = vand.u32 %v3014, 4294901760
        %v3016 = vsub.f32 %v3014, %v3015
        %v3017 = vand.u32 %v3016, 4294901760
        %3018 = vmatmul.f32.gmra.mxu0 %v3017
        %v3019 = vpop.f32.mrf.mxu0
        %v3020 = vadd.f32 0.0, %v3019
        %3021 = vdwg.mxu0
        %3022 = vmatpush.msra.mxu0 0.0
        %3023 = vmatpush.msra.mxu0 0.0
        %3024 = vmatpush.msra.mxu0 0.0
        %3025 = vmatpush.msra.mxu0 0.0
        %3026 = vmatpush.msra.mxu0 0.0
        %3027 = vmatpush.msra.mxu0 0.0
        %3028 = vmatpush.msra.mxu0 0.0
        %3029 = vmatpush.msra.mxu0 0.0
        %3030 = vmatpush.msra.mxu0 0.0
        %3031 = vmatpush.msra.mxu0 0.0
        %3032 = vmatpush.msra.mxu0 0.0
        %3033 = vmatpush.msra.mxu0 0.0
        %3034 = vmatpush.msra.mxu0 0.0
        %3035 = vmatpush.msra.mxu0 0.0
        %3036 = vmatpush.msra.mxu0 0.0
        %v3037 = vand.u32 %v2992, 4294901760
        %v3038 = vsub.f32 %v2992, %v3037
        %v3039 = vand.u32 %v3038, 4294901760
        %v3040 = vsub.f32 %v3038, %v3039
        %v3041 = vand.u32 %v3040, 4294901760
        %3042 = vmatpush.msra.mxu0 %v3041
        %v3043 = vand.u32 %v2994, 4294901760
        %3044 = vmatmul.f32.gmra.mxu0 %v3043
        %v3045 = vpop.f32.mrf.mxu0
        %v3046 = vadd.f32 %v3020, %v3045
        %3047 = vdwg.mxu0
        %3048 = vmatpush.msra.mxu0 0.0
        %3049 = vmatpush.msra.mxu0 0.0
        %3050 = vmatpush.msra.mxu0 0.0
        %3051 = vmatpush.msra.mxu0 0.0
        %3052 = vmatpush.msra.mxu0 0.0
        %3053 = vmatpush.msra.mxu0 0.0
        %3054 = vmatpush.msra.mxu0 0.0
        %3055 = vmatpush.msra.mxu0 0.0
        %3056 = vmatpush.msra.mxu0 0.0
        %3057 = vmatpush.msra.mxu0 0.0
        %3058 = vmatpush.msra.mxu0 0.0
        %3059 = vmatpush.msra.mxu0 0.0
        %3060 = vmatpush.msra.mxu0 0.0
        %3061 = vmatpush.msra.mxu0 0.0
        %3062 = vmatpush.msra.mxu0 0.0
        %v3063 = vand.u32 %v2992, 4294901760
        %v3064 = vsub.f32 %v2992, %v3063
        %3065 = vmatpush.msra.mxu0 %v3064
        %v3066 = vand.u32 %v2994, 4294901760
        %v3067 = vsub.f32 %v2994, %v3066
        %3068 = vmatmul.f32.gmra.mxu0 %v3067
        %v3069 = vpop.f32.mrf.mxu0
        %v3070 = vadd.f32 %v3046, %v3069
        %3071 = vdwg.mxu0
        %3072 = vmatpush.msra.mxu0 0.0
        %3073 = vmatpush.msra.mxu0 0.0
        %3074 = vmatpush.msra.mxu0 0.0
        %3075 = vmatpush.msra.mxu0 0.0
        %3076 = vmatpush.msra.mxu0 0.0
        %3077 = vmatpush.msra.mxu0 0.0
        %3078 = vmatpush.msra.mxu0 0.0
        %3079 = vmatpush.msra.mxu0 0.0
        %3080 = vmatpush.msra.mxu0 0.0
        %3081 = vmatpush.msra.mxu0 0.0
        %3082 = vmatpush.msra.mxu0 0.0
        %3083 = vmatpush.msra.mxu0 0.0
        %3084 = vmatpush.msra.mxu0 0.0
        %3085 = vmatpush.msra.mxu0 0.0
        %3086 = vmatpush.msra.mxu0 0.0
        %v3087 = vand.u32 %v2992, 4294901760
        %3088 = vmatpush.msra.mxu0 %v3087
        %v3089 = vand.u32 %v2994, 4294901760
        %v3090 = vsub.f32 %v2994, %v3089
        %v3091 = vand.u32 %v3090, 4294901760
        %3092 = vmatmul.f32.gmra.mxu0 %v3091
        %v3093 = vpop.f32.mrf.mxu0
        %v3094 = vadd.f32 %v3070, %v3093
        %3095 = vdwg.mxu0
        %3096 = vmatpush.msra.mxu0 0.0
        %3097 = vmatpush.msra.mxu0 0.0
        %3098 = vmatpush.msra.mxu0 0.0
        %3099 = vmatpush.msra.mxu0 0.0
        %3100 = vmatpush.msra.mxu0 0.0
        %3101 = vmatpush.msra.mxu0 0.0
        %3102 = vmatpush.msra.mxu0 0.0
        %3103 = vmatpush.msra.mxu0 0.0
        %3104 = vmatpush.msra.mxu0 0.0
        %3105 = vmatpush.msra.mxu0 0.0
        %3106 = vmatpush.msra.mxu0 0.0
        %3107 = vmatpush.msra.mxu0 0.0
        %3108 = vmatpush.msra.mxu0 0.0
        %3109 = vmatpush.msra.mxu0 0.0
        %3110 = vmatpush.msra.mxu0 0.0
        %v3111 = vand.u32 %v2992, 4294901760
        %v3112 = vsub.f32 %v2992, %v3111
        %v3113 = vand.u32 %v3112, 4294901760
        %3114 = vmatpush.msra.mxu0 %v3113
        %v3115 = vand.u32 %v2994, 4294901760
        %3116 = vmatmul.f32.gmra.mxu0 %v3115
        %v3117 = vpop.f32.mrf.mxu0
        %v3118 = vadd.f32 %v3094, %v3117
        %3119 = vdwg.mxu0
        %3120 = vmatpush.msra.mxu0 0.0
        %3121 = vmatpush.msra.mxu0 0.0
        %3122 = vmatpush.msra.mxu0 0.0
        %3123 = vmatpush.msra.mxu0 0.0
        %3124 = vmatpush.msra.mxu0 0.0
        %3125 = vmatpush.msra.mxu0 0.0
        %3126 = vmatpush.msra.mxu0 0.0
        %3127 = vmatpush.msra.mxu0 0.0
        %3128 = vmatpush.msra.mxu0 0.0
        %3129 = vmatpush.msra.mxu0 0.0
        %3130 = vmatpush.msra.mxu0 0.0
        %3131 = vmatpush.msra.mxu0 0.0
        %3132 = vmatpush.msra.mxu0 0.0
        %3133 = vmatpush.msra.mxu0 0.0
        %3134 = vmatpush.msra.mxu0 0.0
        %v3135 = vand.u32 %v2992, 4294901760
        %3136 = vmatpush.msra.mxu0 %v3135
        %v3137 = vand.u32 %v2994, 4294901760
        %3138 = vmatmul.f32.gmra.mxu0 %v3137
        %v3139 = vpop.f32.mrf.mxu0
        %v3140 = vadd.f32 %v3118, %v3139
        %3141 = vdwg.mxu0
        %v3142 = vadd.f32 %v2628, %v3140
        %3143 = vst.msk [vmem:[%s442] sm:$0xff] %vm452, %v3142
        %s3144 = sand.u32 %s199, 1
        %s3145 = scalar_lea.sflag [#allocation4], %s3144
        %s3146 = sand.u32 %s199, 1
        %s3147 = smul.addr %s3146, 8
        %s3148 = scalar_lea.vmem [#allocation14], %s3147
        // Predicated region
        $region77: #{tpu_custom_call.1} parent=47 // pred_check
          %p3149 = pneg %p209
        $region78: #{tpu_custom_call.1} parent=47 // pred_check_branch
          %3151 = sbr.rel (%p3149) target = $region80
        $region79: #{tpu_custom_call.1} parent=47 // pred_region
          %3153 = vsyncadd %s3145, 0
          %s3154 = smul.addr %s29, 8
          %s3155 = scalar_lea.hbm %s7, %s3154
          %s3157 = sshll.u32 %s3148, 4
          %s3158 = int_to_ptr.vmem [resolvable:$true] %s3157
          %s3159 = sshll.u32 %s3155, 4
          %s3160 = int_to_ptr.hbm [resolvable:$true] %s3159
          %3162 = dma.vmem_to_hbm [thread:$0]  %s3158, 128, %s3160, %s3145
        $region80: #{tpu_custom_call.1} parent=47 // pred_fallthru
          _
      $region48: #{tpu_custom_call.1} parent=5 // pred_fallthru
        _
      %p3163 = scmp.le.s32.totalorder 2, %s24
      // Predicated region
      $region81: #{tpu_custom_call.1} parent=5 // pred_check
        %p3164 = pneg %p3163
      $region82: #{tpu_custom_call.1} parent=5 // pred_check_branch
        %3166 = sbr.rel (%p3164) target = $region84
      $region83: #{tpu_custom_call.1} parent=5 // pred_region
        %s3167 = ssub.s32 %s24, 2
        // Predicated region
        $region85: #{tpu_custom_call.1} parent=83 // pred_check
          %p3168 = pneg %p215
        $region86: #{tpu_custom_call.1} parent=83 // pred_check_branch
          %3170 = sbr.rel (%p3168) target = $region88
        $region87: #{tpu_custom_call.1} parent=83 // pred_region
          %s3171 = sand.u32 %s200, 1
          %s3172 = scalar_lea.sflag [#allocation4], %s3171
          %s3173 = sand.u32 %s200, 1
          %s3174 = smul.addr %s3173, 8
          %s3175 = scalar_lea.vmem [#allocation14], %s3174
          %3177 = dma.done %s3172, 128
        $region88: #{tpu_custom_call.1} parent=83 // pred_fallthru
          _
      $region84: #{tpu_custom_call.1} parent=5 // pred_fallthru
        _
    $region6: #{tpu_custom_call.1} parent=1 // loop_footer
      %s28 = sadd.s32 1, %s24
    $region7: #{tpu_custom_call.1} parent=1 // loop_footer_branch
      %23 = sbr.rel target = $region3
    $region8: #{tpu_custom_call.1} parent=1 // loop_exit
      _
    %3178 = vsyncpa [#allocation3], 1
    %s3179 = scalar_lea.sflag [#allocation3], 1
    %3180 = vsyncpa %s3179, 1
    %3181 = vsyncpa [#allocation6], 1
    %s3182 = scalar_lea.sflag [#allocation6], 1
    %3183 = vsyncpa %s3182, 1
    %3184 = vsyncpa [#allocation9], 1
    %3185 = vsyncpa [#allocation12], 1
    %3186 = vsyncpa [#allocation4], 1
    %s3187 = scalar_lea.sflag [#allocation4], 1
    %3188 = vsyncpa %s3187, 1

</llo_original>
